<compile_context>
chip_gen: v7x
topology: tpu7x:2x2x1
jax: 0.10.0
libtpu: 0.0.40
codegen_flags: <defaults>
</compile_context>

<pallas_src>
import functools

import numpy as np
import jax
import jax.numpy as jnp
from jax.experimental import pallas as pl
from jax.experimental.pallas import tpu as pltpu

INPUT_DIM = 43
PAD_LEN = INPUT_DIM + 2               # zero-padded signal (also the k=3 conv halo)
HID_NN1, HID_NN2 = 128, 64
SEQ_LEN = 5
FEAT = INPUT_DIM // SEQ_LEN           # 8
H = 64                                # LSTM / RNN hidden
CONV_C = 16

# AdaptiveAvgPool1d(4) on length 43 -> segments [floor(p*43/4), ceil((p+1)*43/4))
POOL_BOUNDS = ((0, 11), (10, 22), (21, 33), (32, 43))

# ---- wide-matmul lane layout (all offsets 128-aligned) ----
GATE_W = 6 * H                        # 384: [i|f | o|pad | g|rnn]
OFF_NN = 0                            # 128 lanes: NN first layer
OFF_GIN = HID_NN1                     # 128: 5 x 384 gate-projection blocks
OFF_CONV = OFF_GIN + SEQ_LEN * GATE_W  # 2048: conv im2col block
CONV_REAL = INPUT_DIM * CONV_C        # 688 (position-major l*16 + c)
CONV_LANES = 768                      # padded to 6*128
N_WIDE = OFF_CONV + CONV_LANES        # 2816
FEAT_W = HID_NN2 + 2 * H + CONV_C     # 208: [nn | lstm | rnn | cnn_hid]


def _round_up(n, m):
    return ((n + m - 1) // m) * m


def _default_vmem_limit():
    """Chip-aware VMEM limit: leave headroom below physical (v7x), allow big tiles
    on 128 MiB parts (v5e/v6e)."""
    try:
        cap = int(pltpu.get_tpu_info().vmem_capacity_bytes)
    except Exception:
        cap = 128 * 1024 * 1024
    return int(min(100 * 2**20, max(cap - 16 * 2**20, 32 * 2**20)))


_VMEM_LIMIT = _default_vmem_limit()


# --------------------------------------------------------------------------
# Kernel
# --------------------------------------------------------------------------
def torch_models_kernel(
    xp_ref,                                    # (TB, 45) zero-padded input, f32
    wwide_ref, bwide_ref,                      # (45, 2816) bf16 / (1, 2816) f32
    nw2_ref, nb2_ref,                          # NN layer 2: (128,64) bf16 / (1,64) f32
    whh_ref,                                   # fused recurrence (128, 384) bf16
    wpool_ref, bpool_ref,                      # pool+Linear fold (768,16) bf16 / (1,16)
    whead_ref, bhead_ref,                      # merged heads (208,4) bf16 / (1,4)
    out_ref,                                   # (TB, 8) packed output
):
    xp = xp_ref[...]                           # (TB, 45) f32
    TB = xp.shape[0]

    # ---- single wide matmul over x: NN1 | 5 gate projections | conv im2col ----
    wide = jnp.dot(xp.astype(jnp.bfloat16), wwide_ref[...],
                   preferred_element_type=jnp.float32) + bwide_ref[...]   # (TB, 2816)

    # ---------------- NeuralNetwork head ----------------
    h1 = jnp.maximum(wide[:, OFF_NN:OFF_NN + HID_NN1], 0.0)               # (TB, 128)
    h_nn = jnp.maximum(
        jnp.dot(h1.astype(jnp.bfloat16), nw2_ref[...],
                preferred_element_type=jnp.float32) + nb2_ref[...], 0.0)  # (TB, 64)

    # ---------------- CNN head (conv already in `wide`; pooling on the MXU) ----
    conv_flat = jnp.maximum(wide[:, OFF_CONV:OFF_CONV + CONV_LANES], 0.0)  # (TB, 768)
    hid = jnp.maximum(
        jnp.dot(conv_flat.astype(jnp.bfloat16), wpool_ref[...],
                preferred_element_type=jnp.float32) + bpool_ref[...], 0.0)  # (TB, 16)

    # ---------------- fused LSTM + RNN recurrence ----------------
    whh = whh_ref[...]                         # (128, 384) bf16 block-diagonal
    h_cat = jnp.zeros((TB, 2 * H), jnp.float32)      # [h_lstm | h_rnn]
    c_t = jnp.zeros((TB, H), jnp.float32)
    for t in range(SEQ_LEN):                   # 5-step static unroll
        gin = wide[:, OFF_GIN + t * GATE_W:OFF_GIN + (t + 1) * GATE_W]    # (TB, 384)
        gates = gin + jnp.dot(h_cat.astype(jnp.bfloat16), whh,
                              preferred_element_type=jnp.float32)
        sg = jax.nn.sigmoid(gates[:, 0:4 * H])     # lanes 0:256  -> i, f, o, (pad)
        th = jnp.tanh(gates[:, 4 * H:6 * H])       # lanes 256:384 -> g, rnn
        i_g = sg[:, 0:H]
        f_g = sg[:, H:2 * H]
        o_g = sg[:, 2 * H:3 * H]
        g_g = th[:, 0:H]
        h_rnn = th[:, H:2 * H]
        c_t = f_g * c_t + i_g * g_g
        h_lstm = o_g * jnp.tanh(c_t)
        h_cat = jnp.concatenate([h_lstm, h_rnn], axis=1)

    # ---------------- merged scalar heads + ensemble ----------------
    feat = jnp.concatenate([h_nn, h_cat, hid], axis=1)                     # (TB, 208)
    heads = jax.nn.sigmoid(
        jnp.dot(feat.astype(jnp.bfloat16), whead_ref[...],
                preferred_element_type=jnp.float32) + bhead_ref[...])      # (TB, 4)
    comb = jnp.sum(heads, axis=1, keepdims=True) * 0.25                    # (TB, 1)

    out_ref[...] = jnp.concatenate(
        [comb, heads, jnp.zeros((TB, 3), jnp.float32)], axis=1)            # (TB, 8)


# --------------------------------------------------------------------------
# Parameters (canonical, PyTorch-equivalent layout)
# --------------------------------------------------------------------------
def init_params(key):
    """Deterministic PyTorch-style init (uniform +-1/sqrt(fan)), canonical layout."""
    ks = iter(jax.random.split(key, 32))

    def u(shape, fan):
        b = 1.0 / (float(fan) ** 0.5)
        return jax.random.uniform(next(ks), shape, jnp.float32, -b, b)

    p = {}
    # NeuralNetwork: Linear(43,128), Linear(128,64), Linear(64,1)  (weights as (in,out))
    p["nw1"] = u((INPUT_DIM, HID_NN1), INPUT_DIM)
    p["nb1"] = u((1, HID_NN1), INPUT_DIM)
    p["nw2"] = u((HID_NN1, HID_NN2), HID_NN1)
    p["nb2"] = u((1, HID_NN2), HID_NN1)
    p["nw3"] = u((HID_NN2, 1), HID_NN2)
    p["nb3"] = u((1, 1), HID_NN2)
    # LSTM(8 -> 64): gate column order i, f, g, o (PyTorch)
    p["lwih"] = u((FEAT, 4 * H), H)
    p["lwhh"] = u((H, 4 * H), H)
    p["lbih"] = u((1, 4 * H), H)
    p["lbhh"] = u((1, 4 * H), H)
    p["llw"] = u((H, 1), H)
    p["llb"] = u((1, 1), H)
    # RNN(8 -> 64)
    p["rwih"] = u((FEAT, H), H)
    p["rwhh"] = u((H, H), H)
    p["rbih"] = u((1, H), H)
    p["rbhh"] = u((1, H), H)
    p["rlw"] = u((H, 1), H)
    p["rlb"] = u((1, 1), H)
    # CNN: Conv1d(1,16,3,pad=1), Linear(64,16), Linear(16,1)
    p["conv_w"] = u((CONV_C, 3), 3)
    p["conv_b"] = u((CONV_C,), 3)
    p["cls1"] = u((CONV_C * 4, CONV_C), CONV_C * 4)   # W1^T, rows in flat order c*4+p
    p["clb1"] = u((1, CONV_C), CONV_C * 4)
    p["cls2"] = u((CONV_C, 1), CONV_C)
    p["clb2"] = u((1, 1), CONV_C)
    return p


# ---- static structural matrices (numpy, parameter-independent) ----
def _conv_im2col_selector():
    """A[k, r, l] = 1 iff xp row r feeds conv output position l through tap k."""
    A = np.zeros((3, PAD_LEN, INPUT_DIM), np.float32)
    for k in range(3):
        for l in range(INPUT_DIM):
            A[k, l + k, l] = 1.0
    return A


def _pool_indicator():
    """M[l*16+c, c*4+p] = 1/len_p iff conv position l is in pool segment p."""
    M = np.zeros((CONV_REAL, CONV_C * 4), np.float32)
    for pidx, (s, e) in enumerate(POOL_BOUNDS):
        inv = 1.0 / float(e - s)
        for l in range(s, e):
            for c in range(CONV_C):
                M[l * CONV_C + c, c * 4 + pidx] += inv
    return M


_CONV_SEL = jnp.asarray(_conv_im2col_selector())
_POOL_IND = jnp.asarray(_pool_indicator())


def _pack_gate_cols(lstm_ifgo, rnn_part):
    """(.., 256) PyTorch-order LSTM gates + (.., 64) RNN -> (.., 384) [i|f|o|0|g|rnn]."""
    i = lstm_ifgo[..., 0:H]
    f = lstm_ifgo[..., H:2 * H]
    g = lstm_ifgo[..., 2 * H:3 * H]
    o = lstm_ifgo[..., 3 * H:4 * H]
    z = jnp.zeros_like(i)
    return jnp.concatenate([i, f, o, z, g, rnn_part], axis=-1)


def prepare_kernel_params(p):
    """Host-side packing: wide x-matmul weight, gate reorder + block-diag recurrence,
    pool-fold, merged heads.  Matmul weights cast to bf16; biases stay f32."""
    f32 = jnp.float32

    # fused gate projection / biases (384 lanes, zero pad block)
    w_in = _pack_gate_cols(p["lwih"], p["rwih"])                          # (8, 384)
    b_in = _pack_gate_cols(p["lbih"] + p["lbhh"], p["rbih"] + p["rbhh"])  # (1, 384)

    # block-diagonal recurrent weight: rows 0:64 = h_lstm, 64:128 = h_rnn
    w_hh = jnp.zeros((2 * H, GATE_W), f32)
    w_hh = w_hh.at[0:H, :].set(_pack_gate_cols(p["lwhh"], jnp.zeros((H, H), f32)))
    w_hh = w_hh.at[H:2 * H, 5 * H:6 * H].set(p["rwhh"])                   # (128, 384)

    # conv im2col block (45, 688), position-major lanes l*16+c, taps baked in
    w_conv = jnp.einsum("krl,ck->rlc", _CONV_SEL, p["conv_w"]).reshape(PAD_LEN, CONV_REAL)
    b_conv = jnp.broadcast_to(p["conv_b"][None, :], (INPUT_DIM, CONV_C)).reshape(1, CONV_REAL)

    # wide weight / bias over xp (rows: 0 = left pad, 1..43 = x, 44 = right pad)
    w_wide = jnp.zeros((PAD_LEN, N_WIDE), f32)
    b_wide = jnp.zeros((1, N_WIDE), f32)
    w_wide = w_wide.at[1:1 + INPUT_DIM, OFF_NN:OFF_NN + HID_NN1].set(p["nw1"])
    b_wide = b_wide.at[:, OFF_NN:OFF_NN + HID_NN1].set(p["nb1"])
    for t in range(SEQ_LEN):
        r0 = 1 + t * FEAT
        c0 = OFF_GIN + t * GATE_W
        w_wide = w_wide.at[r0:r0 + FEAT, c0:c0 + GATE_W].set(w_in)
        b_wide = b_wide.at[:, c0:c0 + GATE_W].set(b_in)
    w_wide = w_wide.at[:, OFF_CONV:OFF_CONV + CONV_REAL].set(w_conv)
    b_wide = b_wide.at[:, OFF_CONV:OFF_CONV + CONV_REAL].set(b_conv)

    # pool indicator (1/len folded) pre-multiplied into Linear(64,16); pad rows zero
    w_pool = jnp.concatenate(
        [_POOL_IND @ p["cls1"],
         jnp.zeros((CONV_LANES - CONV_REAL, CONV_C), f32)], axis=0)       # (768, 16)

    # merged scalar head projection: feat = [h_nn | h_lstm | h_rnn | cnn_hid]
    w_head = jnp.zeros((FEAT_W, 4), f32)
    w_head = w_head.at[0:HID_NN2, 0].set(p["nw3"][:, 0])
    w_head = w_head.at[HID_NN2:HID_NN2 + H, 1].set(p["llw"][:, 0])
    w_head = w_head.at[HID_NN2 + H:HID_NN2 + 2 * H, 2].set(p["rlw"][:, 0])
    w_head = w_head.at[HID_NN2 + 2 * H:FEAT_W, 3].set(p["cls2"][:, 0])
    b_head = jnp.concatenate([p["nb3"], p["llb"], p["rlb"], p["clb2"]], axis=1)

    bf16 = jnp.bfloat16
    return [w_wide.astype(bf16), b_wide,
            p["nw2"].astype(bf16), p["nb2"],
            w_hh.astype(bf16),
            w_pool.astype(bf16), p["clb1"],
            w_head.astype(bf16), b_head]


# --------------------------------------------------------------------------
# Wrapper
# --------------------------------------------------------------------------
@functools.partial(jax.jit, static_argnames=("block_b",))
def torch_models_forward(x, params, *, block_b=512):
    """block_b: batch tile (multiple of 8). 512 is safe on v7x (64 MiB VMEM);
    v5e/v6e (128 MiB VMEM) can sweep 1024-2048."""
    x = x.astype(jnp.float32)
    B = x.shape[0]

    B8 = _round_up(max(B, 1), 8)
    TB = max(8, min(_round_up(block_b, 8), B8))
    # v7x has 2 TensorCores: keep at least 2 grid steps whenever the batch allows.
    if B8 // TB < 2 and B8 > 8:
        TB = _round_up((B8 + 1) // 2, 8)
    Bp = _round_up(B8, TB)

    # single zero-padded input (serves both the raw signal and the k=3 conv halo)
    xp = jnp.zeros((Bp, PAD_LEN), jnp.float32)
    xp = xp.at[:B, 1:INPUT_DIM + 1].set(x)

    kparams = prepare_kernel_params(params)
    args = [xp] + kparams

    def const_map(nd):
        return lambda i: (0,) * nd

    in_specs = [pl.BlockSpec((TB, PAD_LEN), lambda i: (i, 0))]
    for w in kparams:
        in_specs.append(pl.BlockSpec(w.shape, const_map(w.ndim)))

    # advisory cost estimate for the XLA scheduler
    flops = 2 * Bp * (PAD_LEN * N_WIDE + HID_NN1 * HID_NN2
                      + SEQ_LEN * 2 * H * GATE_W + CONV_LANES * CONV_C + FEAT_W * 4)
    transcendentals = Bp * (SEQ_LEN * (4 * H + 2 * H + H) + 4)
    weight_bytes = sum(int(w.size) * w.dtype.itemsize for w in kparams)
    bytes_accessed = Bp * (PAD_LEN + 8) * 4 + weight_bytes

    out = pl.pallas_call(
        torch_models_kernel,
        out_shape=jax.ShapeDtypeStruct((Bp, 8), jnp.float32),
        grid_spec=pltpu.PrefetchScalarGridSpec(
            num_scalar_prefetch=0,
            grid=(Bp // TB,),
            in_specs=in_specs,
            out_specs=pl.BlockSpec((TB, 8), lambda i: (i, 0)),
        ),
        compiler_params=pltpu.CompilerParams(
            dimension_semantics=("parallel",),
            vmem_limit_bytes=_VMEM_LIMIT,
        ),
        cost_estimate=pl.CostEstimate(
            flops=int(flops),
            transcendentals=int(transcendentals),
            bytes_accessed=int(bytes_accessed),
        ),
    )(*args)

    out = out[:B]
    comb, nn_o, lstm_o, rnn_o, cnn_o = (out[:, 0:1], out[:, 1:2], out[:, 2:3],
                                        out[:, 3:4], out[:, 4:5])
    return comb, nn_o, lstm_o, rnn_o, cnn_o


# --------------------------------------------------------------------------
# Pure-JAX reference (canonical params, PyTorch math) for correctness check
# --------------------------------------------------------------------------
def reference_forward(x, p):
    x = x.astype(jnp.float32)
    B = x.shape[0]
    # NN
    h = jnp.maximum(x @ p["nw1"] + p["nb1"], 0.0)
    h = jnp.maximum(h @ p["nw2"] + p["nb2"], 0.0)
    nn_out = jax.nn.sigmoid(h @ p["nw3"] + p["nb3"])
    # LSTM (gate order i,f,g,o)
    h_t = jnp.zeros((B, H)); c_t = jnp.zeros((B, H))
    for t in range(SEQ_LEN):
        x_t = x[:, t * FEAT:(t + 1) * FEAT]
        g = x_t @ p["lwih"] + p["lbih"] + h_t @ p["lwhh"] + p["lbhh"]
        i = jax.nn.sigmoid(g[:, :H]); f = jax.nn.sigmoid(g[:, H:2 * H])
        gg = jnp.tanh(g[:, 2 * H:3 * H]); o = jax.nn.sigmoid(g[:, 3 * H:])
        c_t = f * c_t + i * gg
        h_t = o * jnp.tanh(c_t)
    lstm_out = jax.nn.sigmoid(h_t @ p["llw"] + p["llb"])
    # RNN
    h_t = jnp.zeros((B, H))
    for t in range(SEQ_LEN):
        x_t = x[:, t * FEAT:(t + 1) * FEAT]
        h_t = jnp.tanh(x_t @ p["rwih"] + p["rbih"] + h_t @ p["rwhh"] + p["rbhh"])
    rnn_out = jax.nn.sigmoid(h_t @ p["rlw"] + p["rlb"])
    # CNN
    xp = jnp.pad(x, ((0, 0), (1, 1)))
    conv = (xp[:, 0:43][:, None, :] * p["conv_w"][:, 0].reshape(1, CONV_C, 1)
            + xp[:, 1:44][:, None, :] * p["conv_w"][:, 1].reshape(1, CONV_C, 1)
            + xp[:, 2:45][:, None, :] * p["conv_w"][:, 2].reshape(1, CONV_C, 1)
            + p["conv_b"].reshape(1, CONV_C, 1))
    conv = jnp.maximum(conv, 0.0)
    pooled = jnp.stack([jnp.mean(conv[:, :, s:e], axis=2) for (s, e) in POOL_BOUNDS],
                       axis=2)                                   # (B, 16, 4)
    flat = pooled.reshape(B, CONV_C * 4)                         # channel-major flatten
    hid = jnp.maximum(flat @ p["cls1"] + p["clb1"], 0.0)
    cnn_out = jax.nn.sigmoid(hid @ p["cls2"] + p["clb2"])
    comb = (nn_out + lstm_out + rnn_out + cnn_out) / 4.0
    return comb, nn_out, lstm_out, rnn_out, cnn_out


if __name__ == "__main__":
    key = jax.random.PRNGKey(0)
    k_x, k_p = jax.random.split(key)
    B = 20
    x = jax.random.normal(k_x, (B, INPUT_DIM), jnp.float32)
    params = init_params(k_p)

    # small batch tile to exercise the grid (3 steps) and the padded last block
    outs = torch_models_forward(x, params, block_b=8)
    outs = jax.block_until_ready(outs)

    ref = reference_forward(x, params)
    for o, r in zip(outs, ref):
        assert o.shape == (B, 1)
        # bf16 matmul operands (f32 accumulation) -> relaxed tolerance vs f32 reference
        assert jnp.allclose(o, r, rtol=0.0, atol=2e-2), (o, r)

    print("KERNEL_OK")
</pallas_src>

<mosaic_0001>
module attributes {stable_mosaic.version = 11 : i64} {
  func.func @torch_models_kernel(%arg0: i32, %arg1: memref<8x45xf32, #tpu.memory_space<vmem>>, %arg2: memref<45x2816xbf16, #tpu.memory_space<vmem>>, %arg3: memref<1x2816xf32, #tpu.memory_space<vmem>>, %arg4: memref<128x64xbf16, #tpu.memory_space<vmem>>, %arg5: memref<1x64xf32, #tpu.memory_space<vmem>>, %arg6: memref<128x384xbf16, #tpu.memory_space<vmem>>, %arg7: memref<768x16xbf16, #tpu.memory_space<vmem>>, %arg8: memref<1x16xf32, #tpu.memory_space<vmem>>, %arg9: memref<208x4xbf16, #tpu.memory_space<vmem>>, %arg10: memref<1x4xf32, #tpu.memory_space<vmem>>, %arg11: memref<8x8xf32, #tpu.memory_space<vmem>>) attributes {dimension_semantics = [#tpu.dimension_semantics<parallel>], iteration_bounds = array<i64: 3>, scalar_prefetch = 0 : i64, scratch_operands = 0 : i64, tpu.core_type = #tpu.core_type<tc>, window_params = [{transform_indices = @transform_0, window_bounds = array<i64: 8, 45>}, {pipeline_mode = #tpu.pipeline_mode<synchronous>, transform_indices = @transform_1, window_bounds = array<i64: 45, 2816>}, {pipeline_mode = #tpu.pipeline_mode<synchronous>, transform_indices = @transform_2, window_bounds = array<i64: 1, 2816>}, {pipeline_mode = #tpu.pipeline_mode<synchronous>, transform_indices = @transform_3, window_bounds = array<i64: 128, 64>}, {pipeline_mode = #tpu.pipeline_mode<synchronous>, transform_indices = @transform_4, window_bounds = array<i64: 1, 64>}, {pipeline_mode = #tpu.pipeline_mode<synchronous>, transform_indices = @transform_5, window_bounds = array<i64: 128, 384>}, {pipeline_mode = #tpu.pipeline_mode<synchronous>, transform_indices = @transform_6, window_bounds = array<i64: 768, 16>}, {pipeline_mode = #tpu.pipeline_mode<synchronous>, transform_indices = @transform_7, window_bounds = array<i64: 1, 16>}, {pipeline_mode = #tpu.pipeline_mode<synchronous>, transform_indices = @transform_8, window_bounds = array<i64: 208, 4>}, {pipeline_mode = #tpu.pipeline_mode<synchronous>, transform_indices = @transform_9, window_bounds = array<i64: 1, 4>}, {transform_indices = @transform_10, window_bounds = array<i64: 8, 8>}]} {
    %c0 = arith.constant 0 : index
    %c0_0 = arith.constant 0 : index
    %0 = vector.load %arg1[%c0, %c0_0] : memref<8x45xf32, #tpu.memory_space<vmem>>, vector<8x45xf32>
    %1 = arith.truncf %0 : vector<8x45xf32> to vector<8x45xbf16>
    %c0_1 = arith.constant 0 : index
    %c0_2 = arith.constant 0 : index
    %2 = vector.load %arg2[%c0_1, %c0_2] : memref<45x2816xbf16, #tpu.memory_space<vmem>>, vector<45x2816xbf16>
    %cst = arith.constant dense<0.000000e+00> : vector<8x2816xf32>
    %3 = tpu.matmul %1, %2, %cst {dimension_numbers = #tpu.dot_dimension_numbers<[1], [0], [0], [1], [0, 0, 1, 1], [], []>} : vector<8x45xbf16>, vector<45x2816xbf16>, vector<8x2816xf32> -> vector<8x2816xf32>
    %c0_3 = arith.constant 0 : index
    %c0_4 = arith.constant 0 : index
    %4 = vector.load %arg3[%c0_3, %c0_4] : memref<1x2816xf32, #tpu.memory_space<vmem>>, vector<1x2816xf32>
    %5 = vector.broadcast %4 : vector<1x2816xf32> to vector<8x2816xf32>
    %6 = arith.addf %3, %5 : vector<8x2816xf32>
    %7 = vector.extract_strided_slice %6 {offsets = [0, 0], sizes = [8, 128], strides = [1, 1]} : vector<8x2816xf32> to vector<8x128xf32>
    %cst_5 = arith.constant 0.000000e+00 : f32
    %8 = vector.broadcast %cst_5 : f32 to vector<8x128xf32>
    %9 = arith.maximumf %7, %8 : vector<8x128xf32>
    %10 = arith.truncf %9 : vector<8x128xf32> to vector<8x128xbf16>
    %c0_6 = arith.constant 0 : index
    %c0_7 = arith.constant 0 : index
    %11 = vector.load %arg4[%c0_6, %c0_7] : memref<128x64xbf16, #tpu.memory_space<vmem>>, vector<128x64xbf16>
    %cst_8 = arith.constant dense<0.000000e+00> : vector<8x64xf32>
    %12 = tpu.matmul %10, %11, %cst_8 {dimension_numbers = #tpu.dot_dimension_numbers<[1], [0], [0], [1], [0, 0, 1, 1], [], []>} : vector<8x128xbf16>, vector<128x64xbf16>, vector<8x64xf32> -> vector<8x64xf32>
    %c0_9 = arith.constant 0 : index
    %c0_10 = arith.constant 0 : index
    %13 = vector.load %arg5[%c0_9, %c0_10] : memref<1x64xf32, #tpu.memory_space<vmem>>, vector<1x64xf32>
    %14 = vector.broadcast %13 : vector<1x64xf32> to vector<8x64xf32>
    %15 = arith.addf %12, %14 : vector<8x64xf32>
    %cst_11 = arith.constant 0.000000e+00 : f32
    %16 = vector.broadcast %cst_11 : f32 to vector<8x64xf32>
    %17 = arith.maximumf %15, %16 : vector<8x64xf32>
    %18 = vector.extract_strided_slice %6 {offsets = [0, 2048], sizes = [8, 768], strides = [1, 1]} : vector<8x2816xf32> to vector<8x768xf32>
    %cst_12 = arith.constant 0.000000e+00 : f32
    %19 = vector.broadcast %cst_12 : f32 to vector<8x768xf32>
    %20 = arith.maximumf %18, %19 : vector<8x768xf32>
    %21 = arith.truncf %20 : vector<8x768xf32> to vector<8x768xbf16>
    %c0_13 = arith.constant 0 : index
    %c0_14 = arith.constant 0 : index
    %22 = vector.load %arg7[%c0_13, %c0_14] : memref<768x16xbf16, #tpu.memory_space<vmem>>, vector<768x16xbf16>
    %cst_15 = arith.constant dense<0.000000e+00> : vector<8x16xf32>
    %23 = tpu.matmul %21, %22, %cst_15 {dimension_numbers = #tpu.dot_dimension_numbers<[1], [0], [0], [1], [0, 0, 1, 1], [], []>} : vector<8x768xbf16>, vector<768x16xbf16>, vector<8x16xf32> -> vector<8x16xf32>
    %c0_16 = arith.constant 0 : index
    %c0_17 = arith.constant 0 : index
    %24 = vector.load %arg8[%c0_16, %c0_17] : memref<1x16xf32, #tpu.memory_space<vmem>>, vector<1x16xf32>
    %25 = vector.broadcast %24 : vector<1x16xf32> to vector<8x16xf32>
    %26 = arith.addf %23, %25 : vector<8x16xf32>
    %cst_18 = arith.constant 0.000000e+00 : f32
    %27 = vector.broadcast %cst_18 : f32 to vector<8x16xf32>
    %28 = arith.maximumf %26, %27 : vector<8x16xf32>
    %c0_19 = arith.constant 0 : index
    %c0_20 = arith.constant 0 : index
    %29 = vector.load %arg6[%c0_19, %c0_20] : memref<128x384xbf16, #tpu.memory_space<vmem>>, vector<128x384xbf16>
    %cst_21 = arith.constant 0.000000e+00 : f32
    %30 = vector.broadcast %cst_21 : f32 to vector<8x128xf32>
    %cst_22 = arith.constant 0.000000e+00 : f32
    %31 = vector.broadcast %cst_22 : f32 to vector<8x64xf32>
    %32 = vector.extract_strided_slice %6 {offsets = [0, 128], sizes = [8, 384], strides = [1, 1]} : vector<8x2816xf32> to vector<8x384xf32>
    %33 = arith.truncf %30 : vector<8x128xf32> to vector<8x128xbf16>
    %cst_23 = arith.constant dense<0.000000e+00> : vector<8x384xf32>
    %34 = tpu.matmul %33, %29, %cst_23 {dimension_numbers = #tpu.dot_dimension_numbers<[1], [0], [0], [1], [0, 0, 1, 1], [], []>} : vector<8x128xbf16>, vector<128x384xbf16>, vector<8x384xf32> -> vector<8x384xf32>
    %35 = arith.addf %32, %34 : vector<8x384xf32>
    %36 = vector.extract_strided_slice %35 {offsets = [0, 0], sizes = [8, 256], strides = [1, 1]} : vector<8x384xf32> to vector<8x256xf32>
    %37 = arith.negf %36 : vector<8x256xf32>
    %38 = math.exp %37 : vector<8x256xf32>
    %cst_24 = arith.constant 1.000000e+00 : f32
    %39 = vector.broadcast %cst_24 : f32 to vector<8x256xf32>
    %40 = arith.addf %39, %38 : vector<8x256xf32>
    %41 = arith.divf %39, %40 : vector<8x256xf32>
    %42 = vector.extract_strided_slice %35 {offsets = [0, 256], sizes = [8, 128], strides = [1, 1]} : vector<8x384xf32> to vector<8x128xf32>
    %43 = math.tanh %42 : vector<8x128xf32>
    %44 = vector.extract_strided_slice %41 {offsets = [0, 0], sizes = [8, 64], strides = [1, 1]} : vector<8x256xf32> to vector<8x64xf32>
    %45 = vector.extract_strided_slice %41 {offsets = [0, 64], sizes = [8, 64], strides = [1, 1]} : vector<8x256xf32> to vector<8x64xf32>
    %46 = vector.extract_strided_slice %41 {offsets = [0, 128], sizes = [8, 64], strides = [1, 1]} : vector<8x256xf32> to vector<8x64xf32>
    %47 = vector.extract_strided_slice %43 {offsets = [0, 0], sizes = [8, 64], strides = [1, 1]} : vector<8x128xf32> to vector<8x64xf32>
    %48 = vector.extract_strided_slice %43 {offsets = [0, 64], sizes = [8, 64], strides = [1, 1]} : vector<8x128xf32> to vector<8x64xf32>
    %49 = arith.mulf %45, %31 : vector<8x64xf32>
    %50 = arith.mulf %44, %47 : vector<8x64xf32>
    %51 = arith.addf %49, %50 : vector<8x64xf32>
    %52 = math.tanh %51 : vector<8x64xf32>
    %53 = arith.mulf %46, %52 : vector<8x64xf32>
    %54 = tpu.concatenate %53, %48 in 1 : vector<8x64xf32>, vector<8x64xf32> -> vector<8x128xf32>
    %55 = vector.extract_strided_slice %6 {offsets = [0, 512], sizes = [8, 384], strides = [1, 1]} : vector<8x2816xf32> to vector<8x384xf32>
    %56 = arith.truncf %54 : vector<8x128xf32> to vector<8x128xbf16>
    %cst_25 = arith.constant dense<0.000000e+00> : vector<8x384xf32>
    %57 = tpu.matmul %56, %29, %cst_25 {dimension_numbers = #tpu.dot_dimension_numbers<[1], [0], [0], [1], [0, 0, 1, 1], [], []>} : vector<8x128xbf16>, vector<128x384xbf16>, vector<8x384xf32> -> vector<8x384xf32>
    %58 = arith.addf %55, %57 : vector<8x384xf32>
    %59 = vector.extract_strided_slice %58 {offsets = [0, 0], sizes = [8, 256], strides = [1, 1]} : vector<8x384xf32> to vector<8x256xf32>
    %60 = arith.negf %59 : vector<8x256xf32>
    %61 = math.exp %60 : vector<8x256xf32>
    %cst_26 = arith.constant 1.000000e+00 : f32
    %62 = vector.broadcast %cst_26 : f32 to vector<8x256xf32>
    %63 = arith.addf %62, %61 : vector<8x256xf32>
    %64 = arith.divf %62, %63 : vector<8x256xf32>
    %65 = vector.extract_strided_slice %58 {offsets = [0, 256], sizes = [8, 128], strides = [1, 1]} : vector<8x384xf32> to vector<8x128xf32>
    %66 = math.tanh %65 : vector<8x128xf32>
    %67 = vector.extract_strided_slice %64 {offsets = [0, 0], sizes = [8, 64], strides = [1, 1]} : vector<8x256xf32> to vector<8x64xf32>
    %68 = vector.extract_strided_slice %64 {offsets = [0, 64], sizes = [8, 64], strides = [1, 1]} : vector<8x256xf32> to vector<8x64xf32>
    %69 = vector.extract_strided_slice %64 {offsets = [0, 128], sizes = [8, 64], strides = [1, 1]} : vector<8x256xf32> to vector<8x64xf32>
    %70 = vector.extract_strided_slice %66 {offsets = [0, 0], sizes = [8, 64], strides = [1, 1]} : vector<8x128xf32> to vector<8x64xf32>
    %71 = vector.extract_strided_slice %66 {offsets = [0, 64], sizes = [8, 64], strides = [1, 1]} : vector<8x128xf32> to vector<8x64xf32>
    %72 = arith.mulf %68, %51 : vector<8x64xf32>
    %73 = arith.mulf %67, %70 : vector<8x64xf32>
    %74 = arith.addf %72, %73 : vector<8x64xf32>
    %75 = math.tanh %74 : vector<8x64xf32>
    %76 = arith.mulf %69, %75 : vector<8x64xf32>
    %77 = tpu.concatenate %76, %71 in 1 : vector<8x64xf32>, vector<8x64xf32> -> vector<8x128xf32>
    %78 = vector.extract_strided_slice %6 {offsets = [0, 896], sizes = [8, 384], strides = [1, 1]} : vector<8x2816xf32> to vector<8x384xf32>
    %79 = arith.truncf %77 : vector<8x128xf32> to vector<8x128xbf16>
    %cst_27 = arith.constant dense<0.000000e+00> : vector<8x384xf32>
    %80 = tpu.matmul %79, %29, %cst_27 {dimension_numbers = #tpu.dot_dimension_numbers<[1], [0], [0], [1], [0, 0, 1, 1], [], []>} : vector<8x128xbf16>, vector<128x384xbf16>, vector<8x384xf32> -> vector<8x384xf32>
    %81 = arith.addf %78, %80 : vector<8x384xf32>
    %82 = vector.extract_strided_slice %81 {offsets = [0, 0], sizes = [8, 256], strides = [1, 1]} : vector<8x384xf32> to vector<8x256xf32>
    %83 = arith.negf %82 : vector<8x256xf32>
    %84 = math.exp %83 : vector<8x256xf32>
    %cst_28 = arith.constant 1.000000e+00 : f32
    %85 = vector.broadcast %cst_28 : f32 to vector<8x256xf32>
    %86 = arith.addf %85, %84 : vector<8x256xf32>
    %87 = arith.divf %85, %86 : vector<8x256xf32>
    %88 = vector.extract_strided_slice %81 {offsets = [0, 256], sizes = [8, 128], strides = [1, 1]} : vector<8x384xf32> to vector<8x128xf32>
    %89 = math.tanh %88 : vector<8x128xf32>
    %90 = vector.extract_strided_slice %87 {offsets = [0, 0], sizes = [8, 64], strides = [1, 1]} : vector<8x256xf32> to vector<8x64xf32>
    %91 = vector.extract_strided_slice %87 {offsets = [0, 64], sizes = [8, 64], strides = [1, 1]} : vector<8x256xf32> to vector<8x64xf32>
    %92 = vector.extract_strided_slice %87 {offsets = [0, 128], sizes = [8, 64], strides = [1, 1]} : vector<8x256xf32> to vector<8x64xf32>
    %93 = vector.extract_strided_slice %89 {offsets = [0, 0], sizes = [8, 64], strides = [1, 1]} : vector<8x128xf32> to vector<8x64xf32>
    %94 = vector.extract_strided_slice %89 {offsets = [0, 64], sizes = [8, 64], strides = [1, 1]} : vector<8x128xf32> to vector<8x64xf32>
    %95 = arith.mulf %91, %74 : vector<8x64xf32>
    %96 = arith.mulf %90, %93 : vector<8x64xf32>
    %97 = arith.addf %95, %96 : vector<8x64xf32>
    %98 = math.tanh %97 : vector<8x64xf32>
    %99 = arith.mulf %92, %98 : vector<8x64xf32>
    %100 = tpu.concatenate %99, %94 in 1 : vector<8x64xf32>, vector<8x64xf32> -> vector<8x128xf32>
    %101 = vector.extract_strided_slice %6 {offsets = [0, 1280], sizes = [8, 384], strides = [1, 1]} : vector<8x2816xf32> to vector<8x384xf32>
    %102 = arith.truncf %100 : vector<8x128xf32> to vector<8x128xbf16>
    %cst_29 = arith.constant dense<0.000000e+00> : vector<8x384xf32>
    %103 = tpu.matmul %102, %29, %cst_29 {dimension_numbers = #tpu.dot_dimension_numbers<[1], [0], [0], [1], [0, 0, 1, 1], [], []>} : vector<8x128xbf16>, vector<128x384xbf16>, vector<8x384xf32> -> vector<8x384xf32>
    %104 = arith.addf %101, %103 : vector<8x384xf32>
    %105 = vector.extract_strided_slice %104 {offsets = [0, 0], sizes = [8, 256], strides = [1, 1]} : vector<8x384xf32> to vector<8x256xf32>
    %106 = arith.negf %105 : vector<8x256xf32>
    %107 = math.exp %106 : vector<8x256xf32>
    %cst_30 = arith.constant 1.000000e+00 : f32
    %108 = vector.broadcast %cst_30 : f32 to vector<8x256xf32>
    %109 = arith.addf %108, %107 : vector<8x256xf32>
    %110 = arith.divf %108, %109 : vector<8x256xf32>
    %111 = vector.extract_strided_slice %104 {offsets = [0, 256], sizes = [8, 128], strides = [1, 1]} : vector<8x384xf32> to vector<8x128xf32>
    %112 = math.tanh %111 : vector<8x128xf32>
    %113 = vector.extract_strided_slice %110 {offsets = [0, 0], sizes = [8, 64], strides = [1, 1]} : vector<8x256xf32> to vector<8x64xf32>
    %114 = vector.extract_strided_slice %110 {offsets = [0, 64], sizes = [8, 64], strides = [1, 1]} : vector<8x256xf32> to vector<8x64xf32>
    %115 = vector.extract_strided_slice %110 {offsets = [0, 128], sizes = [8, 64], strides = [1, 1]} : vector<8x256xf32> to vector<8x64xf32>
    %116 = vector.extract_strided_slice %112 {offsets = [0, 0], sizes = [8, 64], strides = [1, 1]} : vector<8x128xf32> to vector<8x64xf32>
    %117 = vector.extract_strided_slice %112 {offsets = [0, 64], sizes = [8, 64], strides = [1, 1]} : vector<8x128xf32> to vector<8x64xf32>
    %118 = arith.mulf %114, %97 : vector<8x64xf32>
    %119 = arith.mulf %113, %116 : vector<8x64xf32>
    %120 = arith.addf %118, %119 : vector<8x64xf32>
    %121 = math.tanh %120 : vector<8x64xf32>
    %122 = arith.mulf %115, %121 : vector<8x64xf32>
    %123 = tpu.concatenate %122, %117 in 1 : vector<8x64xf32>, vector<8x64xf32> -> vector<8x128xf32>
    %124 = vector.extract_strided_slice %6 {offsets = [0, 1664], sizes = [8, 384], strides = [1, 1]} : vector<8x2816xf32> to vector<8x384xf32>
    %125 = arith.truncf %123 : vector<8x128xf32> to vector<8x128xbf16>
    %cst_31 = arith.constant dense<0.000000e+00> : vector<8x384xf32>
    %126 = tpu.matmul %125, %29, %cst_31 {dimension_numbers = #tpu.dot_dimension_numbers<[1], [0], [0], [1], [0, 0, 1, 1], [], []>} : vector<8x128xbf16>, vector<128x384xbf16>, vector<8x384xf32> -> vector<8x384xf32>
    %127 = arith.addf %124, %126 : vector<8x384xf32>
    %128 = vector.extract_strided_slice %127 {offsets = [0, 0], sizes = [8, 256], strides = [1, 1]} : vector<8x384xf32> to vector<8x256xf32>
    %129 = arith.negf %128 : vector<8x256xf32>
    %130 = math.exp %129 : vector<8x256xf32>
    %cst_32 = arith.constant 1.000000e+00 : f32
    %131 = vector.broadcast %cst_32 : f32 to vector<8x256xf32>
    %132 = arith.addf %131, %130 : vector<8x256xf32>
    %133 = arith.divf %131, %132 : vector<8x256xf32>
    %134 = vector.extract_strided_slice %127 {offsets = [0, 256], sizes = [8, 128], strides = [1, 1]} : vector<8x384xf32> to vector<8x128xf32>
    %135 = math.tanh %134 : vector<8x128xf32>
    %136 = vector.extract_strided_slice %133 {offsets = [0, 0], sizes = [8, 64], strides = [1, 1]} : vector<8x256xf32> to vector<8x64xf32>
    %137 = vector.extract_strided_slice %133 {offsets = [0, 64], sizes = [8, 64], strides = [1, 1]} : vector<8x256xf32> to vector<8x64xf32>
    %138 = vector.extract_strided_slice %133 {offsets = [0, 128], sizes = [8, 64], strides = [1, 1]} : vector<8x256xf32> to vector<8x64xf32>
    %139 = vector.extract_strided_slice %135 {offsets = [0, 0], sizes = [8, 64], strides = [1, 1]} : vector<8x128xf32> to vector<8x64xf32>
    %140 = vector.extract_strided_slice %135 {offsets = [0, 64], sizes = [8, 64], strides = [1, 1]} : vector<8x128xf32> to vector<8x64xf32>
    %141 = arith.mulf %137, %120 : vector<8x64xf32>
    %142 = arith.mulf %136, %139 : vector<8x64xf32>
    %143 = arith.addf %141, %142 : vector<8x64xf32>
    %144 = math.tanh %143 : vector<8x64xf32>
    %145 = arith.mulf %138, %144 : vector<8x64xf32>
    %146 = tpu.concatenate %145, %140 in 1 : vector<8x64xf32>, vector<8x64xf32> -> vector<8x128xf32>
    %147 = tpu.concatenate %17, %146, %28 in 1 : vector<8x64xf32>, vector<8x128xf32>, vector<8x16xf32> -> vector<8x208xf32>
    %148 = arith.truncf %147 : vector<8x208xf32> to vector<8x208xbf16>
    %c0_33 = arith.constant 0 : index
    %c0_34 = arith.constant 0 : index
    %149 = vector.load %arg9[%c0_33, %c0_34] : memref<208x4xbf16, #tpu.memory_space<vmem>>, vector<208x4xbf16>
    %cst_35 = arith.constant dense<0.000000e+00> : vector<8x4xf32>
    %150 = tpu.matmul %148, %149, %cst_35 {dimension_numbers = #tpu.dot_dimension_numbers<[1], [0], [0], [1], [0, 0, 1, 1], [], []>} : vector<8x208xbf16>, vector<208x4xbf16>, vector<8x4xf32> -> vector<8x4xf32>
    %c0_36 = arith.constant 0 : index
    %c0_37 = arith.constant 0 : index
    %151 = vector.load %arg10[%c0_36, %c0_37] : memref<1x4xf32, #tpu.memory_space<vmem>>, vector<1x4xf32>
    %152 = vector.broadcast %151 : vector<1x4xf32> to vector<8x4xf32>
    %153 = arith.addf %150, %152 : vector<8x4xf32>
    %154 = arith.negf %153 : vector<8x4xf32>
    %155 = math.exp %154 : vector<8x4xf32>
    %cst_38 = arith.constant 1.000000e+00 : f32
    %156 = vector.broadcast %cst_38 : f32 to vector<8x4xf32>
    %157 = arith.addf %156, %155 : vector<8x4xf32>
    %158 = arith.divf %156, %157 : vector<8x4xf32>
    %cst_39 = arith.constant dense<0.000000e+00> : vector<8xf32>
    %159 = vector.multi_reduction <add>, %158, %cst_39 [1] : vector<8x4xf32> to vector<8xf32>
    %160 = vector.shape_cast %159 : vector<8xf32> to vector<8x1xf32>
    %cst_40 = arith.constant 2.500000e-01 : f32
    %161 = vector.broadcast %cst_40 : f32 to vector<8x1xf32>
    %162 = arith.mulf %160, %161 : vector<8x1xf32>
    %cst_41 = arith.constant 0.000000e+00 : f32
    %163 = vector.broadcast %cst_41 : f32 to vector<8x3xf32>
    %164 = tpu.concatenate %162, %158, %163 in 1 : vector<8x1xf32>, vector<8x4xf32>, vector<8x3xf32> -> vector<8x8xf32>
    %c0_42 = arith.constant 0 : index
    %c0_43 = arith.constant 0 : index
    %165 = vector.load %arg11[%c0_42, %c0_43] : memref<8x8xf32, #tpu.memory_space<vmem>>, vector<8x8xf32>
    tpu.vector_store %arg11[%c0_42, %c0_43], %164 {strides = array<i32>} : memref<8x8xf32, #tpu.memory_space<vmem>>, vector<8x8xf32>,
    return
  }
  func.func @transform_0(%arg0: i32) -> (i32, i32) {
    %c0_i32 = arith.constant 0 : i32
    %c0_i32_0 = arith.constant 0 : i32
    return %arg0, %c0_i32 : i32, i32
  }
  func.func @transform_1(%arg0: i32) -> (i32, i32) {
    %c0_i32 = arith.constant 0 : i32
    %c0_i32_0 = arith.constant 0 : i32
    %c0_i32_1 = arith.constant 0 : i32
    return %c0_i32, %c0_i32_0 : i32, i32
  }
  func.func @transform_2(%arg0: i32) -> (i32, i32) {
    %c0_i32 = arith.constant 0 : i32
    %c0_i32_0 = arith.constant 0 : i32
    %c0_i32_1 = arith.constant 0 : i32
    return %c0_i32, %c0_i32_0 : i32, i32
  }
  func.func @transform_3(%arg0: i32) -> (i32, i32) {
    %c0_i32 = arith.constant 0 : i32
    %c0_i32_0 = arith.constant 0 : i32
    %c0_i32_1 = arith.constant 0 : i32
    return %c0_i32, %c0_i32_0 : i32, i32
  }
  func.func @transform_4(%arg0: i32) -> (i32, i32) {
    %c0_i32 = arith.constant 0 : i32
    %c0_i32_0 = arith.constant 0 : i32
    %c0_i32_1 = arith.constant 0 : i32
    return %c0_i32, %c0_i32_0 : i32, i32
  }
  func.func @transform_5(%arg0: i32) -> (i32, i32) {
    %c0_i32 = arith.constant 0 : i32
    %c0_i32_0 = arith.constant 0 : i32
    %c0_i32_1 = arith.constant 0 : i32
    return %c0_i32, %c0_i32_0 : i32, i32
  }
  func.func @transform_6(%arg0: i32) -> (i32, i32) {
    %c0_i32 = arith.constant 0 : i32
    %c0_i32_0 = arith.constant 0 : i32
    %c0_i32_1 = arith.constant 0 : i32
    return %c0_i32, %c0_i32_0 : i32, i32
  }
  func.func @transform_7(%arg0: i32) -> (i32, i32) {
    %c0_i32 = arith.constant 0 : i32
    %c0_i32_0 = arith.constant 0 : i32
    %c0_i32_1 = arith.constant 0 : i32
    return %c0_i32, %c0_i32_0 : i32, i32
  }
  func.func @transform_8(%arg0: i32) -> (i32, i32) {
    %c0_i32 = arith.constant 0 : i32
    %c0_i32_0 = arith.constant 0 : i32
    %c0_i32_1 = arith.constant 0 : i32
    return %c0_i32, %c0_i32_0 : i32, i32
  }
  func.func @transform_9(%arg0: i32) -> (i32, i32) {
    %c0_i32 = arith.constant 0 : i32
    %c0_i32_0 = arith.constant 0 : i32
    %c0_i32_1 = arith.constant 0 : i32
    return %c0_i32, %c0_i32_0 : i32, i32
  }
  func.func @transform_10(%arg0: i32) -> (i32, i32) {
    %c0_i32 = arith.constant 0 : i32
    %c0_i32_0 = arith.constant 0 : i32
    return %arg0, %c0_i32 : i32, i32
  }
}

</mosaic_0001>

<llo_original>
// kernel: torch_models_forward.1
$region0: #{torch_models_forward.1}
  #allocation0 [shape = 'u32[]', space=smem, size = 0x4, offset = 0x4, fixed_abs, tag = 'smem constant byte address 0x4 - core index']
  #allocation1 [shape = 'u32[144,128]{1,0:T(1,128)}', space=vmem, size = 0x12000, scoped, tag = 'internal scratch']
  %s0 = inlined_call_operand.hbm [shape: f32[24,45], index: 0, kind: input, shape index: {}]
  %s1 = inlined_call_operand.hbm [shape: bf16[45,2816], index: 1, kind: input, shape index: {}]
  %s2 = inlined_call_operand.hbm [shape: f32[1,2816], index: 2, kind: input, shape index: {}]
  %s3 = inlined_call_operand.hbm [shape: bf16[128,64], index: 3, kind: input, shape index: {}]
  %s4 = inlined_call_operand.hbm [shape: f32[1,64], index: 4, kind: input, shape index: {}]
  %s5 = inlined_call_operand.hbm [shape: bf16[128,384], index: 5, kind: input, shape index: {}]
  %s6 = inlined_call_operand.hbm [shape: bf16[768,16], index: 6, kind: input, shape index: {}]
  %s7 = inlined_call_operand.hbm [shape: f32[1,16], index: 7, kind: input, shape index: {}]
  %s8 = inlined_call_operand.hbm [shape: bf16[208,4], index: 8, kind: input, shape index: {}]
  %s9 = inlined_call_operand.hbm [shape: f32[1,4], index: 9, kind: input, shape index: {}]
  %s10 = inlined_call_operand.hbm [shape: f32[24,8], index: 10, kind: output, shape index: {}]
  %s11 = sld [smem:[#allocation0]]
  $region113: #{torch_models_forward.1} parent=0
    _
  %s13 = ssub.s32 1, %s11
  %s14 = scalar_select 0, %s13, %s11
  $region1: #{torch_models_forward.1} parent=0
    #allocation2 [shape = 'u8[8192]{0}', space=vmem, size = 0x2000, scoped, tag = 'input window, operand 0']
    #allocation3 [shape = 's32[2]{0}', space=sflag, size = 0x8, scoped, tag = 'scoped memory for torch_models_forward.1']
    #allocation4 [shape = 's32[2]{0}', space=sflag, size = 0x8, scoped, tag = 'scoped memory for torch_models_forward.1']
    #allocation5 [shape = 'u8[270336]{0}', space=vmem, size = 0x42000, scoped, tag = 'input window, operand 1, single buffered']
    #allocation6 [shape = 's32[1]{0}', space=sflag, size = 0x4, scoped, tag = 'scoped memory for torch_models_forward.1']
    #allocation7 [shape = 'u8[11264]{0}', space=vmem, size = 0x2c00, scoped, tag = 'input window, operand 2, single buffered']
    #allocation8 [shape = 'u8[32768]{0}', space=vmem, size = 0x8000, scoped, tag = 'input window, operand 3, single buffered']
    #allocation9 [shape = 's32[1]{0}', space=sflag, size = 0x4, scoped, tag = 'scoped memory for torch_models_forward.1']
    #allocation10 [shape = 'u8[512]{0}', space=vmem, size = 0x400, scoped, tag = 'input window, operand 4, single buffered']
    #allocation11 [shape = 'u8[98304]{0}', space=vmem, size = 0x18000, scoped, tag = 'input window, operand 5, single buffered']
    #allocation12 [shape = 's32[1]{0}', space=sflag, size = 0x4, scoped, tag = 'scoped memory for torch_models_forward.1']
    #allocation13 [shape = 'u8[196608]{0}', space=vmem, size = 0x30000, scoped, tag = 'input window, operand 6, single buffered']
    #allocation14 [shape = 'u8[512]{0}', space=vmem, size = 0x400, scoped, tag = 'input window, operand 7, single buffered']
    #allocation15 [shape = 's32[1]{0}', space=sflag, size = 0x4, scoped, tag = 'scoped memory for torch_models_forward.1']
    #allocation16 [shape = 'u8[53248]{0}', space=vmem, size = 0xd000, scoped, tag = 'input window, operand 8, single buffered']
    #allocation17 [shape = 'u8[512]{0}', space=vmem, size = 0x400, scoped, tag = 'input window, operand 9, single buffered']
    #allocation18 [shape = 's32[1]{0}', space=sflag, size = 0x4, scoped, tag = 'scoped memory for torch_models_forward.1']
    #allocation19 [shape = 'u8[8192]{0}', space=vmem, size = 0x2000, scoped, tag = 'output window, operand 0']
    %15 = vsyncpa [#allocation3], 0
    %s16 = scalar_lea.sflag [#allocation3], 1
    %17 = vsyncpa %s16, 0
    %18 = vsyncpa [#allocation6], 0
    %19 = vsyncpa [#allocation9], 0
    %20 = vsyncpa [#allocation12], 0
    %21 = vsyncpa [#allocation15], 0
    %22 = vsyncpa [#allocation18], 0
    %23 = vsyncpa [#allocation4], 0
    %s24 = scalar_lea.sflag [#allocation4], 1
    %25 = vsyncpa %s24, 0
    loop: start=0, step=1, limit=5
    $region2: #{torch_models_forward.1} parent=1 // loop_pre_header
      _
    $region3: #{torch_models_forward.1} parent=1 // loop_header
      %s27 = sphi 0, %s31
      %p28 = scmp.ge.s32.totalorder %s27, 5
      %s37 = sphi 0, %s39
      %s40 = sphi 0, %s37
      %s41 = sphi 0, %s40
      %s57 = sphi 0, %s41
      %s61 = sphi 0, %s61
      %s63 = sphi 0, %s61
      %s64 = sphi 0, %s63
      %s78 = sphi 0, %s64
      %s82 = sphi 0, %s82
      %s84 = sphi 0, %s82
      %s85 = sphi 0, %s84
      %s99 = sphi 0, %s85
      %s103 = sphi 0, %s103
      %s105 = sphi 0, %s103
      %s106 = sphi 0, %s105
      %s120 = sphi 0, %s106
      %s124 = sphi 0, %s124
      %s126 = sphi 0, %s124
      %s127 = sphi 0, %s126
      %s141 = sphi 0, %s127
      %s145 = sphi 0, %s145
      %s147 = sphi 0, %s145
      %s148 = sphi 0, %s147
      %s162 = sphi 0, %s148
      %s166 = sphi 0, %s166
      %s168 = sphi 0, %s166
      %s169 = sphi 0, %s168
      %s183 = sphi 0, %s169
      %s187 = sphi 0, %s187
      %s189 = sphi 0, %s187
      %s190 = sphi 0, %s189
      %s204 = sphi 0, %s190
      %s208 = sphi 0, %s208
      %s210 = sphi 0, %s208
      %s211 = sphi 0, %s210
      %s225 = sphi 0, %s211
      %s229 = sphi 0, %s229
      %s231 = sphi 0, %s229
      %s232 = sphi 0, %s231
      %s246 = sphi 0, %s232
      %s252 = sphi 0, %s254
      %s255 = sphi 0, %s252
      %s256 = sphi 0, %s255
      %s272 = sphi 0, %s256
    $region4: #{torch_models_forward.1} parent=1 // loop_header_branch
      %30 = sbr.rel (%p28) target = $region8
    $region5: #{torch_models_forward.1} parent=1 // loop_body
      %s32 = ssub.s32 %s27, 1
      %s33 = ssub.s32 %s27, 2
      %s34 = sadd.s32 %s27, 1
      %s35 = ssub.s32 %s27, %s34
      %p36 = scmp.eq.s32.totalorder %s35, 0
      %s38 = sadd.s32 %s37, 1
      %s39 = scalar_select %p36, %s37, %s38
      %p42 = pneg %p36
      %p43 = scmp.eq.s32.totalorder %s27, 2
      %p44 = por %p42, %p43
      %p45 = scmp.ne.s32.totalorder %s37, %s40
      %p46 = scmp.eq.s32.totalorder %s27, 0
      %p47 = por %p45, %p46
      %p48 = scmp.ne.s32.totalorder %s37, %s40
      %p49 = scmp.eq.s32.totalorder %s32, 2
      %p50 = por %p48, %p49
      %p51 = scmp.ne.s32.totalorder %s40, %s41
      %p52 = scmp.eq.s32.totalorder %s32, 0
      %p53 = por %p51, %p52
      %p54 = scmp.ne.s32.totalorder %s40, %s41
      %p55 = scmp.eq.s32.totalorder %s33, 2
      %p56 = por %p54, %p55
      %p58 = scmp.ne.s32.totalorder %s41, %s57
      %p59 = scmp.eq.s32.totalorder %s33, 0
      %p60 = por %p58, %p59
      %s62 = sadd.s32 %s61, 1
      %p65 = scmp.eq.s32.totalorder %s27, 2
      %p66 = scmp.ne.s32.totalorder %s61, %s63
      %p67 = scmp.eq.s32.totalorder %s27, 0
      %p68 = por %p66, %p67
      %p69 = scmp.ne.s32.totalorder %s61, %s63
      %p70 = scmp.eq.s32.totalorder %s32, 2
      %p71 = por %p69, %p70
      %p72 = scmp.ne.s32.totalorder %s63, %s64
      %p73 = scmp.eq.s32.totalorder %s32, 0
      %p74 = por %p72, %p73
      %p75 = scmp.ne.s32.totalorder %s63, %s64
      %p76 = scmp.eq.s32.totalorder %s33, 2
      %p77 = por %p75, %p76
      %p79 = scmp.ne.s32.totalorder %s64, %s78
      %p80 = scmp.eq.s32.totalorder %s33, 0
      %p81 = por %p79, %p80
      %s83 = sadd.s32 %s82, 1
      %p86 = scmp.eq.s32.totalorder %s27, 2
      %p87 = scmp.ne.s32.totalorder %s82, %s84
      %p88 = scmp.eq.s32.totalorder %s27, 0
      %p89 = por %p87, %p88
      %p90 = scmp.ne.s32.totalorder %s82, %s84
      %p91 = scmp.eq.s32.totalorder %s32, 2
      %p92 = por %p90, %p91
      %p93 = scmp.ne.s32.totalorder %s84, %s85
      %p94 = scmp.eq.s32.totalorder %s32, 0
      %p95 = por %p93, %p94
      %p96 = scmp.ne.s32.totalorder %s84, %s85
      %p97 = scmp.eq.s32.totalorder %s33, 2
      %p98 = por %p96, %p97
      %p100 = scmp.ne.s32.totalorder %s85, %s99
      %p101 = scmp.eq.s32.totalorder %s33, 0
      %p102 = por %p100, %p101
      %s104 = sadd.s32 %s103, 1
      %p107 = scmp.eq.s32.totalorder %s27, 2
      %p108 = scmp.ne.s32.totalorder %s103, %s105
      %p109 = scmp.eq.s32.totalorder %s27, 0
      %p110 = por %p108, %p109
      %p111 = scmp.ne.s32.totalorder %s103, %s105
      %p112 = scmp.eq.s32.totalorder %s32, 2
      %p113 = por %p111, %p112
      %p114 = scmp.ne.s32.totalorder %s105, %s106
      %p115 = scmp.eq.s32.totalorder %s32, 0
      %p116 = por %p114, %p115
      %p117 = scmp.ne.s32.totalorder %s105, %s106
      %p118 = scmp.eq.s32.totalorder %s33, 2
      %p119 = por %p117, %p118
      %p121 = scmp.ne.s32.totalorder %s106, %s120
      %p122 = scmp.eq.s32.totalorder %s33, 0
      %p123 = por %p121, %p122
      %s125 = sadd.s32 %s124, 1
      %p128 = scmp.eq.s32.totalorder %s27, 2
      %p129 = scmp.ne.s32.totalorder %s124, %s126
      %p130 = scmp.eq.s32.totalorder %s27, 0
      %p131 = por %p129, %p130
      %p132 = scmp.ne.s32.totalorder %s124, %s126
      %p133 = scmp.eq.s32.totalorder %s32, 2
      %p134 = por %p132, %p133
      %p135 = scmp.ne.s32.totalorder %s126, %s127
      %p136 = scmp.eq.s32.totalorder %s32, 0
      %p137 = por %p135, %p136
      %p138 = scmp.ne.s32.totalorder %s126, %s127
      %p139 = scmp.eq.s32.totalorder %s33, 2
      %p140 = por %p138, %p139
      %p142 = scmp.ne.s32.totalorder %s127, %s141
      %p143 = scmp.eq.s32.totalorder %s33, 0
      %p144 = por %p142, %p143
      %s146 = sadd.s32 %s145, 1
      %p149 = scmp.eq.s32.totalorder %s27, 2
      %p150 = scmp.ne.s32.totalorder %s145, %s147
      %p151 = scmp.eq.s32.totalorder %s27, 0
      %p152 = por %p150, %p151
      %p153 = scmp.ne.s32.totalorder %s145, %s147
      %p154 = scmp.eq.s32.totalorder %s32, 2
      %p155 = por %p153, %p154
      %p156 = scmp.ne.s32.totalorder %s147, %s148
      %p157 = scmp.eq.s32.totalorder %s32, 0
      %p158 = por %p156, %p157
      %p159 = scmp.ne.s32.totalorder %s147, %s148
      %p160 = scmp.eq.s32.totalorder %s33, 2
      %p161 = por %p159, %p160
      %p163 = scmp.ne.s32.totalorder %s148, %s162
      %p164 = scmp.eq.s32.totalorder %s33, 0
      %p165 = por %p163, %p164
      %s167 = sadd.s32 %s166, 1
      %p170 = scmp.eq.s32.totalorder %s27, 2
      %p171 = scmp.ne.s32.totalorder %s166, %s168
      %p172 = scmp.eq.s32.totalorder %s27, 0
      %p173 = por %p171, %p172
      %p174 = scmp.ne.s32.totalorder %s166, %s168
      %p175 = scmp.eq.s32.totalorder %s32, 2
      %p176 = por %p174, %p175
      %p177 = scmp.ne.s32.totalorder %s168, %s169
      %p178 = scmp.eq.s32.totalorder %s32, 0
      %p179 = por %p177, %p178
      %p180 = scmp.ne.s32.totalorder %s168, %s169
      %p181 = scmp.eq.s32.totalorder %s33, 2
      %p182 = por %p180, %p181
      %p184 = scmp.ne.s32.totalorder %s169, %s183
      %p185 = scmp.eq.s32.totalorder %s33, 0
      %p186 = por %p184, %p185
      %s188 = sadd.s32 %s187, 1
      %p191 = scmp.eq.s32.totalorder %s27, 2
      %p192 = scmp.ne.s32.totalorder %s187, %s189
      %p193 = scmp.eq.s32.totalorder %s27, 0
      %p194 = por %p192, %p193
      %p195 = scmp.ne.s32.totalorder %s187, %s189
      %p196 = scmp.eq.s32.totalorder %s32, 2
      %p197 = por %p195, %p196
      %p198 = scmp.ne.s32.totalorder %s189, %s190
      %p199 = scmp.eq.s32.totalorder %s32, 0
      %p200 = por %p198, %p199
      %p201 = scmp.ne.s32.totalorder %s189, %s190
      %p202 = scmp.eq.s32.totalorder %s33, 2
      %p203 = por %p201, %p202
      %p205 = scmp.ne.s32.totalorder %s190, %s204
      %p206 = scmp.eq.s32.totalorder %s33, 0
      %p207 = por %p205, %p206
      %s209 = sadd.s32 %s208, 1
      %p212 = scmp.eq.s32.totalorder %s27, 2
      %p213 = scmp.ne.s32.totalorder %s208, %s210
      %p214 = scmp.eq.s32.totalorder %s27, 0
      %p215 = por %p213, %p214
      %p216 = scmp.ne.s32.totalorder %s208, %s210
      %p217 = scmp.eq.s32.totalorder %s32, 2
      %p218 = por %p216, %p217
      %p219 = scmp.ne.s32.totalorder %s210, %s211
      %p220 = scmp.eq.s32.totalorder %s32, 0
      %p221 = por %p219, %p220
      %p222 = scmp.ne.s32.totalorder %s210, %s211
      %p223 = scmp.eq.s32.totalorder %s33, 2
      %p224 = por %p222, %p223
      %p226 = scmp.ne.s32.totalorder %s211, %s225
      %p227 = scmp.eq.s32.totalorder %s33, 0
      %p228 = por %p226, %p227
      %s230 = sadd.s32 %s229, 1
      %p233 = scmp.eq.s32.totalorder %s27, 2
      %p234 = scmp.ne.s32.totalorder %s229, %s231
      %p235 = scmp.eq.s32.totalorder %s27, 0
      %p236 = por %p234, %p235
      %p237 = scmp.ne.s32.totalorder %s229, %s231
      %p238 = scmp.eq.s32.totalorder %s32, 2
      %p239 = por %p237, %p238
      %p240 = scmp.ne.s32.totalorder %s231, %s232
      %p241 = scmp.eq.s32.totalorder %s32, 0
      %p242 = por %p240, %p241
      %p243 = scmp.ne.s32.totalorder %s231, %s232
      %p244 = scmp.eq.s32.totalorder %s33, 2
      %p245 = por %p243, %p244
      %p247 = scmp.ne.s32.totalorder %s232, %s246
      %p248 = scmp.eq.s32.totalorder %s33, 0
      %p249 = por %p247, %p248
      %s250 = ssub.s32 %s27, %s34
      %p251 = scmp.eq.s32.totalorder %s250, 0
      %s253 = sadd.s32 %s252, 1
      %s254 = scalar_select %p251, %s252, %s253
      %p257 = pneg %p251
      %p258 = scmp.eq.s32.totalorder %s27, 2
      %p259 = por %p257, %p258
      %p260 = scmp.ne.s32.totalorder %s252, %s255
      %p261 = scmp.eq.s32.totalorder %s27, 0
      %p262 = por %p260, %p261
      %p263 = scmp.ne.s32.totalorder %s252, %s255
      %p264 = scmp.eq.s32.totalorder %s32, 2
      %p265 = por %p263, %p264
      %p266 = scmp.ne.s32.totalorder %s255, %s256
      %p267 = scmp.eq.s32.totalorder %s32, 0
      %p268 = por %p266, %p267
      %p269 = scmp.ne.s32.totalorder %s255, %s256
      %p270 = scmp.eq.s32.totalorder %s33, 2
      %p271 = por %p269, %p270
      %p273 = scmp.ne.s32.totalorder %s256, %s272
      %p274 = scmp.eq.s32.totalorder %s33, 0
      %p275 = por %p273, %p274
      %p276 = scmp.le.s32.totalorder 1, %s27
      %p277 = scmp.lt.s32.totalorder %s27, 4
      %p278 = pnand %p276, %p277
      %p279 = pneg %p278
      // Predicated region
      $region9: #{torch_models_forward.1} parent=5 // pred_check
        _
      $region10: #{torch_models_forward.1} parent=5 // pred_check_branch
        %281 = sbr.rel (%p278) target = $region12
      $region11: #{torch_models_forward.1} parent=5 // pred_region
        %s282 = ssub.s32 %s27, 1
        // Predicated region
        $region13: #{torch_models_forward.1} parent=11 // pred_check
          %p283 = pneg %p74
        $region14: #{torch_models_forward.1} parent=11 // pred_check_branch
          %285 = sbr.rel (%p283) target = $region16
        $region15: #{torch_models_forward.1} parent=11 // pred_region
          %s287 = ssub.s32 8448, 8448
          %288 = vsyncadd [#allocation6], %s287
          %s289 = sshll.u32 [#allocation5], 4
          %s290 = int_to_ptr.vmem [resolvable:$true] %s289
          %295 = dma.hbm_to_vmem [thread:$0]  %s1, 8448, %s290, [#allocation6], 1408, 1408, 88
        $region16: #{torch_models_forward.1} parent=11 // pred_fallthru
          _
        // Predicated region
        $region17: #{torch_models_forward.1} parent=11 // pred_check
          %p296 = pneg %p95
        $region18: #{torch_models_forward.1} parent=11 // pred_check_branch
          %298 = sbr.rel (%p296) target = $region20
        $region19: #{torch_models_forward.1} parent=11 // pred_region
          %s300 = ssub.s32 352, 352
          %301 = vsyncadd [#allocation6], %s300
          %s303 = sshll.u32 [#allocation7], 4
          %s304 = int_to_ptr.vmem [resolvable:$true] %s303
          %306 = dma.hbm_to_vmem [thread:$0]  %s2, 352, %s304, [#allocation6]
        $region20: #{torch_models_forward.1} parent=11 // pred_fallthru
          _
        // Predicated region
        $region21: #{torch_models_forward.1} parent=11 // pred_check
          %p307 = pneg %p116
        $region22: #{torch_models_forward.1} parent=11 // pred_check_branch
          %309 = sbr.rel (%p307) target = $region24
        $region23: #{torch_models_forward.1} parent=11 // pred_region
          %s311 = ssub.s32 1024, 1024
          %312 = vsyncadd [#allocation9], %s311
          %s313 = sshll.u32 [#allocation8], 4
          %s314 = int_to_ptr.vmem [resolvable:$true] %s313
          %319 = dma.hbm_to_vmem [thread:$0]  %s3, 1024, %s314, [#allocation9], 64, 64, 4
        $region24: #{torch_models_forward.1} parent=11 // pred_fallthru
          _
        // Predicated region
        $region25: #{torch_models_forward.1} parent=11 // pred_check
          %p320 = pneg %p137
        $region26: #{torch_models_forward.1} parent=11 // pred_check_branch
          %322 = sbr.rel (%p320) target = $region28
        $region27: #{torch_models_forward.1} parent=11 // pred_region
          %s324 = ssub.s32 16, 16
          %325 = vsyncadd [#allocation9], %s324
          %s327 = sshll.u32 [#allocation10], 4
          %s328 = int_to_ptr.vmem [resolvable:$true] %s327
          %330 = dma.hbm_to_vmem [thread:$0]  %s4, 16, %s328, [#allocation9]
        $region28: #{torch_models_forward.1} parent=11 // pred_fallthru
          _
        // Predicated region
        $region29: #{torch_models_forward.1} parent=11 // pred_check
          %p331 = pneg %p158
        $region30: #{torch_models_forward.1} parent=11 // pred_check_branch
          %333 = sbr.rel (%p331) target = $region32
        $region31: #{torch_models_forward.1} parent=11 // pred_region
          %s335 = ssub.s32 3072, 3072
          %336 = vsyncadd [#allocation12], %s335
          %s337 = sshll.u32 [#allocation11], 4
          %s338 = int_to_ptr.vmem [resolvable:$true] %s337
          %343 = dma.hbm_to_vmem [thread:$0]  %s5, 3072, %s338, [#allocation12], 192, 192, 12
        $region32: #{torch_models_forward.1} parent=11 // pred_fallthru
          _
        // Predicated region
        $region33: #{torch_models_forward.1} parent=11 // pred_check
          %p344 = pneg %p179
        $region34: #{torch_models_forward.1} parent=11 // pred_check_branch
          %346 = sbr.rel (%p344) target = $region36
        $region35: #{torch_models_forward.1} parent=11 // pred_region
          %s348 = ssub.s32 6144, 6144
          %349 = vsyncadd [#allocation12], %s348
          %s350 = sshll.u32 [#allocation13], 4
          %s351 = int_to_ptr.vmem [resolvable:$true] %s350
          %356 = dma.hbm_to_vmem [thread:$0]  %s6, 6144, %s351, [#allocation12], 64, 64, 4
        $region36: #{torch_models_forward.1} parent=11 // pred_fallthru
          _
        // Predicated region
        $region37: #{torch_models_forward.1} parent=11 // pred_check
          %p357 = pneg %p200
        $region38: #{torch_models_forward.1} parent=11 // pred_check_branch
          %359 = sbr.rel (%p357) target = $region40
        $region39: #{torch_models_forward.1} parent=11 // pred_region
          %s361 = ssub.s32 16, 16
          %362 = vsyncadd [#allocation15], %s361
          %s364 = sshll.u32 [#allocation14], 4
          %s365 = int_to_ptr.vmem [resolvable:$true] %s364
          %367 = dma.hbm_to_vmem [thread:$0]  %s7, 16, %s365, [#allocation15]
        $region40: #{torch_models_forward.1} parent=11 // pred_fallthru
          _
        // Predicated region
        $region41: #{torch_models_forward.1} parent=11 // pred_check
          %p368 = pneg %p221
        $region42: #{torch_models_forward.1} parent=11 // pred_check_branch
          %370 = sbr.rel (%p368) target = $region44
        $region43: #{torch_models_forward.1} parent=11 // pred_region
          %s372 = ssub.s32 1664, 1664
          %373 = vsyncadd [#allocation15], %s372
          %s374 = sshll.u32 [#allocation16], 4
          %s375 = int_to_ptr.vmem [resolvable:$true] %s374
          %380 = dma.hbm_to_vmem [thread:$0]  %s8, 1664, %s375, [#allocation15], 64, 64, 4
        $region44: #{torch_models_forward.1} parent=11 // pred_fallthru
          _
        // Predicated region
        $region45: #{torch_models_forward.1} parent=11 // pred_check
          %p381 = pneg %p242
        $region46: #{torch_models_forward.1} parent=11 // pred_check_branch
          %383 = sbr.rel (%p381) target = $region48
        $region47: #{torch_models_forward.1} parent=11 // pred_region
          %s385 = ssub.s32 16, 16
          %386 = vsyncadd [#allocation18], %s385
          %s388 = sshll.u32 [#allocation17], 4
          %s389 = int_to_ptr.vmem [resolvable:$true] %s388
          %391 = dma.hbm_to_vmem [thread:$0]  %s9, 16, %s389, [#allocation18]
        $region48: #{torch_models_forward.1} parent=11 // pred_fallthru
          _
      $region12: #{torch_models_forward.1} parent=5 // pred_fallthru
        _
      %p392 = scmp.lt.s32.totalorder %s27, 3
      // Predicated region
      $region49: #{torch_models_forward.1} parent=5 // pred_check
        %p393 = pneg %p392
      $region50: #{torch_models_forward.1} parent=5 // pred_check_branch
        %395 = sbr.rel (%p393) target = $region52
      $region51: #{torch_models_forward.1} parent=5 // pred_region
        // Predicated region
        $region53: #{torch_models_forward.1} parent=51 // pred_check
          %p396 = pneg %p47
        $region54: #{torch_models_forward.1} parent=51 // pred_check_branch
          %398 = sbr.rel (%p396) target = $region56
        $region55: #{torch_models_forward.1} parent=51 // pred_region
          %s399 = sand.u32 %s37, 1
          %s400 = scalar_lea.sflag [#allocation3], %s399
          %s401 = sand.u32 %s37, 1
          %s402 = smul.addr %s401, 8
          %s403 = scalar_lea.vmem [#allocation2], %s402
          %s405 = ssub.s32 128, 128
          %406 = vsyncadd %s400, %s405
          %s407 = smul.addr %s27, 128
          %s408 = scalar_lea.hbm %s0, %s407
          %s410 = sshll.u32 %s403, 4
          %s411 = int_to_ptr.vmem [resolvable:$true] %s410
          %413 = dma.hbm_to_vmem [thread:$0]  %s408, 128, %s411, %s400
        $region56: #{torch_models_forward.1} parent=51 // pred_fallthru
          _
      $region52: #{torch_models_forward.1} parent=5 // pred_fallthru
        _
      %p414 = scmp.le.s32.totalorder 1, %s27
      %p415 = scmp.lt.s32.totalorder %s27, 4
      %p416 = pnand %p414, %p415
      %p417 = pneg %p416
      // Predicated region
      $region57: #{torch_models_forward.1} parent=5 // pred_check
        _
      $region58: #{torch_models_forward.1} parent=5 // pred_check_branch
        %419 = sbr.rel (%p416) target = $region60
      $region59: #{torch_models_forward.1} parent=5 // pred_region
        %s420 = ssub.s32 %s27, 1
        %s421 = sand.u32 %s40, 1
        %s422 = scalar_lea.sflag [#allocation3], %s421
        %s423 = sand.u32 %s40, 1
        %s424 = smul.addr %s423, 8
        %s425 = scalar_lea.vmem [#allocation2], %s424
        // Predicated region
        $region61: #{torch_models_forward.1} parent=59 // pred_check
          %p426 = pneg %p53
        $region62: #{torch_models_forward.1} parent=59 // pred_check_branch
          %428 = sbr.rel (%p426) target = $region64
        $region63: #{torch_models_forward.1} parent=59 // pred_region
          %429 = dma.done %s422, 128
        $region64: #{torch_models_forward.1} parent=59 // pred_fallthru
          _
        // Predicated region
        $region65: #{torch_models_forward.1} parent=59 // pred_check
          %p430 = pneg %p74
        $region66: #{torch_models_forward.1} parent=59 // pred_check_branch
          %432 = sbr.rel (%p430) target = $region68
        $region67: #{torch_models_forward.1} parent=59 // pred_region
          %433 = dma.done [#allocation6], 8448
        $region68: #{torch_models_forward.1} parent=59 // pred_fallthru
          _
        // Predicated region
        $region69: #{torch_models_forward.1} parent=59 // pred_check
          %p434 = pneg %p95
        $region70: #{torch_models_forward.1} parent=59 // pred_check_branch
          %436 = sbr.rel (%p434) target = $region72
        $region71: #{torch_models_forward.1} parent=59 // pred_region
          %437 = dma.done [#allocation6], 352
        $region72: #{torch_models_forward.1} parent=59 // pred_fallthru
          _
        // Predicated region
        $region73: #{torch_models_forward.1} parent=59 // pred_check
          %p438 = pneg %p116
        $region74: #{torch_models_forward.1} parent=59 // pred_check_branch
          %440 = sbr.rel (%p438) target = $region76
        $region75: #{torch_models_forward.1} parent=59 // pred_region
          %441 = dma.done [#allocation9], 1024
        $region76: #{torch_models_forward.1} parent=59 // pred_fallthru
          _
        // Predicated region
        $region77: #{torch_models_forward.1} parent=59 // pred_check
          %p442 = pneg %p137
        $region78: #{torch_models_forward.1} parent=59 // pred_check_branch
          %444 = sbr.rel (%p442) target = $region80
        $region79: #{torch_models_forward.1} parent=59 // pred_region
          %445 = dma.done [#allocation9], 16
        $region80: #{torch_models_forward.1} parent=59 // pred_fallthru
          _
        // Predicated region
        $region81: #{torch_models_forward.1} parent=59 // pred_check
          %p446 = pneg %p158
        $region82: #{torch_models_forward.1} parent=59 // pred_check_branch
          %448 = sbr.rel (%p446) target = $region84
        $region83: #{torch_models_forward.1} parent=59 // pred_region
          %449 = dma.done [#allocation12], 3072
        $region84: #{torch_models_forward.1} parent=59 // pred_fallthru
          _
        // Predicated region
        $region85: #{torch_models_forward.1} parent=59 // pred_check
          %p450 = pneg %p179
        $region86: #{torch_models_forward.1} parent=59 // pred_check_branch
          %452 = sbr.rel (%p450) target = $region88
        $region87: #{torch_models_forward.1} parent=59 // pred_region
          %453 = dma.done [#allocation12], 6144
        $region88: #{torch_models_forward.1} parent=59 // pred_fallthru
          _
        // Predicated region
        $region89: #{torch_models_forward.1} parent=59 // pred_check
          %p454 = pneg %p200
        $region90: #{torch_models_forward.1} parent=59 // pred_check_branch
          %456 = sbr.rel (%p454) target = $region92
        $region91: #{torch_models_forward.1} parent=59 // pred_region
          %457 = dma.done [#allocation15], 16
        $region92: #{torch_models_forward.1} parent=59 // pred_fallthru
          _
        // Predicated region
        $region93: #{torch_models_forward.1} parent=59 // pred_check
          %p458 = pneg %p221
        $region94: #{torch_models_forward.1} parent=59 // pred_check_branch
          %460 = sbr.rel (%p458) target = $region96
        $region95: #{torch_models_forward.1} parent=59 // pred_region
          %461 = dma.done [#allocation15], 1664
        $region96: #{torch_models_forward.1} parent=59 // pred_fallthru
          _
        // Predicated region
        $region97: #{torch_models_forward.1} parent=59 // pred_check
          %p462 = pneg %p242
        $region98: #{torch_models_forward.1} parent=59 // pred_check_branch
          %464 = sbr.rel (%p462) target = $region100
        $region99: #{torch_models_forward.1} parent=59 // pred_region
          %465 = dma.done [#allocation18], 16
        $region100: #{torch_models_forward.1} parent=59 // pred_fallthru
          _
        %s466 = sand.u32 %s40, 1
        %s467 = scalar_lea.sflag [#allocation3], %s466
        %s468 = sand.u32 %s40, 1
        %s469 = smul.addr %s468, 8
        %s470 = scalar_lea.vmem [#allocation2], %s469
        %p471 = pneg %p53
        %p472 = pneg %p50
        %p473 = pneg %p74
        %p474 = pneg %p71
        %p475 = pneg %p95
        %p476 = pneg %p92
        %p477 = pneg %p116
        %p478 = pneg %p113
        %p479 = pneg %p137
        %p480 = pneg %p134
        %p481 = pneg %p158
        %p482 = pneg %p155
        %p483 = pneg %p179
        %p484 = pneg %p176
        %p485 = pneg %p200
        %p486 = pneg %p197
        %p487 = pneg %p221
        %p488 = pneg %p218
        %p489 = pneg %p242
        %p490 = pneg %p239
        %p491 = pneg %p268
        %p492 = pneg %p265
        %s493 = sand.u32 %s255, 1
        %s494 = scalar_lea.sflag [#allocation4], %s493
        %s495 = sand.u32 %s255, 1
        %s496 = smul.addr %s495, 8
        %s497 = scalar_lea.vmem [#allocation19], %s496
        %v499 = vld [vmem:[%s425] sm:$0xff]
        %v500 = vpack.c.bf16 %v499, %v499
        %v501 = vld [vmem:[#allocation5] sm:$0xff]
        %v502 = vld [vmem:[#allocation5 + $0x8] sm:$0xff]
        %v503 = vld [vmem:[#allocation5 + $0x10] sm:$0xff]
        %v504 = vld [vmem:[#allocation5 + $0x18] sm:$0xff]
        %v505 = vld [vmem:[#allocation5 + $0x20] sm:$0xff]
        %v506 = vld [vmem:[#allocation5 + $0x28] sm:$0xff]
        %v507 = vld [vmem:[#allocation5 + $0x30] sm:$0xff]
        %v508 = vld [vmem:[#allocation5 + $0x38] sm:$0xff]
        %v509 = vld [vmem:[#allocation5 + $0x40] sm:$0xff]
        %v510 = vld [vmem:[#allocation5 + $0x48] sm:$0xff]
        %v511 = vld [vmem:[#allocation5 + $0x50] sm:$0xff]
        %v512 = vld [vmem:[#allocation5 + $0x58] sm:$0xff]
        %v513 = vld [vmem:[#allocation5 + $0x60] sm:$0xff]
        %v514 = vld [vmem:[#allocation5 + $0x68] sm:$0xff]
        %v515 = vld [vmem:[#allocation5 + $0x70] sm:$0xff]
        %v516 = vld [vmem:[#allocation5 + $0x78] sm:$0xff]
        %v517 = vld [vmem:[#allocation5 + $0x80] sm:$0xff]
        %v518 = vld [vmem:[#allocation5 + $0x88] sm:$0xff]
        %v519 = vld [vmem:[#allocation5 + $0x90] sm:$0xff]
        %v520 = vld [vmem:[#allocation5 + $0x98] sm:$0xff]
        %v521 = vld [vmem:[#allocation5 + $0xa0] sm:$0xff]
        %v522 = vld [vmem:[#allocation5 + $0xa8] sm:$0xff]
        %v523 = vld [vmem:[#allocation5 + $0xb0] sm:$0xff]
        %v524 = vld [vmem:[#allocation5 + $0xb8] sm:$0xff]
        %v525 = vld [vmem:[#allocation5 + $0xc0] sm:$0xff]
        %v526 = vld [vmem:[#allocation5 + $0xc8] sm:$0xff]
        %v527 = vld [vmem:[#allocation5 + $0xd0] sm:$0xff]
        %v528 = vld [vmem:[#allocation5 + $0xd8] sm:$0xff]
        %v529 = vld [vmem:[#allocation5 + $0xe0] sm:$0xff]
        %v530 = vld [vmem:[#allocation5 + $0xe8] sm:$0xff]
        %v531 = vld [vmem:[#allocation5 + $0xf0] sm:$0xff]
        %v532 = vld [vmem:[#allocation5 + $0xf8] sm:$0xff]
        %v533 = vld [vmem:[#allocation5 + $0x100] sm:$0xff]
        %v534 = vld [vmem:[#allocation5 + $0x108] sm:$0xff]
        %v535 = vld [vmem:[#allocation5 + $0x110] sm:$0xff]
        %v536 = vld [vmem:[#allocation5 + $0x118] sm:$0xff]
        %v537 = vld [vmem:[#allocation5 + $0x120] sm:$0xff]
        %v538 = vld [vmem:[#allocation5 + $0x128] sm:$0xff]
        %v539 = vld [vmem:[#allocation5 + $0x130] sm:$0xff]
        %v540 = vld [vmem:[#allocation5 + $0x138] sm:$0xff]
        %v541 = vld [vmem:[#allocation5 + $0x140] sm:$0xff]
        %v542 = vld [vmem:[#allocation5 + $0x148] sm:$0xff]
        %v543 = vld [vmem:[#allocation5 + $0x150] sm:$0xff]
        %v544 = vld [vmem:[#allocation5 + $0x158] sm:$0xff]
        %v545 = vld [vmem:[#allocation5 + $0x160] sm:$0xff]
        %v546 = vld [vmem:[#allocation5 + $0x168] sm:$0xff]
        %v547 = vld [vmem:[#allocation5 + $0x170] sm:$0xff]
        %v548 = vld [vmem:[#allocation5 + $0x178] sm:$0xff]
        %v549 = vld [vmem:[#allocation5 + $0x180] sm:$0xff]
        %v550 = vld [vmem:[#allocation5 + $0x188] sm:$0xff]
        %v551 = vld [vmem:[#allocation5 + $0x190] sm:$0xff]
        %v552 = vld [vmem:[#allocation5 + $0x198] sm:$0xff]
        %v553 = vld [vmem:[#allocation5 + $0x1a0] sm:$0xff]
        %v554 = vld [vmem:[#allocation5 + $0x1a8] sm:$0xff]
        %v555 = vld [vmem:[#allocation5 + $0x1b0] sm:$0xff]
        %v556 = vld [vmem:[#allocation5 + $0x1b8] sm:$0x77]
        %v557 = vld [vmem:[#allocation5 + $0x1c0] sm:$0x77]
        %v558 = vld [vmem:[#allocation5 + $0x1c8] sm:$0x77]
        %v559 = vld [vmem:[#allocation5 + $0x1d0] sm:$0x77]
        %v560 = vld [vmem:[#allocation5 + $0x1d8] sm:$0x77]
        %v561 = vld [vmem:[#allocation5 + $0x1e0] sm:$0x77]
        %v562 = vld [vmem:[#allocation5 + $0x1e8] sm:$0x77]
        %v563 = vld [vmem:[#allocation5 + $0x1f0] sm:$0x77]
        %v564 = vld [vmem:[#allocation5 + $0x1f8] sm:$0x77]
        %v565 = vld [vmem:[#allocation5 + $0x200] sm:$0x77]
        %v566 = vld [vmem:[#allocation5 + $0x208] sm:$0x77]
        %v567 = vld [vmem:[#allocation7] sm:$0xff]
        %v568 = vld [vmem:[#allocation7 + $0x8] sm:$0xff]
        %v569 = vld [vmem:[#allocation7 + $0x10] sm:$0x3f]
        %v573 = vlaneseq
        %v574 = vshrl.u32 %v573, 7
        %v575 = vsub.s32 0, %v574
        %v576 = vrot.slane %v567, %v575
        %v577 = vlaneseq
        %v578 = vshrl.u32 %v577, 7
        %v579 = vsub.s32 1, %v578
        %v580 = vrot.slane %v567, %v579
        %v581 = vlaneseq
        %v582 = vshrl.u32 %v581, 7
        %v583 = vsub.s32 2, %v582
        %v584 = vrot.slane %v567, %v583
        %v585 = vlaneseq
        %v586 = vshrl.u32 %v585, 7
        %v587 = vsub.s32 3, %v586
        %v588 = vrot.slane %v567, %v587
        %v589 = vlaneseq
        %v590 = vshrl.u32 %v589, 7
        %v591 = vsub.s32 4, %v590
        %v592 = vrot.slane %v567, %v591
        %v593 = vlaneseq
        %v594 = vshrl.u32 %v593, 7
        %v595 = vsub.s32 5, %v594
        %v596 = vrot.slane %v567, %v595
        %v597 = vlaneseq
        %v598 = vshrl.u32 %v597, 7
        %v599 = vsub.s32 6, %v598
        %v600 = vrot.slane %v567, %v599
        %v601 = vlaneseq
        %v602 = vshrl.u32 %v601, 7
        %v603 = vsub.s32 7, %v602
        %v604 = vrot.slane %v567, %v603
        %v605 = vlaneseq
        %v606 = vshrl.u32 %v605, 7
        %v607 = vsub.s32 0, %v606
        %v608 = vrot.slane %v568, %v607
        %v609 = vlaneseq
        %v610 = vshrl.u32 %v609, 7
        %v611 = vsub.s32 1, %v610
        %v612 = vrot.slane %v568, %v611
        %v613 = vlaneseq
        %v614 = vshrl.u32 %v613, 7
        %v615 = vsub.s32 2, %v614
        %v616 = vrot.slane %v568, %v615
        %v617 = vlaneseq
        %v618 = vshrl.u32 %v617, 7
        %v619 = vsub.s32 3, %v618
        %v620 = vrot.slane %v568, %v619
        %v621 = vlaneseq
        %v622 = vshrl.u32 %v621, 7
        %v623 = vsub.s32 4, %v622
        %v624 = vrot.slane %v568, %v623
        %v625 = vlaneseq
        %v626 = vshrl.u32 %v625, 7
        %v627 = vsub.s32 5, %v626
        %v628 = vrot.slane %v568, %v627
        %v629 = vlaneseq
        %v630 = vshrl.u32 %v629, 7
        %v631 = vsub.s32 6, %v630
        %v632 = vrot.slane %v568, %v631
        %v633 = vlaneseq
        %v634 = vshrl.u32 %v633, 7
        %v635 = vsub.s32 7, %v634
        %v636 = vrot.slane %v568, %v635
        %v637 = vlaneseq
        %v638 = vshrl.u32 %v637, 7
        %v639 = vsub.s32 0, %v638
        %v640 = vrot.slane %v569, %v639
        %v641 = vlaneseq
        %v642 = vshrl.u32 %v641, 7
        %v643 = vsub.s32 1, %v642
        %v644 = vrot.slane %v569, %v643
        %v645 = vlaneseq
        %v646 = vshrl.u32 %v645, 7
        %v647 = vsub.s32 2, %v646
        %v648 = vrot.slane %v569, %v647
        %v649 = vlaneseq
        %v650 = vshrl.u32 %v649, 7
        %v651 = vsub.s32 3, %v650
        %v652 = vrot.slane %v569, %v651
        %v653 = vlaneseq
        %v654 = vshrl.u32 %v653, 7
        %v655 = vsub.s32 4, %v654
        %v656 = vrot.slane %v569, %v655
        %v657 = vlaneseq
        %v658 = vshrl.u32 %v657, 7
        %v659 = vsub.s32 5, %v658
        %v660 = vrot.slane %v569, %v659
        %v749 = vunpack.c.l.b16 %v501
        %v750 = vunpack.c.h.b16 %v501
        %v751 = vunpack.c.l.b16 %v502
        %v752 = vunpack.c.h.b16 %v502
        %v753 = vunpack.c.l.b16 %v503
        %v754 = vunpack.c.h.b16 %v503
        %v755 = vunpack.c.l.b16 %v504
        %v756 = vunpack.c.h.b16 %v504
        %v757 = vunpack.c.l.b16 %v505
        %v758 = vunpack.c.h.b16 %v505
        %v759 = vunpack.c.l.b16 %v506
        %v760 = vunpack.c.h.b16 %v506
        %v761 = vunpack.c.l.b16 %v507
        %v762 = vunpack.c.h.b16 %v507
        %v763 = vunpack.c.l.b16 %v508
        %v764 = vunpack.c.h.b16 %v508
        %v765 = vunpack.c.l.b16 %v509
        %v766 = vunpack.c.h.b16 %v509
        %v767 = vunpack.c.l.b16 %v510
        %v768 = vunpack.c.h.b16 %v510
        %v769 = vunpack.c.l.b16 %v511
        %v770 = vunpack.c.h.b16 %v511
        %v771 = vunpack.c.l.b16 %v512
        %v772 = vunpack.c.h.b16 %v512
        %v773 = vunpack.c.l.b16 %v513
        %v774 = vunpack.c.h.b16 %v513
        %v775 = vunpack.c.l.b16 %v514
        %v776 = vunpack.c.h.b16 %v514
        %v777 = vunpack.c.l.b16 %v515
        %v778 = vunpack.c.h.b16 %v515
        %v779 = vunpack.c.l.b16 %v516
        %v780 = vunpack.c.h.b16 %v516
        %v781 = vunpack.c.l.b16 %v517
        %v782 = vunpack.c.h.b16 %v517
        %v783 = vunpack.c.l.b16 %v518
        %v784 = vunpack.c.h.b16 %v518
        %v785 = vunpack.c.l.b16 %v519
        %v786 = vunpack.c.h.b16 %v519
        %v787 = vunpack.c.l.b16 %v520
        %v788 = vunpack.c.h.b16 %v520
        %v789 = vunpack.c.l.b16 %v521
        %v790 = vunpack.c.h.b16 %v521
        %v791 = vunpack.c.l.b16 %v522
        %v792 = vunpack.c.h.b16 %v522
        %v793 = vunpack.c.l.b16 %v523
        %v794 = vunpack.c.h.b16 %v523
        %v795 = vunpack.c.l.b16 %v524
        %v796 = vunpack.c.h.b16 %v524
        %v797 = vunpack.c.l.b16 %v525
        %v798 = vunpack.c.h.b16 %v525
        %v799 = vunpack.c.l.b16 %v526
        %v800 = vunpack.c.h.b16 %v526
        %v801 = vunpack.c.l.b16 %v527
        %v802 = vunpack.c.h.b16 %v527
        %v803 = vunpack.c.l.b16 %v528
        %v804 = vunpack.c.h.b16 %v528
        %v805 = vunpack.c.l.b16 %v529
        %v806 = vunpack.c.h.b16 %v529
        %v807 = vunpack.c.l.b16 %v530
        %v808 = vunpack.c.h.b16 %v530
        %v809 = vunpack.c.l.b16 %v531
        %v810 = vunpack.c.h.b16 %v531
        %v811 = vunpack.c.l.b16 %v532
        %v812 = vunpack.c.h.b16 %v532
        %v813 = vunpack.c.l.b16 %v533
        %v814 = vunpack.c.h.b16 %v533
        %v815 = vunpack.c.l.b16 %v534
        %v816 = vunpack.c.h.b16 %v534
        %v817 = vunpack.c.l.b16 %v535
        %v818 = vunpack.c.h.b16 %v535
        %v819 = vunpack.c.l.b16 %v536
        %v820 = vunpack.c.h.b16 %v536
        %v821 = vunpack.c.l.b16 %v537
        %v822 = vunpack.c.h.b16 %v537
        %v823 = vunpack.c.l.b16 %v538
        %v824 = vunpack.c.h.b16 %v538
        %v825 = vunpack.c.l.b16 %v539
        %v826 = vunpack.c.h.b16 %v539
        %v827 = vunpack.c.l.b16 %v540
        %v828 = vunpack.c.h.b16 %v540
        %v829 = vunpack.c.l.b16 %v541
        %v830 = vunpack.c.h.b16 %v541
        %v831 = vunpack.c.l.b16 %v542
        %v832 = vunpack.c.h.b16 %v542
        %v833 = vunpack.c.l.b16 %v543
        %v834 = vunpack.c.h.b16 %v543
        %v835 = vunpack.c.l.b16 %v544
        %v836 = vunpack.c.h.b16 %v544
        %v837 = vunpack.c.l.b16 %v545
        %v838 = vunpack.c.h.b16 %v545
        %v839 = vunpack.c.l.b16 %v546
        %v840 = vunpack.c.h.b16 %v546
        %v841 = vunpack.c.l.b16 %v547
        %v842 = vunpack.c.h.b16 %v547
        %v843 = vunpack.c.l.b16 %v548
        %v844 = vunpack.c.h.b16 %v548
        %v845 = vunpack.c.l.b16 %v549
        %v846 = vunpack.c.h.b16 %v549
        %v847 = vunpack.c.l.b16 %v550
        %v848 = vunpack.c.h.b16 %v550
        %v849 = vunpack.c.l.b16 %v551
        %v850 = vunpack.c.h.b16 %v551
        %v851 = vunpack.c.l.b16 %v552
        %v852 = vunpack.c.h.b16 %v552
        %v853 = vunpack.c.l.b16 %v553
        %v854 = vunpack.c.h.b16 %v553
        %v855 = vunpack.c.l.b16 %v554
        %v856 = vunpack.c.h.b16 %v554
        %v857 = vunpack.c.l.b16 %v555
        %v858 = vunpack.c.h.b16 %v555
        %v859 = vunpack.c.l.b16 %v556
        %v860 = vunpack.c.h.b16 %v556
        %v861 = vunpack.c.l.b16 %v557
        %v862 = vunpack.c.h.b16 %v557
        %v863 = vunpack.c.l.b16 %v558
        %v864 = vunpack.c.h.b16 %v558
        %v865 = vunpack.c.l.b16 %v559
        %v866 = vunpack.c.h.b16 %v559
        %v867 = vunpack.c.l.b16 %v560
        %v868 = vunpack.c.h.b16 %v560
        %v869 = vunpack.c.l.b16 %v561
        %v870 = vunpack.c.h.b16 %v561
        %v871 = vunpack.c.l.b16 %v562
        %v872 = vunpack.c.h.b16 %v562
        %v873 = vunpack.c.l.b16 %v563
        %v874 = vunpack.c.h.b16 %v563
        %v875 = vunpack.c.l.b16 %v564
        %v876 = vunpack.c.h.b16 %v564
        %v877 = vunpack.c.l.b16 %v565
        %v878 = vunpack.c.h.b16 %v565
        %v879 = vunpack.c.l.b16 %v566
        %v880 = vunpack.c.h.b16 %v566
        %v881 = vpack.c.b16 %v771, %v749
        %v882 = vpack.c.b16 %v772, %v750
        %v883 = vpack.c.b16 %v773, %v751
        %v884 = vpack.c.b16 %v774, %v752
        %v885 = vpack.c.b16 %v775, %v753
        %v886 = vpack.c.b16 %v776, %v754
        %v887 = vpack.c.b16 %v777, %v755
        %v888 = vpack.c.b16 %v778, %v756
        %v889 = vpack.c.b16 %v779, %v757
        %v890 = vpack.c.b16 %v780, %v758
        %v891 = vpack.c.b16 %v781, %v759
        %v892 = vpack.c.b16 %v782, %v760
        %v893 = vpack.c.b16 %v783, %v761
        %v894 = vpack.c.b16 %v784, %v762
        %v895 = vpack.c.b16 %v785, %v763
        %v896 = vpack.c.b16 %v786, %v764
        %v897 = vpack.c.b16 %v787, %v765
        %v898 = vpack.c.b16 %v788, %v766
        %v899 = vpack.c.b16 %v789, %v767
        %v900 = vpack.c.b16 %v790, %v768
        %v901 = vpack.c.b16 %v791, %v769
        %v902 = vpack.c.b16 %v792, %v770
        %v903 = vpack.c.b16 %v815, %v793
        %v904 = vpack.c.b16 %v816, %v794
        %v905 = vpack.c.b16 %v817, %v795
        %v906 = vpack.c.b16 %v818, %v796
        %v907 = vpack.c.b16 %v819, %v797
        %v908 = vpack.c.b16 %v820, %v798
        %v909 = vpack.c.b16 %v821, %v799
        %v910 = vpack.c.b16 %v822, %v800
        %v911 = vpack.c.b16 %v823, %v801
        %v912 = vpack.c.b16 %v824, %v802
        %v913 = vpack.c.b16 %v825, %v803
        %v914 = vpack.c.b16 %v826, %v804
        %v915 = vpack.c.b16 %v827, %v805
        %v916 = vpack.c.b16 %v828, %v806
        %v917 = vpack.c.b16 %v829, %v807
        %v918 = vpack.c.b16 %v830, %v808
        %v919 = vpack.c.b16 %v831, %v809
        %v920 = vpack.c.b16 %v832, %v810
        %v921 = vpack.c.b16 %v833, %v811
        %v922 = vpack.c.b16 %v834, %v812
        %v923 = vpack.c.b16 %v835, %v813
        %v924 = vpack.c.b16 %v836, %v814
        %v925 = vpack.c.b16 %v859, %v837
        %v926 = vpack.c.b16 %v860, %v838
        %v927 = vpack.c.b16 %v861, %v839
        %v928 = vpack.c.b16 %v862, %v840
        %v929 = vpack.c.b16 %v863, %v841
        %v930 = vpack.c.b16 %v864, %v842
        %v931 = vpack.c.b16 %v865, %v843
        %v932 = vpack.c.b16 %v866, %v844
        %v933 = vpack.c.b16 %v867, %v845
        %v934 = vpack.c.b16 %v868, %v846
        %v935 = vpack.c.b16 %v869, %v847
        %v936 = vpack.c.b16 %v870, %v848
        %v937 = vpack.c.b16 %v871, %v849
        %v938 = vpack.c.b16 %v872, %v850
        %v939 = vpack.c.b16 %v873, %v851
        %v940 = vpack.c.b16 %v874, %v852
        %v941 = vpack.c.b16 %v875, %v853
        %v942 = vpack.c.b16 %v876, %v854
        %v943 = vpack.c.b16 %v877, %v855
        %v944 = vpack.c.b16 %v878, %v856
        %v945 = vpack.c.b16 %v879, %v857
        %v946 = vpack.c.b16 %v880, %v858
        %vm991 = vcmask 367616
        %v993 = vsel %vm991, %v500, 0
        %vm995 = vcmask 1045504
        %vm996 = vcmask 1046528
        %v997 = vsel %vm995, 4294967295, 65535
        %v998 = vsel %vm996, %v997, 0
        %v1000 = vand.u32 %v925, %v998
        %v1003 = vand.u32 %v926, %v998
        %v1006 = vand.u32 %v927, %v998
        %v1009 = vand.u32 %v928, %v998
        %v1012 = vand.u32 %v929, %v998
        %v1015 = vand.u32 %v930, %v998
        %v1018 = vand.u32 %v931, %v998
        %v1021 = vand.u32 %v932, %v998
        %v1024 = vand.u32 %v933, %v998
        %v1027 = vand.u32 %v934, %v998
        %v1030 = vand.u32 %v935, %v998
        %v1033 = vand.u32 %v936, %v998
        %v1036 = vand.u32 %v937, %v998
        %v1039 = vand.u32 %v938, %v998
        %v1042 = vand.u32 %v939, %v998
        %v1045 = vand.u32 %v940, %v998
        %v1048 = vand.u32 %v941, %v998
        %v1051 = vand.u32 %v942, %v998
        %v1054 = vand.u32 %v943, %v998
        %v1057 = vand.u32 %v944, %v998
        %v1060 = vand.u32 %v945, %v998
        %v1063 = vand.u32 %v946, %v998
        %1065 = vmatprep.subr.bf16.mxu0 %v882
        %1066 = vmatpush1.bf16.msra.mxu0 %v881
        %1067 = vmatprep.subr.bf16.mxu0 %v904
        %1068 = vmatpush1.bf16.msra.mxu0 %v903
        %1069 = vmatprep.subr.bf16.mxu0 %v1003
        %1070 = vmatpush1.bf16.msra.mxu0 %v1000
        %1071 = vmatprep.subr.bf16.mxu0 0
        %1072 = vmatpush1.bf16.msra.mxu0 0
        %1073 = vmatprep.subr.bf16.mxu0 0
        %1074 = vmatpush1.bf16.msra.mxu0 0
        %1075 = vmatprep.subr.bf16.mxu0 0
        %1076 = vmatpush1.bf16.msra.mxu0 0
        %1077 = vmatprep.subr.bf16.mxu0 0
        %1078 = vmatpush1.bf16.msra.mxu0 0
        %1079 = vmatprep.subr.bf16.mxu0 0
        %1080 = vmatpush1.bf16.msra.mxu0 0
        %1081 = vmatprep.subr.bf16.mxu0 0
        %1082 = vmatpush1.bf16.msra.mxu0 0
        %1083 = vmatprep.subr.bf16.mxu0 0
        %1084 = vmatpush1.bf16.msra.mxu0 0
        %1085 = vmatprep.subr.bf16.mxu0 0
        %1086 = vmatpush1.bf16.msra.mxu0 0
        %1087 = vmatprep.subr.bf16.mxu0 0
        %1088 = vmatpush1.bf16.msra.mxu0 0
        %1089 = vmatprep.subr.bf16.mxu0 0
        %1090 = vmatpush1.bf16.msra.mxu0 0
        %1091 = vmatprep.subr.bf16.mxu0 0
        %1092 = vmatpush1.bf16.msra.mxu0 0
        %1093 = vmatprep.subr.bf16.mxu0 0
        %1094 = vmatpush1.bf16.msra.mxu0 0
        %1095 = vmatprep.subr.bf16.mxu0 0
        %1096 = vmatpush1.bf16.msra.mxu0 0
        %1097 = vmatprep.mubr.bf16.mxu0 0
        %1098 = vmatmul.mubr.bf16.gmra.mrb[0].mxu0 %v993
        %v1099 = vpop.f32.mrb[0].mxu0
        %v1100 = vadd.f32 %v576, %v1099
        %v1101 = vpop.f32.mrb[0].mxu0
        %v1102 = vadd.f32 %v580, %v1101
        %v1103 = vpop.f32.mrb[0].mxu0
        %v1104 = vpop.f32.mrb[0].mxu0
        %1105 = vdwg.mxu0
        %1106 = vmatprep.subr.bf16.mxu0 %v884
        %1107 = vmatpush1.bf16.msra.mxu0 %v883
        %1108 = vmatprep.subr.bf16.mxu0 %v906
        %1109 = vmatpush1.bf16.msra.mxu0 %v905
        %1110 = vmatprep.subr.bf16.mxu0 %v1009
        %1111 = vmatpush1.bf16.msra.mxu0 %v1006
        %1112 = vmatprep.subr.bf16.mxu0 0
        %1113 = vmatpush1.bf16.msra.mxu0 0
        %1114 = vmatprep.subr.bf16.mxu0 0
        %1115 = vmatpush1.bf16.msra.mxu0 0
        %1116 = vmatprep.subr.bf16.mxu0 0
        %1117 = vmatpush1.bf16.msra.mxu0 0
        %1118 = vmatprep.subr.bf16.mxu0 0
        %1119 = vmatpush1.bf16.msra.mxu0 0
        %1120 = vmatprep.subr.bf16.mxu0 0
        %1121 = vmatpush1.bf16.msra.mxu0 0
        %1122 = vmatprep.subr.bf16.mxu0 0
        %1123 = vmatpush1.bf16.msra.mxu0 0
        %1124 = vmatprep.subr.bf16.mxu0 0
        %1125 = vmatpush1.bf16.msra.mxu0 0
        %1126 = vmatprep.subr.bf16.mxu0 0
        %1127 = vmatpush1.bf16.msra.mxu0 0
        %1128 = vmatprep.subr.bf16.mxu0 0
        %1129 = vmatpush1.bf16.msra.mxu0 0
        %1130 = vmatprep.subr.bf16.mxu0 0
        %1131 = vmatpush1.bf16.msra.mxu0 0
        %1132 = vmatprep.subr.bf16.mxu0 0
        %1133 = vmatpush1.bf16.msra.mxu0 0
        %1134 = vmatprep.subr.bf16.mxu0 0
        %1135 = vmatpush1.bf16.msra.mxu0 0
        %1136 = vmatprep.subr.bf16.mxu0 0
        %1137 = vmatpush1.bf16.msra.mxu0 0
        %1138 = vmatprep.mubr.bf16.mxu0 0
        %1139 = vmatmul.mubr.bf16.gmra.mrb[0].mxu0 %v993
        %v1140 = vpop.f32.mrb[0].mxu0
        %v1141 = vadd.f32 %v584, %v1140
        %v1142 = vpop.f32.mrb[0].mxu0
        %v1143 = vadd.f32 %v588, %v1142
        %v1144 = vpop.f32.mrb[0].mxu0
        %v1145 = vpop.f32.mrb[0].mxu0
        %1146 = vdwg.mxu0
        %1147 = vmatprep.subr.bf16.mxu0 %v886
        %1148 = vmatpush1.bf16.msra.mxu0 %v885
        %1149 = vmatprep.subr.bf16.mxu0 %v908
        %1150 = vmatpush1.bf16.msra.mxu0 %v907
        %1151 = vmatprep.subr.bf16.mxu0 %v1015
        %1152 = vmatpush1.bf16.msra.mxu0 %v1012
        %1153 = vmatprep.subr.bf16.mxu0 0
        %1154 = vmatpush1.bf16.msra.mxu0 0
        %1155 = vmatprep.subr.bf16.mxu0 0
        %1156 = vmatpush1.bf16.msra.mxu0 0
        %1157 = vmatprep.subr.bf16.mxu0 0
        %1158 = vmatpush1.bf16.msra.mxu0 0
        %1159 = vmatprep.subr.bf16.mxu0 0
        %1160 = vmatpush1.bf16.msra.mxu0 0
        %1161 = vmatprep.subr.bf16.mxu0 0
        %1162 = vmatpush1.bf16.msra.mxu0 0
        %1163 = vmatprep.subr.bf16.mxu0 0
        %1164 = vmatpush1.bf16.msra.mxu0 0
        %1165 = vmatprep.subr.bf16.mxu0 0
        %1166 = vmatpush1.bf16.msra.mxu0 0
        %1167 = vmatprep.subr.bf16.mxu0 0
        %1168 = vmatpush1.bf16.msra.mxu0 0
        %1169 = vmatprep.subr.bf16.mxu0 0
        %1170 = vmatpush1.bf16.msra.mxu0 0
        %1171 = vmatprep.subr.bf16.mxu0 0
        %1172 = vmatpush1.bf16.msra.mxu0 0
        %1173 = vmatprep.subr.bf16.mxu0 0
        %1174 = vmatpush1.bf16.msra.mxu0 0
        %1175 = vmatprep.subr.bf16.mxu0 0
        %1176 = vmatpush1.bf16.msra.mxu0 0
        %1177 = vmatprep.subr.bf16.mxu0 0
        %1178 = vmatpush1.bf16.msra.mxu0 0
        %1179 = vmatprep.mubr.bf16.mxu0 0
        %1180 = vmatmul.mubr.bf16.gmra.mrb[0].mxu0 %v993
        %v1181 = vpop.f32.mrb[0].mxu0
        %v1182 = vadd.f32 %v592, %v1181
        %v1183 = vpop.f32.mrb[0].mxu0
        %v1184 = vadd.f32 %v596, %v1183
        %v1185 = vpop.f32.mrb[0].mxu0
        %v1186 = vpop.f32.mrb[0].mxu0
        %1187 = vdwg.mxu0
        %1188 = vmatprep.subr.bf16.mxu0 %v888
        %1189 = vmatpush1.bf16.msra.mxu0 %v887
        %1190 = vmatprep.subr.bf16.mxu0 %v910
        %1191 = vmatpush1.bf16.msra.mxu0 %v909
        %1192 = vmatprep.subr.bf16.mxu0 %v1021
        %1193 = vmatpush1.bf16.msra.mxu0 %v1018
        %1194 = vmatprep.subr.bf16.mxu0 0
        %1195 = vmatpush1.bf16.msra.mxu0 0
        %1196 = vmatprep.subr.bf16.mxu0 0
        %1197 = vmatpush1.bf16.msra.mxu0 0
        %1198 = vmatprep.subr.bf16.mxu0 0
        %1199 = vmatpush1.bf16.msra.mxu0 0
        %1200 = vmatprep.subr.bf16.mxu0 0
        %1201 = vmatpush1.bf16.msra.mxu0 0
        %1202 = vmatprep.subr.bf16.mxu0 0
        %1203 = vmatpush1.bf16.msra.mxu0 0
        %1204 = vmatprep.subr.bf16.mxu0 0
        %1205 = vmatpush1.bf16.msra.mxu0 0
        %1206 = vmatprep.subr.bf16.mxu0 0
        %1207 = vmatpush1.bf16.msra.mxu0 0
        %1208 = vmatprep.subr.bf16.mxu0 0
        %1209 = vmatpush1.bf16.msra.mxu0 0
        %1210 = vmatprep.subr.bf16.mxu0 0
        %1211 = vmatpush1.bf16.msra.mxu0 0
        %1212 = vmatprep.subr.bf16.mxu0 0
        %1213 = vmatpush1.bf16.msra.mxu0 0
        %1214 = vmatprep.subr.bf16.mxu0 0
        %1215 = vmatpush1.bf16.msra.mxu0 0
        %1216 = vmatprep.subr.bf16.mxu0 0
        %1217 = vmatpush1.bf16.msra.mxu0 0
        %1218 = vmatprep.subr.bf16.mxu0 0
        %1219 = vmatpush1.bf16.msra.mxu0 0
        %1220 = vmatprep.mubr.bf16.mxu0 0
        %1221 = vmatmul.mubr.bf16.gmra.mrb[0].mxu0 %v993
        %v1222 = vpop.f32.mrb[0].mxu0
        %v1223 = vadd.f32 %v600, %v1222
        %v1224 = vpop.f32.mrb[0].mxu0
        %v1225 = vadd.f32 %v604, %v1224
        %v1226 = vpop.f32.mrb[0].mxu0
        %v1227 = vpop.f32.mrb[0].mxu0
        %1228 = vdwg.mxu0
        %1229 = vmatprep.subr.bf16.mxu0 %v890
        %1230 = vmatpush1.bf16.msra.mxu0 %v889
        %1231 = vmatprep.subr.bf16.mxu0 %v912
        %1232 = vmatpush1.bf16.msra.mxu0 %v911
        %1233 = vmatprep.subr.bf16.mxu0 %v1027
        %1234 = vmatpush1.bf16.msra.mxu0 %v1024
        %1235 = vmatprep.subr.bf16.mxu0 0
        %1236 = vmatpush1.bf16.msra.mxu0 0
        %1237 = vmatprep.subr.bf16.mxu0 0
        %1238 = vmatpush1.bf16.msra.mxu0 0
        %1239 = vmatprep.subr.bf16.mxu0 0
        %1240 = vmatpush1.bf16.msra.mxu0 0
        %1241 = vmatprep.subr.bf16.mxu0 0
        %1242 = vmatpush1.bf16.msra.mxu0 0
        %1243 = vmatprep.subr.bf16.mxu0 0
        %1244 = vmatpush1.bf16.msra.mxu0 0
        %1245 = vmatprep.subr.bf16.mxu0 0
        %1246 = vmatpush1.bf16.msra.mxu0 0
        %1247 = vmatprep.subr.bf16.mxu0 0
        %1248 = vmatpush1.bf16.msra.mxu0 0
        %1249 = vmatprep.subr.bf16.mxu0 0
        %1250 = vmatpush1.bf16.msra.mxu0 0
        %1251 = vmatprep.subr.bf16.mxu0 0
        %1252 = vmatpush1.bf16.msra.mxu0 0
        %1253 = vmatprep.subr.bf16.mxu0 0
        %1254 = vmatpush1.bf16.msra.mxu0 0
        %1255 = vmatprep.subr.bf16.mxu0 0
        %1256 = vmatpush1.bf16.msra.mxu0 0
        %1257 = vmatprep.subr.bf16.mxu0 0
        %1258 = vmatpush1.bf16.msra.mxu0 0
        %1259 = vmatprep.subr.bf16.mxu0 0
        %1260 = vmatpush1.bf16.msra.mxu0 0
        %1261 = vmatprep.mubr.bf16.mxu0 0
        %1262 = vmatmul.mubr.bf16.gmra.mrb[0].mxu0 %v993
        %v1263 = vpop.f32.mrb[0].mxu0
        %v1264 = vadd.f32 %v608, %v1263
        %v1265 = vpop.f32.mrb[0].mxu0
        %v1266 = vadd.f32 %v612, %v1265
        %v1267 = vpop.f32.mrb[0].mxu0
        %v1268 = vpop.f32.mrb[0].mxu0
        %1269 = vdwg.mxu0
        %1270 = vmatprep.subr.bf16.mxu0 %v892
        %1271 = vmatpush1.bf16.msra.mxu0 %v891
        %1272 = vmatprep.subr.bf16.mxu0 %v914
        %1273 = vmatpush1.bf16.msra.mxu0 %v913
        %1274 = vmatprep.subr.bf16.mxu0 %v1033
        %1275 = vmatpush1.bf16.msra.mxu0 %v1030
        %1276 = vmatprep.subr.bf16.mxu0 0
        %1277 = vmatpush1.bf16.msra.mxu0 0
        %1278 = vmatprep.subr.bf16.mxu0 0
        %1279 = vmatpush1.bf16.msra.mxu0 0
        %1280 = vmatprep.subr.bf16.mxu0 0
        %1281 = vmatpush1.bf16.msra.mxu0 0
        %1282 = vmatprep.subr.bf16.mxu0 0
        %1283 = vmatpush1.bf16.msra.mxu0 0
        %1284 = vmatprep.subr.bf16.mxu0 0
        %1285 = vmatpush1.bf16.msra.mxu0 0
        %1286 = vmatprep.subr.bf16.mxu0 0
        %1287 = vmatpush1.bf16.msra.mxu0 0
        %1288 = vmatprep.subr.bf16.mxu0 0
        %1289 = vmatpush1.bf16.msra.mxu0 0
        %1290 = vmatprep.subr.bf16.mxu0 0
        %1291 = vmatpush1.bf16.msra.mxu0 0
        %1292 = vmatprep.subr.bf16.mxu0 0
        %1293 = vmatpush1.bf16.msra.mxu0 0
        %1294 = vmatprep.subr.bf16.mxu0 0
        %1295 = vmatpush1.bf16.msra.mxu0 0
        %1296 = vmatprep.subr.bf16.mxu0 0
        %1297 = vmatpush1.bf16.msra.mxu0 0
        %1298 = vmatprep.subr.bf16.mxu0 0
        %1299 = vmatpush1.bf16.msra.mxu0 0
        %1300 = vmatprep.subr.bf16.mxu0 0
        %1301 = vmatpush1.bf16.msra.mxu0 0
        %1302 = vmatprep.mubr.bf16.mxu0 0
        %1303 = vmatmul.mubr.bf16.gmra.mrb[0].mxu0 %v993
        %v1304 = vpop.f32.mrb[0].mxu0
        %v1305 = vadd.f32 %v616, %v1304
        %v1306 = vpop.f32.mrb[0].mxu0
        %v1307 = vadd.f32 %v620, %v1306
        %v1308 = vpop.f32.mrb[0].mxu0
        %v1309 = vpop.f32.mrb[0].mxu0
        %1310 = vdwg.mxu0
        %1311 = vmatprep.subr.bf16.mxu0 %v894
        %1312 = vmatpush1.bf16.msra.mxu0 %v893
        %1313 = vmatprep.subr.bf16.mxu0 %v916
        %1314 = vmatpush1.bf16.msra.mxu0 %v915
        %1315 = vmatprep.subr.bf16.mxu0 %v1039
        %1316 = vmatpush1.bf16.msra.mxu0 %v1036
        %1317 = vmatprep.subr.bf16.mxu0 0
        %1318 = vmatpush1.bf16.msra.mxu0 0
        %1319 = vmatprep.subr.bf16.mxu0 0
        %1320 = vmatpush1.bf16.msra.mxu0 0
        %1321 = vmatprep.subr.bf16.mxu0 0
        %1322 = vmatpush1.bf16.msra.mxu0 0
        %1323 = vmatprep.subr.bf16.mxu0 0
        %1324 = vmatpush1.bf16.msra.mxu0 0
        %1325 = vmatprep.subr.bf16.mxu0 0
        %1326 = vmatpush1.bf16.msra.mxu0 0
        %1327 = vmatprep.subr.bf16.mxu0 0
        %1328 = vmatpush1.bf16.msra.mxu0 0
        %1329 = vmatprep.subr.bf16.mxu0 0
        %1330 = vmatpush1.bf16.msra.mxu0 0
        %1331 = vmatprep.subr.bf16.mxu0 0
        %1332 = vmatpush1.bf16.msra.mxu0 0
        %1333 = vmatprep.subr.bf16.mxu0 0
        %1334 = vmatpush1.bf16.msra.mxu0 0
        %1335 = vmatprep.subr.bf16.mxu0 0
        %1336 = vmatpush1.bf16.msra.mxu0 0
        %1337 = vmatprep.subr.bf16.mxu0 0
        %1338 = vmatpush1.bf16.msra.mxu0 0
        %1339 = vmatprep.subr.bf16.mxu0 0
        %1340 = vmatpush1.bf16.msra.mxu0 0
        %1341 = vmatprep.subr.bf16.mxu0 0
        %1342 = vmatpush1.bf16.msra.mxu0 0
        %1343 = vmatprep.mubr.bf16.mxu0 0
        %1344 = vmatmul.mubr.bf16.gmra.mrb[0].mxu0 %v993
        %v1345 = vpop.f32.mrb[0].mxu0
        %v1346 = vadd.f32 %v624, %v1345
        %v1347 = vpop.f32.mrb[0].mxu0
        %v1348 = vadd.f32 %v628, %v1347
        %v1349 = vpop.f32.mrb[0].mxu0
        %v1350 = vpop.f32.mrb[0].mxu0
        %1351 = vdwg.mxu0
        %1352 = vmatprep.subr.bf16.mxu0 %v896
        %1353 = vmatpush1.bf16.msra.mxu0 %v895
        %1354 = vmatprep.subr.bf16.mxu0 %v918
        %1355 = vmatpush1.bf16.msra.mxu0 %v917
        %1356 = vmatprep.subr.bf16.mxu0 %v1045
        %1357 = vmatpush1.bf16.msra.mxu0 %v1042
        %1358 = vmatprep.subr.bf16.mxu0 0
        %1359 = vmatpush1.bf16.msra.mxu0 0
        %1360 = vmatprep.subr.bf16.mxu0 0
        %1361 = vmatpush1.bf16.msra.mxu0 0
        %1362 = vmatprep.subr.bf16.mxu0 0
        %1363 = vmatpush1.bf16.msra.mxu0 0
        %1364 = vmatprep.subr.bf16.mxu0 0
        %1365 = vmatpush1.bf16.msra.mxu0 0
        %1366 = vmatprep.subr.bf16.mxu0 0
        %1367 = vmatpush1.bf16.msra.mxu0 0
        %1368 = vmatprep.subr.bf16.mxu0 0
        %1369 = vmatpush1.bf16.msra.mxu0 0
        %1370 = vmatprep.subr.bf16.mxu0 0
        %1371 = vmatpush1.bf16.msra.mxu0 0
        %1372 = vmatprep.subr.bf16.mxu0 0
        %1373 = vmatpush1.bf16.msra.mxu0 0
        %1374 = vmatprep.subr.bf16.mxu0 0
        %1375 = vmatpush1.bf16.msra.mxu0 0
        %1376 = vmatprep.subr.bf16.mxu0 0
        %1377 = vmatpush1.bf16.msra.mxu0 0
        %1378 = vmatprep.subr.bf16.mxu0 0
        %1379 = vmatpush1.bf16.msra.mxu0 0
        %1380 = vmatprep.subr.bf16.mxu0 0
        %1381 = vmatpush1.bf16.msra.mxu0 0
        %1382 = vmatprep.subr.bf16.mxu0 0
        %1383 = vmatpush1.bf16.msra.mxu0 0
        %1384 = vmatprep.mubr.bf16.mxu0 0
        %1385 = vmatmul.mubr.bf16.gmra.mrb[0].mxu0 %v993
        %v1386 = vpop.f32.mrb[0].mxu0
        %v1387 = vadd.f32 %v632, %v1386
        %v1388 = vpop.f32.mrb[0].mxu0
        %v1389 = vadd.f32 %v636, %v1388
        %v1390 = vpop.f32.mrb[0].mxu0
        %v1391 = vpop.f32.mrb[0].mxu0
        %1392 = vdwg.mxu0
        %1393 = vmatprep.subr.bf16.mxu0 %v898
        %1394 = vmatpush1.bf16.msra.mxu0 %v897
        %1395 = vmatprep.subr.bf16.mxu0 %v920
        %1396 = vmatpush1.bf16.msra.mxu0 %v919
        %1397 = vmatprep.subr.bf16.mxu0 %v1051
        %1398 = vmatpush1.bf16.msra.mxu0 %v1048
        %1399 = vmatprep.subr.bf16.mxu0 0
        %1400 = vmatpush1.bf16.msra.mxu0 0
        %1401 = vmatprep.subr.bf16.mxu0 0
        %1402 = vmatpush1.bf16.msra.mxu0 0
        %1403 = vmatprep.subr.bf16.mxu0 0
        %1404 = vmatpush1.bf16.msra.mxu0 0
        %1405 = vmatprep.subr.bf16.mxu0 0
        %1406 = vmatpush1.bf16.msra.mxu0 0
        %1407 = vmatprep.subr.bf16.mxu0 0
        %1408 = vmatpush1.bf16.msra.mxu0 0
        %1409 = vmatprep.subr.bf16.mxu0 0
        %1410 = vmatpush1.bf16.msra.mxu0 0
        %1411 = vmatprep.subr.bf16.mxu0 0
        %1412 = vmatpush1.bf16.msra.mxu0 0
        %1413 = vmatprep.subr.bf16.mxu0 0
        %1414 = vmatpush1.bf16.msra.mxu0 0
        %1415 = vmatprep.subr.bf16.mxu0 0
        %1416 = vmatpush1.bf16.msra.mxu0 0
        %1417 = vmatprep.subr.bf16.mxu0 0
        %1418 = vmatpush1.bf16.msra.mxu0 0
        %1419 = vmatprep.subr.bf16.mxu0 0
        %1420 = vmatpush1.bf16.msra.mxu0 0
        %1421 = vmatprep.subr.bf16.mxu0 0
        %1422 = vmatpush1.bf16.msra.mxu0 0
        %1423 = vmatprep.subr.bf16.mxu0 0
        %1424 = vmatpush1.bf16.msra.mxu0 0
        %1425 = vmatprep.mubr.bf16.mxu0 0
        %1426 = vmatmul.mubr.bf16.gmra.mrb[0].mxu0 %v993
        %v1427 = vpop.f32.mrb[0].mxu0
        %v1428 = vadd.f32 %v640, %v1427
        %v1429 = vpop.f32.mrb[0].mxu0
        %v1430 = vadd.f32 %v644, %v1429
        %v1431 = vpop.f32.mrb[0].mxu0
        %v1432 = vpop.f32.mrb[0].mxu0
        %1433 = vdwg.mxu0
        %1434 = vmatprep.subr.bf16.mxu0 %v900
        %1435 = vmatpush1.bf16.msra.mxu0 %v899
        %1436 = vmatprep.subr.bf16.mxu0 %v922
        %1437 = vmatpush1.bf16.msra.mxu0 %v921
        %1438 = vmatprep.subr.bf16.mxu0 %v1057
        %1439 = vmatpush1.bf16.msra.mxu0 %v1054
        %1440 = vmatprep.subr.bf16.mxu0 0
        %1441 = vmatpush1.bf16.msra.mxu0 0
        %1442 = vmatprep.subr.bf16.mxu0 0
        %1443 = vmatpush1.bf16.msra.mxu0 0
        %1444 = vmatprep.subr.bf16.mxu0 0
        %1445 = vmatpush1.bf16.msra.mxu0 0
        %1446 = vmatprep.subr.bf16.mxu0 0
        %1447 = vmatpush1.bf16.msra.mxu0 0
        %1448 = vmatprep.subr.bf16.mxu0 0
        %1449 = vmatpush1.bf16.msra.mxu0 0
        %1450 = vmatprep.subr.bf16.mxu0 0
        %1451 = vmatpush1.bf16.msra.mxu0 0
        %1452 = vmatprep.subr.bf16.mxu0 0
        %1453 = vmatpush1.bf16.msra.mxu0 0
        %1454 = vmatprep.subr.bf16.mxu0 0
        %1455 = vmatpush1.bf16.msra.mxu0 0
        %1456 = vmatprep.subr.bf16.mxu0 0
        %1457 = vmatpush1.bf16.msra.mxu0 0
        %1458 = vmatprep.subr.bf16.mxu0 0
        %1459 = vmatpush1.bf16.msra.mxu0 0
        %1460 = vmatprep.subr.bf16.mxu0 0
        %1461 = vmatpush1.bf16.msra.mxu0 0
        %1462 = vmatprep.subr.bf16.mxu0 0
        %1463 = vmatpush1.bf16.msra.mxu0 0
        %1464 = vmatprep.subr.bf16.mxu0 0
        %1465 = vmatpush1.bf16.msra.mxu0 0
        %1466 = vmatprep.mubr.bf16.mxu0 0
        %1467 = vmatmul.mubr.bf16.gmra.mrb[0].mxu0 %v993
        %v1468 = vpop.f32.mrb[0].mxu0
        %v1469 = vadd.f32 %v648, %v1468
        %v1470 = vpop.f32.mrb[0].mxu0
        %v1471 = vadd.f32 %v652, %v1470
        %v1472 = vpop.f32.mrb[0].mxu0
        %v1473 = vpop.f32.mrb[0].mxu0
        %1474 = vdwg.mxu0
        %1475 = vmatprep.subr.bf16.mxu0 %v902
        %1476 = vmatpush1.bf16.msra.mxu0 %v901
        %1477 = vmatprep.subr.bf16.mxu0 %v924
        %1478 = vmatpush1.bf16.msra.mxu0 %v923
        %1479 = vmatprep.subr.bf16.mxu0 %v1063
        %1480 = vmatpush1.bf16.msra.mxu0 %v1060
        %1481 = vmatprep.subr.bf16.mxu0 0
        %1482 = vmatpush1.bf16.msra.mxu0 0
        %1483 = vmatprep.subr.bf16.mxu0 0
        %1484 = vmatpush1.bf16.msra.mxu0 0
        %1485 = vmatprep.subr.bf16.mxu0 0
        %1486 = vmatpush1.bf16.msra.mxu0 0
        %1487 = vmatprep.subr.bf16.mxu0 0
        %1488 = vmatpush1.bf16.msra.mxu0 0
        %1489 = vmatprep.subr.bf16.mxu0 0
        %1490 = vmatpush1.bf16.msra.mxu0 0
        %1491 = vmatprep.subr.bf16.mxu0 0
        %1492 = vmatpush1.bf16.msra.mxu0 0
        %1493 = vmatprep.subr.bf16.mxu0 0
        %1494 = vmatpush1.bf16.msra.mxu0 0
        %1495 = vmatprep.subr.bf16.mxu0 0
        %1496 = vmatpush1.bf16.msra.mxu0 0
        %1497 = vmatprep.subr.bf16.mxu0 0
        %1498 = vmatpush1.bf16.msra.mxu0 0
        %1499 = vmatprep.subr.bf16.mxu0 0
        %1500 = vmatpush1.bf16.msra.mxu0 0
        %1501 = vmatprep.subr.bf16.mxu0 0
        %1502 = vmatpush1.bf16.msra.mxu0 0
        %1503 = vmatprep.subr.bf16.mxu0 0
        %1504 = vmatpush1.bf16.msra.mxu0 0
        %1505 = vmatprep.subr.bf16.mxu0 0
        %1506 = vmatpush1.bf16.msra.mxu0 0
        %1507 = vmatprep.mubr.bf16.mxu0 0
        %1508 = vmatmul.mubr.bf16.gmra.mrb[0].mxu0 %v993
        %v1509 = vpop.f32.mrb[0].mxu0
        %v1510 = vadd.f32 %v656, %v1509
        %v1511 = vpop.f32.mrb[0].mxu0
        %v1512 = vadd.f32 %v660, %v1511
        %v1513 = vpop.f32.mrb[0].mxu0
        %v1514 = vpop.f32.mrb[0].mxu0
        %1515 = vdwg.mxu0
        %v1516 = vmax.f32 %v1100, 0.0
        %v1517 = vpack.c.bf16 %v1516, %v1516
        %v1518 = vld [vmem:[#allocation8] sm:$0xf]
        %v1519 = vld [vmem:[#allocation8 + $0x4] sm:$0xf]
        %v1520 = vld [vmem:[#allocation8 + $0x8] sm:$0xf]
        %v1521 = vld [vmem:[#allocation8 + $0xc] sm:$0xf]
        %v1522 = vld [vmem:[#allocation8 + $0x10] sm:$0xf]
        %v1523 = vld [vmem:[#allocation8 + $0x14] sm:$0xf]
        %v1524 = vld [vmem:[#allocation8 + $0x18] sm:$0xf]
        %v1525 = vld [vmem:[#allocation8 + $0x1c] sm:$0xf]
        %v1526 = vld [vmem:[#allocation8 + $0x20] sm:$0xf]
        %v1527 = vld [vmem:[#allocation8 + $0x24] sm:$0xf]
        %v1528 = vld [vmem:[#allocation8 + $0x28] sm:$0xf]
        %v1529 = vld [vmem:[#allocation8 + $0x2c] sm:$0xf]
        %v1530 = vld [vmem:[#allocation8 + $0x30] sm:$0xf]
        %v1531 = vld [vmem:[#allocation8 + $0x34] sm:$0xf]
        %v1532 = vld [vmem:[#allocation8 + $0x38] sm:$0xf]
        %v1533 = vld [vmem:[#allocation8 + $0x3c] sm:$0xf]
        %v1534 = vld [vmem:[#allocation10] sm:$0x1]
        %v1536 = vlaneseq
        %v1537 = vshrl.u32 %v1536, 7
        %v1538 = vsub.s32 0, %v1537
        %v1539 = vrot.slane %v1534, %v1538
        %v1557 = vunpack.c.l.b16 %v1518
        %v1558 = vunpack.c.l.b16 %v1519
        %v1559 = vunpack.c.l.b16 %v1520
        %v1560 = vunpack.c.l.b16 %v1521
        %v1561 = vunpack.c.l.b16 %v1522
        %v1562 = vunpack.c.l.b16 %v1523
        %v1563 = vunpack.c.l.b16 %v1524
        %v1564 = vunpack.c.l.b16 %v1525
        %v1565 = vunpack.c.l.b16 %v1526
        %v1566 = vunpack.c.l.b16 %v1527
        %v1567 = vunpack.c.l.b16 %v1528
        %v1568 = vunpack.c.l.b16 %v1529
        %v1569 = vunpack.c.l.b16 %v1530
        %v1570 = vunpack.c.l.b16 %v1531
        %v1571 = vunpack.c.l.b16 %v1532
        %v1572 = vunpack.c.l.b16 %v1533
        %v1573 = vpack.c.b16 %v1558, %v1557
        %v1574 = vpack.c.b16 %v1560, %v1559
        %v1575 = vpack.c.b16 %v1562, %v1561
        %v1576 = vpack.c.b16 %v1564, %v1563
        %v1577 = vpack.c.b16 %v1566, %v1565
        %v1578 = vpack.c.b16 %v1568, %v1567
        %v1579 = vpack.c.b16 %v1570, %v1569
        %v1580 = vpack.c.b16 %v1572, %v1571
        %1589 = vmatprep.subr.bf16.mxu0 0
        %1590 = vmatpush1.bf16.msra.mxu0 %v1573
        %1591 = vmatprep.subr.bf16.mxu0 0
        %1592 = vmatpush1.bf16.msra.mxu0 %v1574
        %1593 = vmatprep.subr.bf16.mxu0 0
        %1594 = vmatpush1.bf16.msra.mxu0 %v1575
        %1595 = vmatprep.subr.bf16.mxu0 0
        %1596 = vmatpush1.bf16.msra.mxu0 %v1576
        %1597 = vmatprep.subr.bf16.mxu0 0
        %1598 = vmatpush1.bf16.msra.mxu0 %v1577
        %1599 = vmatprep.subr.bf16.mxu0 0
        %1600 = vmatpush1.bf16.msra.mxu0 %v1578
        %1601 = vmatprep.subr.bf16.mxu0 0
        %1602 = vmatpush1.bf16.msra.mxu0 %v1579
        %1603 = vmatprep.subr.bf16.mxu0 0
        %1604 = vmatpush1.bf16.msra.mxu0 %v1580
        %1605 = vmatprep.subr.bf16.mxu0 0
        %1606 = vmatpush1.bf16.msra.mxu0 0
        %1607 = vmatprep.subr.bf16.mxu0 0
        %1608 = vmatpush1.bf16.msra.mxu0 0
        %1609 = vmatprep.subr.bf16.mxu0 0
        %1610 = vmatpush1.bf16.msra.mxu0 0
        %1611 = vmatprep.subr.bf16.mxu0 0
        %1612 = vmatpush1.bf16.msra.mxu0 0
        %1613 = vmatprep.subr.bf16.mxu0 0
        %1614 = vmatpush1.bf16.msra.mxu0 0
        %1615 = vmatprep.subr.bf16.mxu0 0
        %1616 = vmatpush1.bf16.msra.mxu0 0
        %1617 = vmatprep.subr.bf16.mxu0 0
        %1618 = vmatpush1.bf16.msra.mxu0 0
        %1619 = vmatprep.subr.bf16.mxu0 0
        %1620 = vmatpush1.bf16.msra.mxu0 0
        %1621 = vmatprep.mubr.bf16.mxu0 0
        %1622 = vmatmul.mubr.bf16.gmra.mrb[0].mxu0 %v1517
        %v1623 = vpop.f32.mrb[0].mxu0
        %v1624 = vadd.f32 %v1539, %v1623
        %v1625 = vpop.f32.mrb[0].mxu0
        %v1626 = vpop.f32.mrb[0].mxu0
        %v1627 = vpop.f32.mrb[0].mxu0
        %1628 = vdwg.mxu0
        %v1629 = vmax.f32 %v1624, 0.0
        %v1630 = vmax.f32 %v1428, 0.0
        %v1631 = vmax.f32 %v1430, 0.0
        %v1632 = vmax.f32 %v1469, 0.0
        %v1633 = vmax.f32 %v1471, 0.0
        %v1634 = vmax.f32 %v1510, 0.0
        %v1635 = vmax.f32 %v1512, 0.0
        %v1636 = vpack.c.bf16 %v1630, %v1630
        %v1637 = vpack.c.bf16 %v1631, %v1631
        %v1638 = vpack.c.bf16 %v1632, %v1632
        %v1639 = vpack.c.bf16 %v1633, %v1633
        %v1640 = vpack.c.bf16 %v1634, %v1634
        %v1641 = vpack.c.bf16 %v1635, %v1635
        %v1642 = vld [vmem:[#allocation13] sm:$0xf]
        %v1643 = vld [vmem:[#allocation13 + $0x4] sm:$0xf]
        %v1644 = vld [vmem:[#allocation13 + $0x8] sm:$0xf]
        %v1645 = vld [vmem:[#allocation13 + $0xc] sm:$0xf]
        %v1646 = vld [vmem:[#allocation13 + $0x10] sm:$0xf]
        %v1647 = vld [vmem:[#allocation13 + $0x14] sm:$0xf]
        %v1648 = vld [vmem:[#allocation13 + $0x18] sm:$0xf]
        %v1649 = vld [vmem:[#allocation13 + $0x1c] sm:$0xf]
        %v1650 = vld [vmem:[#allocation13 + $0x20] sm:$0xf]
        %v1651 = vld [vmem:[#allocation13 + $0x24] sm:$0xf]
        %v1652 = vld [vmem:[#allocation13 + $0x28] sm:$0xf]
        %v1653 = vld [vmem:[#allocation13 + $0x2c] sm:$0xf]
        %v1654 = vld [vmem:[#allocation13 + $0x30] sm:$0xf]
        %v1655 = vld [vmem:[#allocation13 + $0x34] sm:$0xf]
        %v1656 = vld [vmem:[#allocation13 + $0x38] sm:$0xf]
        %v1657 = vld [vmem:[#allocation13 + $0x3c] sm:$0xf]
        %v1658 = vld [vmem:[#allocation13 + $0x40] sm:$0xf]
        %v1659 = vld [vmem:[#allocation13 + $0x44] sm:$0xf]
        %v1660 = vld [vmem:[#allocation13 + $0x48] sm:$0xf]
        %v1661 = vld [vmem:[#allocation13 + $0x4c] sm:$0xf]
        %v1662 = vld [vmem:[#allocation13 + $0x50] sm:$0xf]
        %v1663 = vld [vmem:[#allocation13 + $0x54] sm:$0xf]
        %v1664 = vld [vmem:[#allocation13 + $0x58] sm:$0xf]
        %v1665 = vld [vmem:[#allocation13 + $0x5c] sm:$0xf]
        %v1666 = vld [vmem:[#allocation13 + $0x60] sm:$0xf]
        %v1667 = vld [vmem:[#allocation13 + $0x64] sm:$0xf]
        %v1668 = vld [vmem:[#allocation13 + $0x68] sm:$0xf]
        %v1669 = vld [vmem:[#allocation13 + $0x6c] sm:$0xf]
        %v1670 = vld [vmem:[#allocation13 + $0x70] sm:$0xf]
        %v1671 = vld [vmem:[#allocation13 + $0x74] sm:$0xf]
        %v1672 = vld [vmem:[#allocation13 + $0x78] sm:$0xf]
        %v1673 = vld [vmem:[#allocation13 + $0x7c] sm:$0xf]
        %v1674 = vld [vmem:[#allocation13 + $0x80] sm:$0xf]
        %v1675 = vld [vmem:[#allocation13 + $0x84] sm:$0xf]
        %v1676 = vld [vmem:[#allocation13 + $0x88] sm:$0xf]
        %v1677 = vld [vmem:[#allocation13 + $0x8c] sm:$0xf]
        %v1678 = vld [vmem:[#allocation13 + $0x90] sm:$0xf]
        %v1679 = vld [vmem:[#allocation13 + $0x94] sm:$0xf]
        %v1680 = vld [vmem:[#allocation13 + $0x98] sm:$0xf]
        %v1681 = vld [vmem:[#allocation13 + $0x9c] sm:$0xf]
        %v1682 = vld [vmem:[#allocation13 + $0xa0] sm:$0xf]
        %v1683 = vld [vmem:[#allocation13 + $0xa4] sm:$0xf]
        %v1684 = vld [vmem:[#allocation13 + $0xa8] sm:$0xf]
        %v1685 = vld [vmem:[#allocation13 + $0xac] sm:$0xf]
        %v1686 = vld [vmem:[#allocation13 + $0xb0] sm:$0xf]
        %v1687 = vld [vmem:[#allocation13 + $0xb4] sm:$0xf]
        %v1688 = vld [vmem:[#allocation13 + $0xb8] sm:$0xf]
        %v1689 = vld [vmem:[#allocation13 + $0xbc] sm:$0xf]
        %v1690 = vld [vmem:[#allocation13 + $0xc0] sm:$0xf]
        %v1691 = vld [vmem:[#allocation13 + $0xc4] sm:$0xf]
        %v1692 = vld [vmem:[#allocation13 + $0xc8] sm:$0xf]
        %v1693 = vld [vmem:[#allocation13 + $0xcc] sm:$0xf]
        %v1694 = vld [vmem:[#allocation13 + $0xd0] sm:$0xf]
        %v1695 = vld [vmem:[#allocation13 + $0xd4] sm:$0xf]
        %v1696 = vld [vmem:[#allocation13 + $0xd8] sm:$0xf]
        %v1697 = vld [vmem:[#allocation13 + $0xdc] sm:$0xf]
        %v1698 = vld [vmem:[#allocation13 + $0xe0] sm:$0xf]
        %v1699 = vld [vmem:[#allocation13 + $0xe4] sm:$0xf]
        %v1700 = vld [vmem:[#allocation13 + $0xe8] sm:$0xf]
        %v1701 = vld [vmem:[#allocation13 + $0xec] sm:$0xf]
        %v1702 = vld [vmem:[#allocation13 + $0xf0] sm:$0xf]
        %v1703 = vld [vmem:[#allocation13 + $0xf4] sm:$0xf]
        %v1704 = vld [vmem:[#allocation13 + $0xf8] sm:$0xf]
        %v1705 = vld [vmem:[#allocation13 + $0xfc] sm:$0xf]
        %v1706 = vld [vmem:[#allocation13 + $0x100] sm:$0xf]
        %v1707 = vld [vmem:[#allocation13 + $0x104] sm:$0xf]
        %v1708 = vld [vmem:[#allocation13 + $0x108] sm:$0xf]
        %v1709 = vld [vmem:[#allocation13 + $0x10c] sm:$0xf]
        %v1710 = vld [vmem:[#allocation13 + $0x110] sm:$0xf]
        %v1711 = vld [vmem:[#allocation13 + $0x114] sm:$0xf]
        %v1712 = vld [vmem:[#allocation13 + $0x118] sm:$0xf]
        %v1713 = vld [vmem:[#allocation13 + $0x11c] sm:$0xf]
        %v1714 = vld [vmem:[#allocation13 + $0x120] sm:$0xf]
        %v1715 = vld [vmem:[#allocation13 + $0x124] sm:$0xf]
        %v1716 = vld [vmem:[#allocation13 + $0x128] sm:$0xf]
        %v1717 = vld [vmem:[#allocation13 + $0x12c] sm:$0xf]
        %v1718 = vld [vmem:[#allocation13 + $0x130] sm:$0xf]
        %v1719 = vld [vmem:[#allocation13 + $0x134] sm:$0xf]
        %v1720 = vld [vmem:[#allocation13 + $0x138] sm:$0xf]
        %v1721 = vld [vmem:[#allocation13 + $0x13c] sm:$0xf]
        %v1722 = vld [vmem:[#allocation13 + $0x140] sm:$0xf]
        %v1723 = vld [vmem:[#allocation13 + $0x144] sm:$0xf]
        %v1724 = vld [vmem:[#allocation13 + $0x148] sm:$0xf]
        %v1725 = vld [vmem:[#allocation13 + $0x14c] sm:$0xf]
        %v1726 = vld [vmem:[#allocation13 + $0x150] sm:$0xf]
        %v1727 = vld [vmem:[#allocation13 + $0x154] sm:$0xf]
        %v1728 = vld [vmem:[#allocation13 + $0x158] sm:$0xf]
        %v1729 = vld [vmem:[#allocation13 + $0x15c] sm:$0xf]
        %v1730 = vld [vmem:[#allocation13 + $0x160] sm:$0xf]
        %v1731 = vld [vmem:[#allocation13 + $0x164] sm:$0xf]
        %v1732 = vld [vmem:[#allocation13 + $0x168] sm:$0xf]
        %v1733 = vld [vmem:[#allocation13 + $0x16c] sm:$0xf]
        %v1734 = vld [vmem:[#allocation13 + $0x170] sm:$0xf]
        %v1735 = vld [vmem:[#allocation13 + $0x174] sm:$0xf]
        %v1736 = vld [vmem:[#allocation13 + $0x178] sm:$0xf]
        %v1737 = vld [vmem:[#allocation13 + $0x17c] sm:$0xf]
        %v1738 = vld [vmem:[#allocation14] sm:$0x1]
        %v1740 = vlaneseq
        %v1741 = vshrl.u32 %v1740, 7
        %v1742 = vsub.s32 0, %v1741
        %v1743 = vrot.slane %v1738, %v1742
        %v1841 = vunpack.c.l.b16 %v1642
        %v1842 = vunpack.c.l.b16 %v1643
        %v1843 = vunpack.c.l.b16 %v1644
        %v1844 = vunpack.c.l.b16 %v1645
        %v1845 = vunpack.c.l.b16 %v1646
        %v1846 = vunpack.c.l.b16 %v1647
        %v1847 = vunpack.c.l.b16 %v1648
        %v1848 = vunpack.c.l.b16 %v1649
        %v1849 = vunpack.c.l.b16 %v1650
        %v1850 = vunpack.c.l.b16 %v1651
        %v1851 = vunpack.c.l.b16 %v1652
        %v1852 = vunpack.c.l.b16 %v1653
        %v1853 = vunpack.c.l.b16 %v1654
        %v1854 = vunpack.c.l.b16 %v1655
        %v1855 = vunpack.c.l.b16 %v1656
        %v1856 = vunpack.c.l.b16 %v1657
        %v1857 = vunpack.c.l.b16 %v1658
        %v1858 = vunpack.c.l.b16 %v1659
        %v1859 = vunpack.c.l.b16 %v1660
        %v1860 = vunpack.c.l.b16 %v1661
        %v1861 = vunpack.c.l.b16 %v1662
        %v1862 = vunpack.c.l.b16 %v1663
        %v1863 = vunpack.c.l.b16 %v1664
        %v1864 = vunpack.c.l.b16 %v1665
        %v1865 = vunpack.c.l.b16 %v1666
        %v1866 = vunpack.c.l.b16 %v1667
        %v1867 = vunpack.c.l.b16 %v1668
        %v1868 = vunpack.c.l.b16 %v1669
        %v1869 = vunpack.c.l.b16 %v1670
        %v1870 = vunpack.c.l.b16 %v1671
        %v1871 = vunpack.c.l.b16 %v1672
        %v1872 = vunpack.c.l.b16 %v1673
        %v1873 = vunpack.c.l.b16 %v1674
        %v1874 = vunpack.c.l.b16 %v1675
        %v1875 = vunpack.c.l.b16 %v1676
        %v1876 = vunpack.c.l.b16 %v1677
        %v1877 = vunpack.c.l.b16 %v1678
        %v1878 = vunpack.c.l.b16 %v1679
        %v1879 = vunpack.c.l.b16 %v1680
        %v1880 = vunpack.c.l.b16 %v1681
        %v1881 = vunpack.c.l.b16 %v1682
        %v1882 = vunpack.c.l.b16 %v1683
        %v1883 = vunpack.c.l.b16 %v1684
        %v1884 = vunpack.c.l.b16 %v1685
        %v1885 = vunpack.c.l.b16 %v1686
        %v1886 = vunpack.c.l.b16 %v1687
        %v1887 = vunpack.c.l.b16 %v1688
        %v1888 = vunpack.c.l.b16 %v1689
        %v1889 = vunpack.c.l.b16 %v1690
        %v1890 = vunpack.c.l.b16 %v1691
        %v1891 = vunpack.c.l.b16 %v1692
        %v1892 = vunpack.c.l.b16 %v1693
        %v1893 = vunpack.c.l.b16 %v1694
        %v1894 = vunpack.c.l.b16 %v1695
        %v1895 = vunpack.c.l.b16 %v1696
        %v1896 = vunpack.c.l.b16 %v1697
        %v1897 = vunpack.c.l.b16 %v1698
        %v1898 = vunpack.c.l.b16 %v1699
        %v1899 = vunpack.c.l.b16 %v1700
        %v1900 = vunpack.c.l.b16 %v1701
        %v1901 = vunpack.c.l.b16 %v1702
        %v1902 = vunpack.c.l.b16 %v1703
        %v1903 = vunpack.c.l.b16 %v1704
        %v1904 = vunpack.c.l.b16 %v1705
        %v1905 = vunpack.c.l.b16 %v1706
        %v1906 = vunpack.c.l.b16 %v1707
        %v1907 = vunpack.c.l.b16 %v1708
        %v1908 = vunpack.c.l.b16 %v1709
        %v1909 = vunpack.c.l.b16 %v1710
        %v1910 = vunpack.c.l.b16 %v1711
        %v1911 = vunpack.c.l.b16 %v1712
        %v1912 = vunpack.c.l.b16 %v1713
        %v1913 = vunpack.c.l.b16 %v1714
        %v1914 = vunpack.c.l.b16 %v1715
        %v1915 = vunpack.c.l.b16 %v1716
        %v1916 = vunpack.c.l.b16 %v1717
        %v1917 = vunpack.c.l.b16 %v1718
        %v1918 = vunpack.c.l.b16 %v1719
        %v1919 = vunpack.c.l.b16 %v1720
        %v1920 = vunpack.c.l.b16 %v1721
        %v1921 = vunpack.c.l.b16 %v1722
        %v1922 = vunpack.c.l.b16 %v1723
        %v1923 = vunpack.c.l.b16 %v1724
        %v1924 = vunpack.c.l.b16 %v1725
        %v1925 = vunpack.c.l.b16 %v1726
        %v1926 = vunpack.c.l.b16 %v1727
        %v1927 = vunpack.c.l.b16 %v1728
        %v1928 = vunpack.c.l.b16 %v1729
        %v1929 = vunpack.c.l.b16 %v1730
        %v1930 = vunpack.c.l.b16 %v1731
        %v1931 = vunpack.c.l.b16 %v1732
        %v1932 = vunpack.c.l.b16 %v1733
        %v1933 = vunpack.c.l.b16 %v1734
        %v1934 = vunpack.c.l.b16 %v1735
        %v1935 = vunpack.c.l.b16 %v1736
        %v1936 = vunpack.c.l.b16 %v1737
        %v1937 = vpack.c.b16 %v1842, %v1841
        %v1938 = vpack.c.b16 %v1844, %v1843
        %v1939 = vpack.c.b16 %v1846, %v1845
        %v1940 = vpack.c.b16 %v1848, %v1847
        %v1941 = vpack.c.b16 %v1850, %v1849
        %v1942 = vpack.c.b16 %v1852, %v1851
        %v1943 = vpack.c.b16 %v1854, %v1853
        %v1944 = vpack.c.b16 %v1856, %v1855
        %v1945 = vpack.c.b16 %v1858, %v1857
        %v1946 = vpack.c.b16 %v1860, %v1859
        %v1947 = vpack.c.b16 %v1862, %v1861
        %v1948 = vpack.c.b16 %v1864, %v1863
        %v1949 = vpack.c.b16 %v1866, %v1865
        %v1950 = vpack.c.b16 %v1868, %v1867
        %v1951 = vpack.c.b16 %v1870, %v1869
        %v1952 = vpack.c.b16 %v1872, %v1871
        %v1953 = vpack.c.b16 %v1874, %v1873
        %v1954 = vpack.c.b16 %v1876, %v1875
        %v1955 = vpack.c.b16 %v1878, %v1877
        %v1956 = vpack.c.b16 %v1880, %v1879
        %v1957 = vpack.c.b16 %v1882, %v1881
        %v1958 = vpack.c.b16 %v1884, %v1883
        %v1959 = vpack.c.b16 %v1886, %v1885
        %v1960 = vpack.c.b16 %v1888, %v1887
        %v1961 = vpack.c.b16 %v1890, %v1889
        %v1962 = vpack.c.b16 %v1892, %v1891
        %v1963 = vpack.c.b16 %v1894, %v1893
        %v1964 = vpack.c.b16 %v1896, %v1895
        %v1965 = vpack.c.b16 %v1898, %v1897
        %v1966 = vpack.c.b16 %v1900, %v1899
        %v1967 = vpack.c.b16 %v1902, %v1901
        %v1968 = vpack.c.b16 %v1904, %v1903
        %v1969 = vpack.c.b16 %v1906, %v1905
        %v1970 = vpack.c.b16 %v1908, %v1907
        %v1971 = vpack.c.b16 %v1910, %v1909
        %v1972 = vpack.c.b16 %v1912, %v1911
        %v1973 = vpack.c.b16 %v1914, %v1913
        %v1974 = vpack.c.b16 %v1916, %v1915
        %v1975 = vpack.c.b16 %v1918, %v1917
        %v1976 = vpack.c.b16 %v1920, %v1919
        %v1977 = vpack.c.b16 %v1922, %v1921
        %v1978 = vpack.c.b16 %v1924, %v1923
        %v1979 = vpack.c.b16 %v1926, %v1925
        %v1980 = vpack.c.b16 %v1928, %v1927
        %v1981 = vpack.c.b16 %v1930, %v1929
        %v1982 = vpack.c.b16 %v1932, %v1931
        %v1983 = vpack.c.b16 %v1934, %v1933
        %v1984 = vpack.c.b16 %v1936, %v1935
        %2033 = vmatprep.subr.bf16.mxu0 0
        %2034 = vmatpush1.bf16.msra.mxu0 %v1937
        %2035 = vmatprep.subr.bf16.mxu0 0
        %2036 = vmatpush1.bf16.msra.mxu0 %v1938
        %2037 = vmatprep.subr.bf16.mxu0 0
        %2038 = vmatpush1.bf16.msra.mxu0 %v1939
        %2039 = vmatprep.subr.bf16.mxu0 0
        %2040 = vmatpush1.bf16.msra.mxu0 %v1940
        %2041 = vmatprep.subr.bf16.mxu0 0
        %2042 = vmatpush1.bf16.msra.mxu0 %v1941
        %2043 = vmatprep.subr.bf16.mxu0 0
        %2044 = vmatpush1.bf16.msra.mxu0 %v1942
        %2045 = vmatprep.subr.bf16.mxu0 0
        %2046 = vmatpush1.bf16.msra.mxu0 %v1943
        %2047 = vmatprep.subr.bf16.mxu0 0
        %2048 = vmatpush1.bf16.msra.mxu0 %v1944
        %2049 = vmatprep.subr.bf16.mxu0 0
        %2050 = vmatpush1.bf16.msra.mxu0 %v1945
        %2051 = vmatprep.subr.bf16.mxu0 0
        %2052 = vmatpush1.bf16.msra.mxu0 %v1946
        %2053 = vmatprep.subr.bf16.mxu0 0
        %2054 = vmatpush1.bf16.msra.mxu0 %v1947
        %2055 = vmatprep.subr.bf16.mxu0 0
        %2056 = vmatpush1.bf16.msra.mxu0 %v1948
        %2057 = vmatprep.subr.bf16.mxu0 0
        %2058 = vmatpush1.bf16.msra.mxu0 %v1949
        %2059 = vmatprep.subr.bf16.mxu0 0
        %2060 = vmatpush1.bf16.msra.mxu0 %v1950
        %2061 = vmatprep.subr.bf16.mxu0 0
        %2062 = vmatpush1.bf16.msra.mxu0 %v1951
        %2063 = vmatprep.subr.bf16.mxu0 0
        %2064 = vmatpush1.bf16.msra.mxu0 %v1952
        %2065 = vmatprep.mubr.bf16.mxu0 %v1637
        %2066 = vmatmul.mubr.bf16.gmra.mrb[0].mxu0 %v1636
        %v2067 = vpop.f32.mrb[0].mxu0
        %v2068 = vadd.f32 %v1743, %v2067
        %v2069 = vpop.f32.mrb[0].mxu0
        %v2070 = vpop.f32.mrb[0].mxu0
        %v2071 = vpop.f32.mrb[0].mxu0
        %2072 = vdwg.mxu0
        %2073 = vmatprep.subr.bf16.mxu0 0
        %2074 = vmatpush1.bf16.msra.mxu0 %v1953
        %2075 = vmatprep.subr.bf16.mxu0 0
        %2076 = vmatpush1.bf16.msra.mxu0 %v1954
        %2077 = vmatprep.subr.bf16.mxu0 0
        %2078 = vmatpush1.bf16.msra.mxu0 %v1955
        %2079 = vmatprep.subr.bf16.mxu0 0
        %2080 = vmatpush1.bf16.msra.mxu0 %v1956
        %2081 = vmatprep.subr.bf16.mxu0 0
        %2082 = vmatpush1.bf16.msra.mxu0 %v1957
        %2083 = vmatprep.subr.bf16.mxu0 0
        %2084 = vmatpush1.bf16.msra.mxu0 %v1958
        %2085 = vmatprep.subr.bf16.mxu0 0
        %2086 = vmatpush1.bf16.msra.mxu0 %v1959
        %2087 = vmatprep.subr.bf16.mxu0 0
        %2088 = vmatpush1.bf16.msra.mxu0 %v1960
        %2089 = vmatprep.subr.bf16.mxu0 0
        %2090 = vmatpush1.bf16.msra.mxu0 %v1961
        %2091 = vmatprep.subr.bf16.mxu0 0
        %2092 = vmatpush1.bf16.msra.mxu0 %v1962
        %2093 = vmatprep.subr.bf16.mxu0 0
        %2094 = vmatpush1.bf16.msra.mxu0 %v1963
        %2095 = vmatprep.subr.bf16.mxu0 0
        %2096 = vmatpush1.bf16.msra.mxu0 %v1964
        %2097 = vmatprep.subr.bf16.mxu0 0
        %2098 = vmatpush1.bf16.msra.mxu0 %v1965
        %2099 = vmatprep.subr.bf16.mxu0 0
        %2100 = vmatpush1.bf16.msra.mxu0 %v1966
        %2101 = vmatprep.subr.bf16.mxu0 0
        %2102 = vmatpush1.bf16.msra.mxu0 %v1967
        %2103 = vmatprep.subr.bf16.mxu0 0
        %2104 = vmatpush1.bf16.msra.mxu0 %v1968
        %2105 = vmatprep.mubr.bf16.mxu0 %v1639
        %2106 = vmatmul.mubr.bf16.gmra.mrb[0].mxu0 %v1638
        %v2107 = vpop.f32.mrb[0].mxu0
        %v2108 = vadd.f32 %v2068, %v2107
        %v2109 = vpop.f32.mrb[0].mxu0
        %v2110 = vpop.f32.mrb[0].mxu0
        %v2111 = vpop.f32.mrb[0].mxu0
        %2112 = vdwg.mxu0
        %2113 = vmatprep.subr.bf16.mxu0 0
        %2114 = vmatpush1.bf16.msra.mxu0 %v1969
        %2115 = vmatprep.subr.bf16.mxu0 0
        %2116 = vmatpush1.bf16.msra.mxu0 %v1970
        %2117 = vmatprep.subr.bf16.mxu0 0
        %2118 = vmatpush1.bf16.msra.mxu0 %v1971
        %2119 = vmatprep.subr.bf16.mxu0 0
        %2120 = vmatpush1.bf16.msra.mxu0 %v1972
        %2121 = vmatprep.subr.bf16.mxu0 0
        %2122 = vmatpush1.bf16.msra.mxu0 %v1973
        %2123 = vmatprep.subr.bf16.mxu0 0
        %2124 = vmatpush1.bf16.msra.mxu0 %v1974
        %2125 = vmatprep.subr.bf16.mxu0 0
        %2126 = vmatpush1.bf16.msra.mxu0 %v1975
        %2127 = vmatprep.subr.bf16.mxu0 0
        %2128 = vmatpush1.bf16.msra.mxu0 %v1976
        %2129 = vmatprep.subr.bf16.mxu0 0
        %2130 = vmatpush1.bf16.msra.mxu0 %v1977
        %2131 = vmatprep.subr.bf16.mxu0 0
        %2132 = vmatpush1.bf16.msra.mxu0 %v1978
        %2133 = vmatprep.subr.bf16.mxu0 0
        %2134 = vmatpush1.bf16.msra.mxu0 %v1979
        %2135 = vmatprep.subr.bf16.mxu0 0
        %2136 = vmatpush1.bf16.msra.mxu0 %v1980
        %2137 = vmatprep.subr.bf16.mxu0 0
        %2138 = vmatpush1.bf16.msra.mxu0 %v1981
        %2139 = vmatprep.subr.bf16.mxu0 0
        %2140 = vmatpush1.bf16.msra.mxu0 %v1982
        %2141 = vmatprep.subr.bf16.mxu0 0
        %2142 = vmatpush1.bf16.msra.mxu0 %v1983
        %2143 = vmatprep.subr.bf16.mxu0 0
        %2144 = vmatpush1.bf16.msra.mxu0 %v1984
        %2145 = vmatprep.mubr.bf16.mxu0 %v1641
        %2146 = vmatmul.mubr.bf16.gmra.mrb[0].mxu0 %v1640
        %v2147 = vpop.f32.mrb[0].mxu0
        %v2148 = vadd.f32 %v2108, %v2147
        %v2149 = vpop.f32.mrb[0].mxu0
        %v2150 = vpop.f32.mrb[0].mxu0
        %v2151 = vpop.f32.mrb[0].mxu0
        %2152 = vdwg.mxu0
        %v2153 = vmax.f32 %v2148, 0.0
        %v2154 = vld [vmem:[#allocation11] sm:$0xff]
        %v2155 = vld [vmem:[#allocation11 + $0x8] sm:$0xf]
        %v2156 = vld [vmem:[#allocation11 + $0xc] sm:$0xff]
        %v2157 = vld [vmem:[#allocation11 + $0x14] sm:$0xf]
        %v2158 = vld [vmem:[#allocation11 + $0x18] sm:$0xff]
        %v2159 = vld [vmem:[#allocation11 + $0x20] sm:$0xf]
        %v2160 = vld [vmem:[#allocation11 + $0x24] sm:$0xff]
        %v2161 = vld [vmem:[#allocation11 + $0x2c] sm:$0xf]
        %v2162 = vld [vmem:[#allocation11 + $0x30] sm:$0xff]
        %v2163 = vld [vmem:[#allocation11 + $0x38] sm:$0xf]
        %v2164 = vld [vmem:[#allocation11 + $0x3c] sm:$0xff]
        %v2165 = vld [vmem:[#allocation11 + $0x44] sm:$0xf]
        %v2166 = vld [vmem:[#allocation11 + $0x48] sm:$0xff]
        %v2167 = vld [vmem:[#allocation11 + $0x50] sm:$0xf]
        %v2168 = vld [vmem:[#allocation11 + $0x54] sm:$0xff]
        %v2169 = vld [vmem:[#allocation11 + $0x5c] sm:$0xf]
        %v2170 = vld [vmem:[#allocation11 + $0x60] sm:$0xff]
        %v2171 = vld [vmem:[#allocation11 + $0x68] sm:$0xf]
        %v2172 = vld [vmem:[#allocation11 + $0x6c] sm:$0xff]
        %v2173 = vld [vmem:[#allocation11 + $0x74] sm:$0xf]
        %v2174 = vld [vmem:[#allocation11 + $0x78] sm:$0xff]
        %v2175 = vld [vmem:[#allocation11 + $0x80] sm:$0xf]
        %v2176 = vld [vmem:[#allocation11 + $0x84] sm:$0xff]
        %v2177 = vld [vmem:[#allocation11 + $0x8c] sm:$0xf]
        %v2178 = vld [vmem:[#allocation11 + $0x90] sm:$0xff]
        %v2179 = vld [vmem:[#allocation11 + $0x98] sm:$0xf]
        %v2180 = vld [vmem:[#allocation11 + $0x9c] sm:$0xff]
        %v2181 = vld [vmem:[#allocation11 + $0xa4] sm:$0xf]
        %v2182 = vld [vmem:[#allocation11 + $0xa8] sm:$0xff]
        %v2183 = vld [vmem:[#allocation11 + $0xb0] sm:$0xf]
        %v2184 = vld [vmem:[#allocation11 + $0xb4] sm:$0xff]
        %v2185 = vld [vmem:[#allocation11 + $0xbc] sm:$0xf]
        %v2218 = vunpack.c.l.b16 %v2154
        %v2219 = vunpack.c.h.b16 %v2154
        %v2220 = vunpack.c.l.b16 %v2155
        %v2221 = vunpack.c.l.b16 %v2156
        %v2222 = vunpack.c.h.b16 %v2156
        %v2223 = vunpack.c.l.b16 %v2157
        %v2224 = vunpack.c.l.b16 %v2158
        %v2225 = vunpack.c.h.b16 %v2158
        %v2226 = vunpack.c.l.b16 %v2159
        %v2227 = vunpack.c.l.b16 %v2160
        %v2228 = vunpack.c.h.b16 %v2160
        %v2229 = vunpack.c.l.b16 %v2161
        %v2230 = vunpack.c.l.b16 %v2162
        %v2231 = vunpack.c.h.b16 %v2162
        %v2232 = vunpack.c.l.b16 %v2163
        %v2233 = vunpack.c.l.b16 %v2164
        %v2234 = vunpack.c.h.b16 %v2164
        %v2235 = vunpack.c.l.b16 %v2165
        %v2236 = vunpack.c.l.b16 %v2166
        %v2237 = vunpack.c.h.b16 %v2166
        %v2238 = vunpack.c.l.b16 %v2167
        %v2239 = vunpack.c.l.b16 %v2168
        %v2240 = vunpack.c.h.b16 %v2168
        %v2241 = vunpack.c.l.b16 %v2169
        %v2242 = vunpack.c.l.b16 %v2170
        %v2243 = vunpack.c.h.b16 %v2170
        %v2244 = vunpack.c.l.b16 %v2171
        %v2245 = vunpack.c.l.b16 %v2172
        %v2246 = vunpack.c.h.b16 %v2172
        %v2247 = vunpack.c.l.b16 %v2173
        %v2248 = vunpack.c.l.b16 %v2174
        %v2249 = vunpack.c.h.b16 %v2174
        %v2250 = vunpack.c.l.b16 %v2175
        %v2251 = vunpack.c.l.b16 %v2176
        %v2252 = vunpack.c.h.b16 %v2176
        %v2253 = vunpack.c.l.b16 %v2177
        %v2254 = vunpack.c.l.b16 %v2178
        %v2255 = vunpack.c.h.b16 %v2178
        %v2256 = vunpack.c.l.b16 %v2179
        %v2257 = vunpack.c.l.b16 %v2180
        %v2258 = vunpack.c.h.b16 %v2180
        %v2259 = vunpack.c.l.b16 %v2181
        %v2260 = vunpack.c.l.b16 %v2182
        %v2261 = vunpack.c.h.b16 %v2182
        %v2262 = vunpack.c.l.b16 %v2183
        %v2263 = vunpack.c.l.b16 %v2184
        %v2264 = vunpack.c.h.b16 %v2184
        %v2265 = vunpack.c.l.b16 %v2185
        %v2266 = vpack.c.b16 %v2221, %v2218
        %v2267 = vpack.c.b16 %v2222, %v2219
        %v2268 = vpack.c.b16 %v2223, %v2220
        %v2269 = vpack.c.b16 %v2227, %v2224
        %v2270 = vpack.c.b16 %v2228, %v2225
        %v2271 = vpack.c.b16 %v2229, %v2226
        %v2272 = vpack.c.b16 %v2233, %v2230
        %v2273 = vpack.c.b16 %v2234, %v2231
        %v2274 = vpack.c.b16 %v2235, %v2232
        %v2275 = vpack.c.b16 %v2239, %v2236
        %v2276 = vpack.c.b16 %v2240, %v2237
        %v2277 = vpack.c.b16 %v2241, %v2238
        %v2278 = vpack.c.b16 %v2245, %v2242
        %v2279 = vpack.c.b16 %v2246, %v2243
        %v2280 = vpack.c.b16 %v2247, %v2244
        %v2281 = vpack.c.b16 %v2251, %v2248
        %v2282 = vpack.c.b16 %v2252, %v2249
        %v2283 = vpack.c.b16 %v2253, %v2250
        %v2284 = vpack.c.b16 %v2257, %v2254
        %v2285 = vpack.c.b16 %v2258, %v2255
        %v2286 = vpack.c.b16 %v2259, %v2256
        %v2287 = vpack.c.b16 %v2263, %v2260
        %v2288 = vpack.c.b16 %v2264, %v2261
        %v2289 = vpack.c.b16 %v2265, %v2262
        %2314 = vmatprep.subr.bf16.mxu0 %v2267
        %2315 = vmatpush1.bf16.msra.mxu0 %v2266
        %2316 = vmatprep.subr.bf16.mxu0 %v2270
        %2317 = vmatpush1.bf16.msra.mxu0 %v2269
        %2318 = vmatprep.subr.bf16.mxu0 %v2273
        %2319 = vmatpush1.bf16.msra.mxu0 %v2272
        %2320 = vmatprep.subr.bf16.mxu0 %v2276
        %2321 = vmatpush1.bf16.msra.mxu0 %v2275
        %2322 = vmatprep.subr.bf16.mxu0 %v2279
        %2323 = vmatpush1.bf16.msra.mxu0 %v2278
        %2324 = vmatprep.subr.bf16.mxu0 %v2282
        %2325 = vmatpush1.bf16.msra.mxu0 %v2281
        %2326 = vmatprep.subr.bf16.mxu0 %v2285
        %2327 = vmatpush1.bf16.msra.mxu0 %v2284
        %2328 = vmatprep.subr.bf16.mxu0 %v2288
        %2329 = vmatpush1.bf16.msra.mxu0 %v2287
        %2330 = vmatprep.subr.bf16.mxu0 0
        %2331 = vmatpush1.bf16.msra.mxu0 0
        %2332 = vmatprep.subr.bf16.mxu0 0
        %2333 = vmatpush1.bf16.msra.mxu0 0
        %2334 = vmatprep.subr.bf16.mxu0 0
        %2335 = vmatpush1.bf16.msra.mxu0 0
        %2336 = vmatprep.subr.bf16.mxu0 0
        %2337 = vmatpush1.bf16.msra.mxu0 0
        %2338 = vmatprep.subr.bf16.mxu0 0
        %2339 = vmatpush1.bf16.msra.mxu0 0
        %2340 = vmatprep.subr.bf16.mxu0 0
        %2341 = vmatpush1.bf16.msra.mxu0 0
        %2342 = vmatprep.subr.bf16.mxu0 0
        %2343 = vmatpush1.bf16.msra.mxu0 0
        %2344 = vmatprep.subr.bf16.mxu0 0
        %2345 = vmatpush1.bf16.msra.mxu0 0
        %2346 = vmatprep.mubr.bf16.mxu0 0
        %2347 = vmatmul.mubr.bf16.gmra.mrb[0].mxu0 0
        %v2348 = vpop.f32.mrb[0].mxu0
        %v2349 = vadd.f32 0.0, %v2348
        %v2350 = vpop.f32.mrb[0].mxu0
        %v2351 = vadd.f32 0.0, %v2350
        %v2352 = vpop.f32.mrb[0].mxu0
        %v2353 = vpop.f32.mrb[0].mxu0
        %2354 = vdwg.mxu0
        %2355 = vmatprep.subr.bf16.mxu0 0
        %2356 = vmatpush1.bf16.msra.mxu0 %v2268
        %2357 = vmatprep.subr.bf16.mxu0 0
        %2358 = vmatpush1.bf16.msra.mxu0 %v2271
        %2359 = vmatprep.subr.bf16.mxu0 0
        %2360 = vmatpush1.bf16.msra.mxu0 %v2274
        %2361 = vmatprep.subr.bf16.mxu0 0
        %2362 = vmatpush1.bf16.msra.mxu0 %v2277
        %2363 = vmatprep.subr.bf16.mxu0 0
        %2364 = vmatpush1.bf16.msra.mxu0 %v2280
        %2365 = vmatprep.subr.bf16.mxu0 0
        %2366 = vmatpush1.bf16.msra.mxu0 %v2283
        %2367 = vmatprep.subr.bf16.mxu0 0
        %2368 = vmatpush1.bf16.msra.mxu0 %v2286
        %2369 = vmatprep.subr.bf16.mxu0 0
        %2370 = vmatpush1.bf16.msra.mxu0 %v2289
        %2371 = vmatprep.subr.bf16.mxu0 0
        %2372 = vmatpush1.bf16.msra.mxu0 0
        %2373 = vmatprep.subr.bf16.mxu0 0
        %2374 = vmatpush1.bf16.msra.mxu0 0
        %2375 = vmatprep.subr.bf16.mxu0 0
        %2376 = vmatpush1.bf16.msra.mxu0 0
        %2377 = vmatprep.subr.bf16.mxu0 0
        %2378 = vmatpush1.bf16.msra.mxu0 0
        %2379 = vmatprep.subr.bf16.mxu0 0
        %2380 = vmatpush1.bf16.msra.mxu0 0
        %2381 = vmatprep.subr.bf16.mxu0 0
        %2382 = vmatpush1.bf16.msra.mxu0 0
        %2383 = vmatprep.subr.bf16.mxu0 0
        %2384 = vmatpush1.bf16.msra.mxu0 0
        %2385 = vmatprep.subr.bf16.mxu0 0
        %2386 = vmatpush1.bf16.msra.mxu0 0
        %2387 = vmatprep.mubr.bf16.mxu0 0
        %2388 = vmatmul.mubr.bf16.gmra.mrb[0].mxu0 0
        %v2389 = vpop.f32.mrb[0].mxu0
        %v2390 = vadd.f32 0.0, %v2389
        %v2391 = vpop.f32.mrb[0].mxu0
        %v2392 = vpop.f32.mrb[0].mxu0
        %v2393 = vpop.f32.mrb[0].mxu0
        %2394 = vdwg.mxu0
        %v2395 = vadd.f32 %v1102, %v2349
        %v2396 = vadd.f32 %v1141, %v2351
        %v2397 = vadd.f32 %v1143, %v2390
        %v2398 = vxor.u32 %v2395, 2147483648
        %v2399 = vxor.u32 %v2396, 2147483648
        %v2400 = vmul.f32 %v2398, 1.442695
        %v2401 = vpow.pop %v2400
        %v2402 = vmul.f32 %v2399, 1.442695
        %v2403 = vpow.pop %v2402
        %v2404 = vadd.f32 %v2401, 1.0
        %v2405 = vadd.f32 %v2403, 1.0
        %v2406 = vrcp.pop %v2404
        %v2407 = vmul.f32 1.0, %v2406
        %v2408 = vrcp.pop %v2405
        %v2409 = vmul.f32 1.0, %v2408
        %v2410 = vtanh.pop %v2397
        %v2411 = vmul.f32 %v2407, 0.0
        %v2412 = vmul.f32 %v2407, %v2410
        %2414 = vrot.lane.b32.xlu0 %v2412, 64
        %v2415 = vpop.permute.xlu0 %2414
        %v2417 = vadd.f32 %v2411, %v2415
        %v2418 = vtanh.pop %v2417
        %2420 = vrot.lane.b32.xlu0 %v2418, 64
        %v2421 = vpop.permute.xlu0 %2420
        %v2423 = vmul.f32 %v2409, %v2421
        %vm2424 = vcmask 523264
        %v2425 = vsel %vm2424, %v2423, %v2410
        %v2426 = vpack.c.bf16 %v2425, %v2425
        %2427 = vmatprep.subr.bf16.mxu0 %v2267
        %2428 = vmatpush1.bf16.msra.mxu0 %v2266
        %2429 = vmatprep.subr.bf16.mxu0 %v2270
        %2430 = vmatpush1.bf16.msra.mxu0 %v2269
        %2431 = vmatprep.subr.bf16.mxu0 %v2273
        %2432 = vmatpush1.bf16.msra.mxu0 %v2272
        %2433 = vmatprep.subr.bf16.mxu0 %v2276
        %2434 = vmatpush1.bf16.msra.mxu0 %v2275
        %2435 = vmatprep.subr.bf16.mxu0 %v2279
        %2436 = vmatpush1.bf16.msra.mxu0 %v2278
        %2437 = vmatprep.subr.bf16.mxu0 %v2282
        %2438 = vmatpush1.bf16.msra.mxu0 %v2281
        %2439 = vmatprep.subr.bf16.mxu0 %v2285
        %2440 = vmatpush1.bf16.msra.mxu0 %v2284
        %2441 = vmatprep.subr.bf16.mxu0 %v2288
        %2442 = vmatpush1.bf16.msra.mxu0 %v2287
        %2443 = vmatprep.subr.bf16.mxu0 0
        %2444 = vmatpush1.bf16.msra.mxu0 0
        %2445 = vmatprep.subr.bf16.mxu0 0
        %2446 = vmatpush1.bf16.msra.mxu0 0
        %2447 = vmatprep.subr.bf16.mxu0 0
        %2448 = vmatpush1.bf16.msra.mxu0 0
        %2449 = vmatprep.subr.bf16.mxu0 0
        %2450 = vmatpush1.bf16.msra.mxu0 0
        %2451 = vmatprep.subr.bf16.mxu0 0
        %2452 = vmatpush1.bf16.msra.mxu0 0
        %2453 = vmatprep.subr.bf16.mxu0 0
        %2454 = vmatpush1.bf16.msra.mxu0 0
        %2455 = vmatprep.subr.bf16.mxu0 0
        %2456 = vmatpush1.bf16.msra.mxu0 0
        %2457 = vmatprep.subr.bf16.mxu0 0
        %2458 = vmatpush1.bf16.msra.mxu0 0
        %2459 = vmatprep.mubr.bf16.mxu0 0
        %2460 = vmatmul.mubr.bf16.gmra.mrb[0].mxu0 %v2426
        %v2461 = vpop.f32.mrb[0].mxu0
        %v2462 = vadd.f32 0.0, %v2461
        %v2463 = vpop.f32.mrb[0].mxu0
        %v2464 = vadd.f32 0.0, %v2463
        %v2465 = vpop.f32.mrb[0].mxu0
        %v2466 = vpop.f32.mrb[0].mxu0
        %2467 = vdwg.mxu0
        %2468 = vmatprep.subr.bf16.mxu0 0
        %2469 = vmatpush1.bf16.msra.mxu0 %v2268
        %2470 = vmatprep.subr.bf16.mxu0 0
        %2471 = vmatpush1.bf16.msra.mxu0 %v2271
        %2472 = vmatprep.subr.bf16.mxu0 0
        %2473 = vmatpush1.bf16.msra.mxu0 %v2274
        %2474 = vmatprep.subr.bf16.mxu0 0
        %2475 = vmatpush1.bf16.msra.mxu0 %v2277
        %2476 = vmatprep.subr.bf16.mxu0 0
        %2477 = vmatpush1.bf16.msra.mxu0 %v2280
        %2478 = vmatprep.subr.bf16.mxu0 0
        %2479 = vmatpush1.bf16.msra.mxu0 %v2283
        %2480 = vmatprep.subr.bf16.mxu0 0
        %2481 = vmatpush1.bf16.msra.mxu0 %v2286
        %2482 = vmatprep.subr.bf16.mxu0 0
        %2483 = vmatpush1.bf16.msra.mxu0 %v2289
        %2484 = vmatprep.subr.bf16.mxu0 0
        %2485 = vmatpush1.bf16.msra.mxu0 0
        %2486 = vmatprep.subr.bf16.mxu0 0
        %2487 = vmatpush1.bf16.msra.mxu0 0
        %2488 = vmatprep.subr.bf16.mxu0 0
        %2489 = vmatpush1.bf16.msra.mxu0 0
        %2490 = vmatprep.subr.bf16.mxu0 0
        %2491 = vmatpush1.bf16.msra.mxu0 0
        %2492 = vmatprep.subr.bf16.mxu0 0
        %2493 = vmatpush1.bf16.msra.mxu0 0
        %2494 = vmatprep.subr.bf16.mxu0 0
        %2495 = vmatpush1.bf16.msra.mxu0 0
        %2496 = vmatprep.subr.bf16.mxu0 0
        %2497 = vmatpush1.bf16.msra.mxu0 0
        %2498 = vmatprep.subr.bf16.mxu0 0
        %2499 = vmatpush1.bf16.msra.mxu0 0
        %2500 = vmatprep.mubr.bf16.mxu0 0
        %2501 = vmatmul.mubr.bf16.gmra.mrb[0].mxu0 %v2426
        %v2502 = vpop.f32.mrb[0].mxu0
        %v2503 = vadd.f32 0.0, %v2502
        %v2504 = vpop.f32.mrb[0].mxu0
        %v2505 = vpop.f32.mrb[0].mxu0
        %v2506 = vpop.f32.mrb[0].mxu0
        %2507 = vdwg.mxu0
        %v2508 = vadd.f32 %v1182, %v2462
        %v2509 = vadd.f32 %v1184, %v2464
        %v2510 = vadd.f32 %v1223, %v2503
        %v2511 = vxor.u32 %v2508, 2147483648
        %v2512 = vxor.u32 %v2509, 2147483648
        %v2513 = vmul.f32 %v2511, 1.442695
        %v2514 = vpow.pop %v2513
        %v2515 = vmul.f32 %v2512, 1.442695
        %v2516 = vpow.pop %v2515
        %v2517 = vadd.f32 %v2514, 1.0
        %v2518 = vadd.f32 %v2516, 1.0
        %v2519 = vrcp.pop %v2517
        %v2520 = vmul.f32 1.0, %v2519
        %v2521 = vrcp.pop %v2518
        %v2522 = vmul.f32 1.0, %v2521
        %v2523 = vtanh.pop %v2510
        %v2524 = vmul.f32 %v2520, %v2417
        %v2525 = vmul.f32 %v2520, %v2523
        %2527 = vrot.lane.b32.xlu0 %v2525, 64
        %v2528 = vpop.permute.xlu0 %2527
        %v2530 = vadd.f32 %v2524, %v2528
        %v2531 = vtanh.pop %v2530
        %2533 = vrot.lane.b32.xlu0 %v2531, 64
        %v2534 = vpop.permute.xlu0 %2533
        %v2536 = vmul.f32 %v2522, %v2534
        %v2537 = vsel %vm2424, %v2536, %v2523
        %v2538 = vpack.c.bf16 %v2537, %v2537
        %2539 = vmatprep.subr.bf16.mxu0 %v2267
        %2540 = vmatpush1.bf16.msra.mxu0 %v2266
        %2541 = vmatprep.subr.bf16.mxu0 %v2270
        %2542 = vmatpush1.bf16.msra.mxu0 %v2269
        %2543 = vmatprep.subr.bf16.mxu0 %v2273
        %2544 = vmatpush1.bf16.msra.mxu0 %v2272
        %2545 = vmatprep.subr.bf16.mxu0 %v2276
        %2546 = vmatpush1.bf16.msra.mxu0 %v2275
        %2547 = vmatprep.subr.bf16.mxu0 %v2279
        %2548 = vmatpush1.bf16.msra.mxu0 %v2278
        %2549 = vmatprep.subr.bf16.mxu0 %v2282
        %2550 = vmatpush1.bf16.msra.mxu0 %v2281
        %2551 = vmatprep.subr.bf16.mxu0 %v2285
        %2552 = vmatpush1.bf16.msra.mxu0 %v2284
        %2553 = vmatprep.subr.bf16.mxu0 %v2288
        %2554 = vmatpush1.bf16.msra.mxu0 %v2287
        %2555 = vmatprep.subr.bf16.mxu0 0
        %2556 = vmatpush1.bf16.msra.mxu0 0
        %2557 = vmatprep.subr.bf16.mxu0 0
        %2558 = vmatpush1.bf16.msra.mxu0 0
        %2559 = vmatprep.subr.bf16.mxu0 0
        %2560 = vmatpush1.bf16.msra.mxu0 0
        %2561 = vmatprep.subr.bf16.mxu0 0
        %2562 = vmatpush1.bf16.msra.mxu0 0
        %2563 = vmatprep.subr.bf16.mxu0 0
        %2564 = vmatpush1.bf16.msra.mxu0 0
        %2565 = vmatprep.subr.bf16.mxu0 0
        %2566 = vmatpush1.bf16.msra.mxu0 0
        %2567 = vmatprep.subr.bf16.mxu0 0
        %2568 = vmatpush1.bf16.msra.mxu0 0
        %2569 = vmatprep.subr.bf16.mxu0 0
        %2570 = vmatpush1.bf16.msra.mxu0 0
        %2571 = vmatprep.mubr.bf16.mxu0 0
        %2572 = vmatmul.mubr.bf16.gmra.mrb[0].mxu0 %v2538
        %v2573 = vpop.f32.mrb[0].mxu0
        %v2574 = vadd.f32 0.0, %v2573
        %v2575 = vpop.f32.mrb[0].mxu0
        %v2576 = vadd.f32 0.0, %v2575
        %v2577 = vpop.f32.mrb[0].mxu0
        %v2578 = vpop.f32.mrb[0].mxu0
        %2579 = vdwg.mxu0
        %2580 = vmatprep.subr.bf16.mxu0 0
        %2581 = vmatpush1.bf16.msra.mxu0 %v2268
        %2582 = vmatprep.subr.bf16.mxu0 0
        %2583 = vmatpush1.bf16.msra.mxu0 %v2271
        %2584 = vmatprep.subr.bf16.mxu0 0
        %2585 = vmatpush1.bf16.msra.mxu0 %v2274
        %2586 = vmatprep.subr.bf16.mxu0 0
        %2587 = vmatpush1.bf16.msra.mxu0 %v2277
        %2588 = vmatprep.subr.bf16.mxu0 0
        %2589 = vmatpush1.bf16.msra.mxu0 %v2280
        %2590 = vmatprep.subr.bf16.mxu0 0
        %2591 = vmatpush1.bf16.msra.mxu0 %v2283
        %2592 = vmatprep.subr.bf16.mxu0 0
        %2593 = vmatpush1.bf16.msra.mxu0 %v2286
        %2594 = vmatprep.subr.bf16.mxu0 0
        %2595 = vmatpush1.bf16.msra.mxu0 %v2289
        %2596 = vmatprep.subr.bf16.mxu0 0
        %2597 = vmatpush1.bf16.msra.mxu0 0
        %2598 = vmatprep.subr.bf16.mxu0 0
        %2599 = vmatpush1.bf16.msra.mxu0 0
        %2600 = vmatprep.subr.bf16.mxu0 0
        %2601 = vmatpush1.bf16.msra.mxu0 0
        %2602 = vmatprep.subr.bf16.mxu0 0
        %2603 = vmatpush1.bf16.msra.mxu0 0
        %2604 = vmatprep.subr.bf16.mxu0 0
        %2605 = vmatpush1.bf16.msra.mxu0 0
        %2606 = vmatprep.subr.bf16.mxu0 0
        %2607 = vmatpush1.bf16.msra.mxu0 0
        %2608 = vmatprep.subr.bf16.mxu0 0
        %2609 = vmatpush1.bf16.msra.mxu0 0
        %2610 = vmatprep.subr.bf16.mxu0 0
        %2611 = vmatpush1.bf16.msra.mxu0 0
        %2612 = vmatprep.mubr.bf16.mxu0 0
        %2613 = vmatmul.mubr.bf16.gmra.mrb[0].mxu0 %v2538
        %v2614 = vpop.f32.mrb[0].mxu0
        %v2615 = vadd.f32 0.0, %v2614
        %v2616 = vpop.f32.mrb[0].mxu0
        %v2617 = vpop.f32.mrb[0].mxu0
        %v2618 = vpop.f32.mrb[0].mxu0
        %2619 = vdwg.mxu0
        %v2620 = vadd.f32 %v1225, %v2574
        %v2621 = vadd.f32 %v1264, %v2576
        %v2622 = vadd.f32 %v1266, %v2615
        %v2623 = vxor.u32 %v2620, 2147483648
        %v2624 = vxor.u32 %v2621, 2147483648
        %v2625 = vmul.f32 %v2623, 1.442695
        %v2626 = vpow.pop %v2625
        %v2627 = vmul.f32 %v2624, 1.442695
        %v2628 = vpow.pop %v2627
        %v2629 = vadd.f32 %v2626, 1.0
        %v2630 = vadd.f32 %v2628, 1.0
        %v2631 = vrcp.pop %v2629
        %v2632 = vmul.f32 1.0, %v2631
        %v2633 = vrcp.pop %v2630
        %v2634 = vmul.f32 1.0, %v2633
        %v2635 = vtanh.pop %v2622
        %v2636 = vmul.f32 %v2632, %v2530
        %v2637 = vmul.f32 %v2632, %v2635
        %2639 = vrot.lane.b32.xlu0 %v2637, 64
        %v2640 = vpop.permute.xlu0 %2639
        %v2642 = vadd.f32 %v2636, %v2640
        %v2643 = vtanh.pop %v2642
        %2645 = vrot.lane.b32.xlu0 %v2643, 64
        %v2646 = vpop.permute.xlu0 %2645
        %v2648 = vmul.f32 %v2634, %v2646
        %v2649 = vsel %vm2424, %v2648, %v2635
        %v2650 = vpack.c.bf16 %v2649, %v2649
        %2651 = vmatprep.subr.bf16.mxu0 %v2267
        %2652 = vmatpush1.bf16.msra.mxu0 %v2266
        %2653 = vmatprep.subr.bf16.mxu0 %v2270
        %2654 = vmatpush1.bf16.msra.mxu0 %v2269
        %2655 = vmatprep.subr.bf16.mxu0 %v2273
        %2656 = vmatpush1.bf16.msra.mxu0 %v2272
        %2657 = vmatprep.subr.bf16.mxu0 %v2276
        %2658 = vmatpush1.bf16.msra.mxu0 %v2275
        %2659 = vmatprep.subr.bf16.mxu0 %v2279
        %2660 = vmatpush1.bf16.msra.mxu0 %v2278
        %2661 = vmatprep.subr.bf16.mxu0 %v2282
        %2662 = vmatpush1.bf16.msra.mxu0 %v2281
        %2663 = vmatprep.subr.bf16.mxu0 %v2285
        %2664 = vmatpush1.bf16.msra.mxu0 %v2284
        %2665 = vmatprep.subr.bf16.mxu0 %v2288
        %2666 = vmatpush1.bf16.msra.mxu0 %v2287
        %2667 = vmatprep.subr.bf16.mxu0 0
        %2668 = vmatpush1.bf16.msra.mxu0 0
        %2669 = vmatprep.subr.bf16.mxu0 0
        %2670 = vmatpush1.bf16.msra.mxu0 0
        %2671 = vmatprep.subr.bf16.mxu0 0
        %2672 = vmatpush1.bf16.msra.mxu0 0
        %2673 = vmatprep.subr.bf16.mxu0 0
        %2674 = vmatpush1.bf16.msra.mxu0 0
        %2675 = vmatprep.subr.bf16.mxu0 0
        %2676 = vmatpush1.bf16.msra.mxu0 0
        %2677 = vmatprep.subr.bf16.mxu0 0
        %2678 = vmatpush1.bf16.msra.mxu0 0
        %2679 = vmatprep.subr.bf16.mxu0 0
        %2680 = vmatpush1.bf16.msra.mxu0 0
        %2681 = vmatprep.subr.bf16.mxu0 0
        %2682 = vmatpush1.bf16.msra.mxu0 0
        %2683 = vmatprep.mubr.bf16.mxu0 0
        %2684 = vmatmul.mubr.bf16.gmra.mrb[0].mxu0 %v2650
        %v2685 = vpop.f32.mrb[0].mxu0
        %v2686 = vadd.f32 0.0, %v2685
        %v2687 = vpop.f32.mrb[0].mxu0
        %v2688 = vadd.f32 0.0, %v2687
        %v2689 = vpop.f32.mrb[0].mxu0
        %v2690 = vpop.f32.mrb[0].mxu0
        %2691 = vdwg.mxu0
        %2692 = vmatprep.subr.bf16.mxu0 0
        %2693 = vmatpush1.bf16.msra.mxu0 %v2268
        %2694 = vmatprep.subr.bf16.mxu0 0
        %2695 = vmatpush1.bf16.msra.mxu0 %v2271
        %2696 = vmatprep.subr.bf16.mxu0 0
        %2697 = vmatpush1.bf16.msra.mxu0 %v2274
        %2698 = vmatprep.subr.bf16.mxu0 0
        %2699 = vmatpush1.bf16.msra.mxu0 %v2277
        %2700 = vmatprep.subr.bf16.mxu0 0
        %2701 = vmatpush1.bf16.msra.mxu0 %v2280
        %2702 = vmatprep.subr.bf16.mxu0 0
        %2703 = vmatpush1.bf16.msra.mxu0 %v2283
        %2704 = vmatprep.subr.bf16.mxu0 0
        %2705 = vmatpush1.bf16.msra.mxu0 %v2286
        %2706 = vmatprep.subr.bf16.mxu0 0
        %2707 = vmatpush1.bf16.msra.mxu0 %v2289
        %2708 = vmatprep.subr.bf16.mxu0 0
        %2709 = vmatpush1.bf16.msra.mxu0 0
        %2710 = vmatprep.subr.bf16.mxu0 0
        %2711 = vmatpush1.bf16.msra.mxu0 0
        %2712 = vmatprep.subr.bf16.mxu0 0
        %2713 = vmatpush1.bf16.msra.mxu0 0
        %2714 = vmatprep.subr.bf16.mxu0 0
        %2715 = vmatpush1.bf16.msra.mxu0 0
        %2716 = vmatprep.subr.bf16.mxu0 0
        %2717 = vmatpush1.bf16.msra.mxu0 0
        %2718 = vmatprep.subr.bf16.mxu0 0
        %2719 = vmatpush1.bf16.msra.mxu0 0
        %2720 = vmatprep.subr.bf16.mxu0 0
        %2721 = vmatpush1.bf16.msra.mxu0 0
        %2722 = vmatprep.subr.bf16.mxu0 0
        %2723 = vmatpush1.bf16.msra.mxu0 0
        %2724 = vmatprep.mubr.bf16.mxu0 0
        %2725 = vmatmul.mubr.bf16.gmra.mrb[0].mxu0 %v2650
        %v2726 = vpop.f32.mrb[0].mxu0
        %v2727 = vadd.f32 0.0, %v2726
        %v2728 = vpop.f32.mrb[0].mxu0
        %v2729 = vpop.f32.mrb[0].mxu0
        %v2730 = vpop.f32.mrb[0].mxu0
        %2731 = vdwg.mxu0
        %v2732 = vadd.f32 %v1305, %v2686
        %v2733 = vadd.f32 %v1307, %v2688
        %v2734 = vadd.f32 %v1346, %v2727
        %v2735 = vxor.u32 %v2732, 2147483648
        %v2736 = vxor.u32 %v2733, 2147483648
        %v2737 = vmul.f32 %v2735, 1.442695
        %v2738 = vpow.pop %v2737
        %v2739 = vmul.f32 %v2736, 1.442695
        %v2740 = vpow.pop %v2739
        %v2741 = vadd.f32 %v2738, 1.0
        %v2742 = vadd.f32 %v2740, 1.0
        %v2743 = vrcp.pop %v2741
        %v2744 = vmul.f32 1.0, %v2743
        %v2745 = vrcp.pop %v2742
        %v2746 = vmul.f32 1.0, %v2745
        %v2747 = vtanh.pop %v2734
        %v2748 = vmul.f32 %v2744, %v2642
        %v2749 = vmul.f32 %v2744, %v2747
        %2751 = vrot.lane.b32.xlu0 %v2749, 64
        %v2752 = vpop.permute.xlu0 %2751
        %v2754 = vadd.f32 %v2748, %v2752
        %v2755 = vtanh.pop %v2754
        %2757 = vrot.lane.b32.xlu0 %v2755, 64
        %v2758 = vpop.permute.xlu0 %2757
        %v2760 = vmul.f32 %v2746, %v2758
        %v2761 = vsel %vm2424, %v2760, %v2747
        %v2762 = vpack.c.bf16 %v2761, %v2761
        %2763 = vmatprep.subr.bf16.mxu0 %v2267
        %2764 = vmatpush1.bf16.msra.mxu0 %v2266
        %2765 = vmatprep.subr.bf16.mxu0 %v2270
        %2766 = vmatpush1.bf16.msra.mxu0 %v2269
        %2767 = vmatprep.subr.bf16.mxu0 %v2273
        %2768 = vmatpush1.bf16.msra.mxu0 %v2272
        %2769 = vmatprep.subr.bf16.mxu0 %v2276
        %2770 = vmatpush1.bf16.msra.mxu0 %v2275
        %2771 = vmatprep.subr.bf16.mxu0 %v2279
        %2772 = vmatpush1.bf16.msra.mxu0 %v2278
        %2773 = vmatprep.subr.bf16.mxu0 %v2282
        %2774 = vmatpush1.bf16.msra.mxu0 %v2281
        %2775 = vmatprep.subr.bf16.mxu0 %v2285
        %2776 = vmatpush1.bf16.msra.mxu0 %v2284
        %2777 = vmatprep.subr.bf16.mxu0 %v2288
        %2778 = vmatpush1.bf16.msra.mxu0 %v2287
        %2779 = vmatprep.subr.bf16.mxu0 0
        %2780 = vmatpush1.bf16.msra.mxu0 0
        %2781 = vmatprep.subr.bf16.mxu0 0
        %2782 = vmatpush1.bf16.msra.mxu0 0
        %2783 = vmatprep.subr.bf16.mxu0 0
        %2784 = vmatpush1.bf16.msra.mxu0 0
        %2785 = vmatprep.subr.bf16.mxu0 0
        %2786 = vmatpush1.bf16.msra.mxu0 0
        %2787 = vmatprep.subr.bf16.mxu0 0
        %2788 = vmatpush1.bf16.msra.mxu0 0
        %2789 = vmatprep.subr.bf16.mxu0 0
        %2790 = vmatpush1.bf16.msra.mxu0 0
        %2791 = vmatprep.subr.bf16.mxu0 0
        %2792 = vmatpush1.bf16.msra.mxu0 0
        %2793 = vmatprep.subr.bf16.mxu0 0
        %2794 = vmatpush1.bf16.msra.mxu0 0
        %2795 = vmatprep.mubr.bf16.mxu0 0
        %2796 = vmatmul.mubr.bf16.gmra.mrb[0].mxu0 %v2762
        %v2797 = vpop.f32.mrb[0].mxu0
        %v2798 = vadd.f32 0.0, %v2797
        %v2799 = vpop.f32.mrb[0].mxu0
        %v2800 = vadd.f32 0.0, %v2799
        %v2801 = vpop.f32.mrb[0].mxu0
        %v2802 = vpop.f32.mrb[0].mxu0
        %2803 = vdwg.mxu0
        %2804 = vmatprep.subr.bf16.mxu0 0
        %2805 = vmatpush1.bf16.msra.mxu0 %v2268
        %2806 = vmatprep.subr.bf16.mxu0 0
        %2807 = vmatpush1.bf16.msra.mxu0 %v2271
        %2808 = vmatprep.subr.bf16.mxu0 0
        %2809 = vmatpush1.bf16.msra.mxu0 %v2274
        %2810 = vmatprep.subr.bf16.mxu0 0
        %2811 = vmatpush1.bf16.msra.mxu0 %v2277
        %2812 = vmatprep.subr.bf16.mxu0 0
        %2813 = vmatpush1.bf16.msra.mxu0 %v2280
        %2814 = vmatprep.subr.bf16.mxu0 0
        %2815 = vmatpush1.bf16.msra.mxu0 %v2283
        %2816 = vmatprep.subr.bf16.mxu0 0
        %2817 = vmatpush1.bf16.msra.mxu0 %v2286
        %2818 = vmatprep.subr.bf16.mxu0 0
        %2819 = vmatpush1.bf16.msra.mxu0 %v2289
        %2820 = vmatprep.subr.bf16.mxu0 0
        %2821 = vmatpush1.bf16.msra.mxu0 0
        %2822 = vmatprep.subr.bf16.mxu0 0
        %2823 = vmatpush1.bf16.msra.mxu0 0
        %2824 = vmatprep.subr.bf16.mxu0 0
        %2825 = vmatpush1.bf16.msra.mxu0 0
        %2826 = vmatprep.subr.bf16.mxu0 0
        %2827 = vmatpush1.bf16.msra.mxu0 0
        %2828 = vmatprep.subr.bf16.mxu0 0
        %2829 = vmatpush1.bf16.msra.mxu0 0
        %2830 = vmatprep.subr.bf16.mxu0 0
        %2831 = vmatpush1.bf16.msra.mxu0 0
        %2832 = vmatprep.subr.bf16.mxu0 0
        %2833 = vmatpush1.bf16.msra.mxu0 0
        %2834 = vmatprep.subr.bf16.mxu0 0
        %2835 = vmatpush1.bf16.msra.mxu0 0
        %2836 = vmatprep.mubr.bf16.mxu0 0
        %2837 = vmatmul.mubr.bf16.gmra.mrb[0].mxu0 %v2762
        %v2838 = vpop.f32.mrb[0].mxu0
        %v2839 = vadd.f32 0.0, %v2838
        %v2840 = vpop.f32.mrb[0].mxu0
        %v2841 = vpop.f32.mrb[0].mxu0
        %v2842 = vpop.f32.mrb[0].mxu0
        %2843 = vdwg.mxu0
        %v2844 = vadd.f32 %v1348, %v2798
        %v2845 = vadd.f32 %v1387, %v2800
        %v2846 = vadd.f32 %v1389, %v2839
        %v2847 = vxor.u32 %v2844, 2147483648
        %v2848 = vxor.u32 %v2845, 2147483648
        %v2849 = vmul.f32 %v2847, 1.442695
        %v2850 = vpow.pop %v2849
        %v2851 = vmul.f32 %v2848, 1.442695
        %v2852 = vpow.pop %v2851
        %v2853 = vadd.f32 %v2850, 1.0
        %v2854 = vadd.f32 %v2852, 1.0
        %v2855 = vrcp.pop %v2853
        %v2856 = vmul.f32 1.0, %v2855
        %v2857 = vrcp.pop %v2854
        %v2858 = vmul.f32 1.0, %v2857
        %v2859 = vtanh.pop %v2846
        %v2860 = vmul.f32 %v2856, %v2754
        %v2861 = vmul.f32 %v2856, %v2859
        %2863 = vrot.lane.b32.xlu0 %v2861, 64
        %v2864 = vpop.permute.xlu0 %2863
        %v2866 = vadd.f32 %v2860, %v2864
        %v2867 = vtanh.pop %v2866
        %2869 = vrot.lane.b32.xlu0 %v2867, 64
        %v2870 = vpop.permute.xlu0 %2869
        %v2872 = vmul.f32 %v2858, %v2870
        %v2873 = vsel %vm2424, %v2872, %v2859
        %2875 = vrot.lane.b32.xlu0 %v2873, 64
        %v2876 = vpop.permute.xlu0 %2875
        %2879 = vrot.lane.b32.xlu0 %v2153, 64
        %v2880 = vpop.permute.xlu0 %2879
        %v2882 = vsel %vm2424, %v1629, %v2876
        %v2883 = vsel %vm2424, %v2876, %v2880
        %v2884 = vpack.c.bf16 %v2882, %v2882
        %v2885 = vpack.c.bf16 %v2883, %v2883
        %v2886 = vld [vmem:[#allocation16] sm:$0xf]
        %v2887 = vld [vmem:[#allocation16 + $0x4] sm:$0xf]
        %v2888 = vld [vmem:[#allocation16 + $0x8] sm:$0xf]
        %v2889 = vld [vmem:[#allocation16 + $0xc] sm:$0xf]
        %v2890 = vld [vmem:[#allocation16 + $0x10] sm:$0xf]
        %v2891 = vld [vmem:[#allocation16 + $0x14] sm:$0xf]
        %v2892 = vld [vmem:[#allocation16 + $0x18] sm:$0xf]
        %v2893 = vld [vmem:[#allocation16 + $0x1c] sm:$0xf]
        %v2894 = vld [vmem:[#allocation16 + $0x20] sm:$0xf]
        %v2895 = vld [vmem:[#allocation16 + $0x24] sm:$0xf]
        %v2896 = vld [vmem:[#allocation16 + $0x28] sm:$0xf]
        %v2897 = vld [vmem:[#allocation16 + $0x2c] sm:$0xf]
        %v2898 = vld [vmem:[#allocation16 + $0x30] sm:$0xf]
        %v2899 = vld [vmem:[#allocation16 + $0x34] sm:$0xf]
        %v2900 = vld [vmem:[#allocation16 + $0x38] sm:$0xf]
        %v2901 = vld [vmem:[#allocation16 + $0x3c] sm:$0xf]
        %v2902 = vld [vmem:[#allocation16 + $0x40] sm:$0xf]
        %v2903 = vld [vmem:[#allocation16 + $0x44] sm:$0xf]
        %v2904 = vld [vmem:[#allocation16 + $0x48] sm:$0xf]
        %v2905 = vld [vmem:[#allocation16 + $0x4c] sm:$0xf]
        %v2906 = vld [vmem:[#allocation16 + $0x50] sm:$0xf]
        %v2907 = vld [vmem:[#allocation16 + $0x54] sm:$0xf]
        %v2908 = vld [vmem:[#allocation16 + $0x58] sm:$0xf]
        %v2909 = vld [vmem:[#allocation16 + $0x5c] sm:$0xf]
        %v2910 = vld [vmem:[#allocation16 + $0x60] sm:$0xf]
        %v2911 = vld [vmem:[#allocation16 + $0x64] sm:$0xf]
        %v2912 = vld [vmem:[#allocation17] sm:$0x1]
        %v2914 = vlaneseq
        %v2915 = vshrl.u32 %v2914, 7
        %v2916 = vsub.s32 0, %v2915
        %v2917 = vrot.slane %v2912, %v2916
        %v2945 = vunpack.c.l.b16 %v2886
        %v2946 = vunpack.c.l.b16 %v2887
        %v2947 = vunpack.c.l.b16 %v2888
        %v2948 = vunpack.c.l.b16 %v2889
        %v2949 = vunpack.c.l.b16 %v2890
        %v2950 = vunpack.c.l.b16 %v2891
        %v2951 = vunpack.c.l.b16 %v2892
        %v2952 = vunpack.c.l.b16 %v2893
        %v2953 = vunpack.c.l.b16 %v2894
        %v2954 = vunpack.c.l.b16 %v2895
        %v2955 = vunpack.c.l.b16 %v2896
        %v2956 = vunpack.c.l.b16 %v2897
        %v2957 = vunpack.c.l.b16 %v2898
        %v2958 = vunpack.c.l.b16 %v2899
        %v2959 = vunpack.c.l.b16 %v2900
        %v2960 = vunpack.c.l.b16 %v2901
        %v2961 = vunpack.c.l.b16 %v2902
        %v2962 = vunpack.c.l.b16 %v2903
        %v2963 = vunpack.c.l.b16 %v2904
        %v2964 = vunpack.c.l.b16 %v2905
        %v2965 = vunpack.c.l.b16 %v2906
        %v2966 = vunpack.c.l.b16 %v2907
        %v2967 = vunpack.c.l.b16 %v2908
        %v2968 = vunpack.c.l.b16 %v2909
        %v2969 = vunpack.c.l.b16 %v2910
        %v2970 = vunpack.c.l.b16 %v2911
        %v2971 = vpack.c.b16 %v2946, %v2945
        %v2972 = vpack.c.b16 %v2948, %v2947
        %v2973 = vpack.c.b16 %v2950, %v2949
        %v2974 = vpack.c.b16 %v2952, %v2951
        %v2975 = vpack.c.b16 %v2954, %v2953
        %v2976 = vpack.c.b16 %v2956, %v2955
        %v2977 = vpack.c.b16 %v2958, %v2957
        %v2978 = vpack.c.b16 %v2960, %v2959
        %v2979 = vpack.c.b16 %v2962, %v2961
        %v2980 = vpack.c.b16 %v2964, %v2963
        %v2981 = vpack.c.b16 %v2966, %v2965
        %v2982 = vpack.c.b16 %v2968, %v2967
        %v2983 = vpack.c.b16 %v2970, %v2969
        %vm2997 = vcmask 654336
        %v2999 = vsel %vm2997, %v2885, 0
        %3001 = vmatprep.subr.bf16.mxu0 0
        %3002 = vmatpush1.bf16.msra.mxu0 %v2971
        %3003 = vmatprep.subr.bf16.mxu0 0
        %3004 = vmatpush1.bf16.msra.mxu0 %v2972
        %3005 = vmatprep.subr.bf16.mxu0 0
        %3006 = vmatpush1.bf16.msra.mxu0 %v2973
        %3007 = vmatprep.subr.bf16.mxu0 0
        %3008 = vmatpush1.bf16.msra.mxu0 %v2974
        %3009 = vmatprep.subr.bf16.mxu0 0
        %3010 = vmatpush1.bf16.msra.mxu0 %v2975
        %3011 = vmatprep.subr.bf16.mxu0 0
        %3012 = vmatpush1.bf16.msra.mxu0 %v2976
        %3013 = vmatprep.subr.bf16.mxu0 0
        %3014 = vmatpush1.bf16.msra.mxu0 %v2977
        %3015 = vmatprep.subr.bf16.mxu0 0
        %3016 = vmatpush1.bf16.msra.mxu0 %v2978
        %3017 = vmatprep.subr.bf16.mxu0 0
        %3018 = vmatpush1.bf16.msra.mxu0 %v2979
        %3019 = vmatprep.subr.bf16.mxu0 0
        %3020 = vmatpush1.bf16.msra.mxu0 %v2980
        %3021 = vmatprep.subr.bf16.mxu0 0
        %3022 = vmatpush1.bf16.msra.mxu0 %v2981
        %3023 = vmatprep.subr.bf16.mxu0 0
        %3024 = vmatpush1.bf16.msra.mxu0 %v2982
        %3025 = vmatprep.subr.bf16.mxu0 0
        %3026 = vmatpush1.bf16.msra.mxu0 %v2983
        %3027 = vmatprep.subr.bf16.mxu0 0
        %3028 = vmatpush1.bf16.msra.mxu0 0
        %3029 = vmatprep.subr.bf16.mxu0 0
        %3030 = vmatpush1.bf16.msra.mxu0 0
        %3031 = vmatprep.subr.bf16.mxu0 0
        %3032 = vmatpush1.bf16.msra.mxu0 0
        %3033 = vmatprep.mubr.bf16.mxu0 %v2999
        %3034 = vmatmul.mubr.bf16.gmra.mrb[0].mxu0 %v2884
        %v3035 = vpop.f32.mrb[0].mxu0
        %v3036 = vadd.f32 %v2917, %v3035
        %v3037 = vpop.f32.mrb[0].mxu0
        %v3038 = vpop.f32.mrb[0].mxu0
        %v3039 = vpop.f32.mrb[0].mxu0
        %3040 = vdwg.mxu0
        %v3041 = vxor.u32 %v3036, 2147483648
        %v3042 = vmul.f32 %v3041, 1.442695
        %v3043 = vpow.pop %v3042
        %v3044 = vadd.f32 %v3043, 1.0
        %v3045 = vrcp.pop %v3044
        %v3046 = vmul.f32 1.0, %v3045
        %vm3047 = vcmask 31744
        %v3048 = vsel %vm3047, %v3046, 0.0
        %3049 = vadd.xlane.f32.xlu0 %v3048
        %v3050 = vpop.xlane.xlu0 %3049
        %v3051 = vmul.f32 %v3050, 0.25
        %3053 = vrot.lane.b32.xlu0 %v3046, 1
        %v3054 = vpop.permute.xlu0 %3053
        %vm3056 = vcmask 7168
        %v3057 = vsel %vm3056, %v3051, %v3054
        %vm3058 = vcmask 39936
        %v3059 = vsel %vm3058, %v3057, 0.0
        %vm3060 = vcmask 64512
        %3061 = vst.msk [vmem:[%s497] sm:$0xff] %vm3060, %v3059
        %s3062 = sand.u32 %s255, 1
        %s3063 = scalar_lea.sflag [#allocation4], %s3062
        %s3064 = sand.u32 %s255, 1
        %s3065 = smul.addr %s3064, 8
        %s3066 = scalar_lea.vmem [#allocation19], %s3065
        // Predicated region
        $region101: #{torch_models_forward.1} parent=59 // pred_check
          %p3067 = pneg %p265
        $region102: #{torch_models_forward.1} parent=59 // pred_check_branch
          %3069 = sbr.rel (%p3067) target = $region104
        $region103: #{torch_models_forward.1} parent=59 // pred_region
          %s3071 = ssub.s32 128, 128
          %3072 = vsyncadd %s3063, %s3071
          %s3073 = smul.addr %s32, 128
          %s3074 = scalar_lea.hbm %s10, %s3073
          %s3076 = sshll.u32 %s3066, 4
          %s3077 = int_to_ptr.vmem [resolvable:$true] %s3076
          %3079 = dma.vmem_to_hbm [thread:$0]  %s3077, 128, %s3074, %s3063
        $region104: #{torch_models_forward.1} parent=59 // pred_fallthru
          _
      $region60: #{torch_models_forward.1} parent=5 // pred_fallthru
        _
      %p3080 = scmp.le.s32.totalorder 2, %s27
      // Predicated region
      $region105: #{torch_models_forward.1} parent=5 // pred_check
        %p3081 = pneg %p3080
      $region106: #{torch_models_forward.1} parent=5 // pred_check_branch
        %3083 = sbr.rel (%p3081) target = $region108
      $region107: #{torch_models_forward.1} parent=5 // pred_region
        %s3084 = ssub.s32 %s27, 2
        // Predicated region
        $region109: #{torch_models_forward.1} parent=107 // pred_check
          %p3085 = pneg %p271
        $region110: #{torch_models_forward.1} parent=107 // pred_check_branch
          %3087 = sbr.rel (%p3085) target = $region112
        $region111: #{torch_models_forward.1} parent=107 // pred_region
          %s3088 = sand.u32 %s256, 1
          %s3089 = scalar_lea.sflag [#allocation4], %s3088
          %s3090 = sand.u32 %s256, 1
          %s3091 = smul.addr %s3090, 8
          %s3092 = scalar_lea.vmem [#allocation19], %s3091
          %3093 = dma.done %s3089, 128
        $region112: #{torch_models_forward.1} parent=107 // pred_fallthru
          _
      $region108: #{torch_models_forward.1} parent=5 // pred_fallthru
        _
    $region6: #{torch_models_forward.1} parent=1 // loop_footer
      %s31 = sadd.s32 1, %s27
    $region7: #{torch_models_forward.1} parent=1 // loop_footer_branch
      %26 = sbr.rel target = $region3
    $region8: #{torch_models_forward.1} parent=1 // loop_exit
      _
    %3094 = vsyncpa [#allocation3], 1
    %s3095 = scalar_lea.sflag [#allocation3], 1
    %3096 = vsyncpa %s3095, 1
    %3097 = vsyncpa [#allocation6], 1
    %3098 = vsyncpa [#allocation9], 1
    %3099 = vsyncpa [#allocation12], 1
    %3100 = vsyncpa [#allocation15], 1
    %3101 = vsyncpa [#allocation18], 1
    %3102 = vsyncpa [#allocation4], 1
    %s3103 = scalar_lea.sflag [#allocation4], 1
    %3104 = vsyncpa %s3103, 1

</llo_original>
